<compile_context>
chip_gen: v6e
topology: v6e:2x2x1
jax: 0.10.0
libtpu: 0.0.40
codegen_flags: <defaults>
</compile_context>

<pallas_src>
import jax
import jax.numpy as jnp
from jax.experimental import pallas as pl
from jax.experimental.pallas import tpu as pltpu


def _conv_bottleneck_kernel(x_ref, w_ref, b_ref, out_ref,
                            xpad_ref, slab_ref, acc_ref):
    # x_ref:   (H, W, Cin)      concatenated dec||enc features, bf16 (one batch)
    # w_ref:   (9, Cin, Cout)   weights, tap index = kh*3 + kw, bf16
    # b_ref:   (1, Cout)        bias, f32
    # out_ref: (H*W, Cout)      output block
    # xpad_ref:(H+2, W+2, Cin)  zero-halo scratch, bf16
    # slab_ref:(H+2, W, Cin)    kw-shifted slab scratch, bf16
    # acc_ref: (H*W, Cout)      f32 accumulator scratch
    H, W, Cin = x_ref.shape

    # Zero-fill the padded scratch (halo) then write the interior.  Done every
    # grid step so the kernel stays correct under megacore grid sharding
    # (scratch is per-core and uninitialized).
    xpad_ref[...] = jnp.zeros_like(xpad_ref)
    xpad_ref[1:H + 1, 1:W + 1, :] = x_ref[...]

    acc_ref[...] = jnp.zeros_like(acc_ref)

    # 3x3 conv = 9 shifted matmuls over the concatenated channel dim.
    # kw outermost: one strided width-slice per kw into a contiguous slab, so
    # the inner kh slice is a cheap leading-dim slice (no per-tap relayout).
    for kw in range(3):
        slab_ref[...] = xpad_ref[:, kw:kw + W, :]
        for kh in range(3):
            xk = slab_ref[kh:kh + H].reshape(H * W, Cin)
            acc_ref[...] += jnp.dot(xk, w_ref[kh * 3 + kw],
                                    preferred_element_type=jnp.float32)

    y = acc_ref[...] + b_ref[...]          # (1, Cout) broadcast, f32
    out_ref[...] = jnp.maximum(y, 0.0).astype(out_ref.dtype)


def conv_bottleneck(dec_nchw, enc_nchw, weight, bias):
    """dec_nchw: (N, Cd, H, W), enc_nchw: (N, Ce, H, W)
       weight:   (Cout, Cd+Ce, 3, 3)  (PyTorch Conv2d layout)
       bias:     (Cout,)
       returns   (N, Cout, H, W)  -- matches PyTorch forward semantics."""
    N, Cd, H, W = dec_nchw.shape
    Ce = enc_nchw.shape[1]
    Cin = Cd + Ce
    Cout = weight.shape[0]

    # NCHW -> NHWC, fold the channel concat into the wrapper (single fused XLA
    # copy), cast to bf16.  No spatial pre-pad: halo handled inside the kernel.
    dec = jnp.transpose(dec_nchw, (0, 2, 3, 1))
    enc = jnp.transpose(enc_nchw, (0, 2, 3, 1))
    x = jnp.concatenate([dec, enc], axis=-1).astype(jnp.bfloat16)

    # (Cout, Cin, 3, 3) -> (3, 3, Cin, Cout) -> (9, Cin, Cout), bf16.
    w = jnp.transpose(weight, (2, 3, 1, 0)).reshape(9, Cin, Cout).astype(jnp.bfloat16)
    b2 = bias.reshape(1, Cout).astype(jnp.float32)

    out_flat = pl.pallas_call(
        _conv_bottleneck_kernel,
        out_shape=jax.ShapeDtypeStruct((N, H * W, Cout), dec_nchw.dtype),
        grid_spec=pltpu.PrefetchScalarGridSpec(
            num_scalar_prefetch=0,
            grid=(N,),
            in_specs=[
                pl.BlockSpec((None, H, W, Cin), lambda n: (n, 0, 0, 0)),
                pl.BlockSpec((9, Cin, Cout), lambda n: (0, 0, 0)),
                pl.BlockSpec((1, Cout), lambda n: (0, 0)),
            ],
            out_specs=pl.BlockSpec((None, H * W, Cout), lambda n: (n, 0, 0)),
            scratch_shapes=[
                pltpu.VMEM((H + 2, W + 2, Cin), jnp.bfloat16),   # halo-padded image
                pltpu.VMEM((H + 2, W, Cin), jnp.bfloat16),       # kw-shifted slab
                pltpu.VMEM((H * W, Cout), jnp.float32),          # f32 accumulator
            ],
        ),
        compiler_params=pltpu.CompilerParams(
            dimension_semantics=("parallel",),
            vmem_limit_bytes=64 * 1024 * 1024,
        ),
    )(x, w, b2)

    # (N, H*W, Cout) -> (N, H, W, Cout) -> NCHW to match PyTorch output layout.
    return jnp.transpose(out_flat.reshape(N, H, W, Cout), (0, 3, 1, 2))


def _reference(dec_nchw, enc_nchw, weight, bias):
    x = jnp.concatenate([dec_nchw, enc_nchw], axis=1)
    y = jax.lax.conv_general_dilated(
        x, weight, window_strides=(1, 1), padding=((1, 1), (1, 1)),
        dimension_numbers=("NCHW", "OIHW", "NCHW"))
    y = y + bias.reshape(1, -1, 1, 1)
    return jnp.maximum(y, 0.0)


if __name__ == "__main__":
    key = jax.random.PRNGKey(0)
    k_dec, k_enc, k_w, k_b = jax.random.split(key, 4)

    N, Cd, Ce, H, W = 2, 4, 4, 16, 16
    in_channels = Cd + Ce        # channel concat -> 8
    out_channels = 4

    dec = jax.random.normal(k_dec, (N, Cd, H, W), jnp.float32)
    enc = jax.random.normal(k_enc, (N, Ce, H, W), jnp.float32)

    # Deterministic parameter init (kaiming-uniform-like bounds, synthetic).
    fan_in = in_channels * 3 * 3
    bound = 1.0 / (fan_in ** 0.5)
    weight = jax.random.uniform(k_w, (out_channels, in_channels, 3, 3),
                                jnp.float32, -bound, bound)
    bias = jax.random.uniform(k_b, (out_channels,), jnp.float32, -bound, bound)

    out = conv_bottleneck(dec, enc, weight, bias)
    out = jax.block_until_ready(out)

    # Reference on the same bf16-rounded operands the kernel consumes (the
    # kernel accumulates in f32), so the comparison isolates kernel errors.
    dec_q = dec.astype(jnp.bfloat16).astype(jnp.float32)
    enc_q = enc.astype(jnp.bfloat16).astype(jnp.float32)
    w_q = weight.astype(jnp.bfloat16).astype(jnp.float32)
    ref = _reference(dec_q, enc_q, w_q, bias)

    assert out.shape == (N, out_channels, H, W)
    assert jnp.allclose(out, ref, atol=2e-2, rtol=2e-2), "mismatch vs reference"

    print("KERNEL_OK")
</pallas_src>

<mosaic_0001>
module attributes {stable_mosaic.version = 11 : i64} {
  func.func @_conv_bottleneck_kernel(%arg0: i32, %arg1: memref<1x16x16x8xbf16, #tpu.memory_space<vmem>>, %arg2: memref<9x8x4xbf16, #tpu.memory_space<vmem>>, %arg3: memref<1x4xf32, #tpu.memory_space<vmem>>, %arg4: memref<1x256x4xf32, #tpu.memory_space<vmem>>, %arg5: memref<18x18x8xbf16, #tpu.memory_space<vmem>>, %arg6: memref<18x16x8xbf16, #tpu.memory_space<vmem>>, %arg7: memref<256x4xf32, #tpu.memory_space<vmem>>) attributes {dimension_semantics = [#tpu.dimension_semantics<parallel>], iteration_bounds = array<i64: 2>, scalar_prefetch = 0 : i64, scratch_operands = 3 : i64, tpu.core_type = #tpu.core_type<tc>, window_params = [{transform_indices = @transform_0, window_bounds = array<i64: 1, 16, 16, 8>}, {pipeline_mode = #tpu.pipeline_mode<synchronous>, transform_indices = @transform_1, window_bounds = array<i64: 9, 8, 4>}, {pipeline_mode = #tpu.pipeline_mode<synchronous>, transform_indices = @transform_2, window_bounds = array<i64: 1, 4>}, {transform_indices = @transform_3, window_bounds = array<i64: 1, 256, 4>}]} {
    %cst = arith.constant 0.000000e+00 : bf16
    %0 = vector.broadcast %cst : bf16 to vector<18x18x8xbf16>
    %c0 = arith.constant 0 : index
    %c0_0 = arith.constant 0 : index
    %c0_1 = arith.constant 0 : index
    %1 = vector.load %arg5[%c0, %c0_0, %c0_1] : memref<18x18x8xbf16, #tpu.memory_space<vmem>>, vector<18x18x8xbf16>
    tpu.vector_store %arg5[%c0, %c0_0, %c0_1], %0 {strides = array<i32>} : memref<18x18x8xbf16, #tpu.memory_space<vmem>>, vector<18x18x8xbf16>,
    %c0_2 = arith.constant 0 : index
    %c0_3 = arith.constant 0 : index
    %c0_4 = arith.constant 0 : index
    %c0_5 = arith.constant 0 : index
    %2 = vector.load %arg1[%c0_2, %c0_3, %c0_4, %c0_5] : memref<1x16x16x8xbf16, #tpu.memory_space<vmem>>, vector<1x16x16x8xbf16>
    %3 = vector.shape_cast %2 : vector<1x16x16x8xbf16> to vector<16x16x8xbf16>
    %c1 = arith.constant 1 : index
    %c1_6 = arith.constant 1 : index
    %c0_7 = arith.constant 0 : index
    %4 = vector.load %arg5[%c1, %c1_6, %c0_7] : memref<18x18x8xbf16, #tpu.memory_space<vmem>>, vector<16x16x8xbf16>
    tpu.vector_store %arg5[%c1, %c1_6, %c0_7], %3 {strides = array<i32>} : memref<18x18x8xbf16, #tpu.memory_space<vmem>>, vector<16x16x8xbf16>,
    %cst_8 = arith.constant 0.000000e+00 : f32
    %5 = vector.broadcast %cst_8 : f32 to vector<256x4xf32>
    %c0_9 = arith.constant 0 : index
    %c0_10 = arith.constant 0 : index
    %6 = vector.load %arg7[%c0_9, %c0_10] : memref<256x4xf32, #tpu.memory_space<vmem>>, vector<256x4xf32>
    tpu.vector_store %arg7[%c0_9, %c0_10], %5 {strides = array<i32>} : memref<256x4xf32, #tpu.memory_space<vmem>>, vector<256x4xf32>,
    %c0_11 = arith.constant 0 : index
    %c0_12 = arith.constant 0 : index
    %c0_13 = arith.constant 0 : index
    %7 = vector.load %arg5[%c0_11, %c0_12, %c0_13] : memref<18x18x8xbf16, #tpu.memory_space<vmem>>, vector<18x16x8xbf16>
    %c0_14 = arith.constant 0 : index
    %c0_15 = arith.constant 0 : index
    %c0_16 = arith.constant 0 : index
    %8 = vector.load %arg6[%c0_14, %c0_15, %c0_16] : memref<18x16x8xbf16, #tpu.memory_space<vmem>>, vector<18x16x8xbf16>
    tpu.vector_store %arg6[%c0_14, %c0_15, %c0_16], %7 {strides = array<i32>} : memref<18x16x8xbf16, #tpu.memory_space<vmem>>, vector<18x16x8xbf16>,
    %c0_17 = arith.constant 0 : index
    %c0_18 = arith.constant 0 : index
    %c0_19 = arith.constant 0 : index
    %9 = vector.load %arg6[%c0_17, %c0_18, %c0_19] : memref<18x16x8xbf16, #tpu.memory_space<vmem>>, vector<16x16x8xbf16>
    %10 = vector.shape_cast %9 : vector<16x16x8xbf16> to vector<256x8xbf16>
    %c0_20 = arith.constant 0 : index
    %c0_21 = arith.constant 0 : index
    %11 = vector.load %arg7[%c0_20, %c0_21] : memref<256x4xf32, #tpu.memory_space<vmem>>, vector<256x4xf32>
    %c0_22 = arith.constant 0 : index
    %c0_23 = arith.constant 0 : index
    %c0_24 = arith.constant 0 : index
    %12 = vector.load %arg2[%c0_22, %c0_23, %c0_24] : memref<9x8x4xbf16, #tpu.memory_space<vmem>>, vector<1x8x4xbf16>
    %13 = vector.shape_cast %12 : vector<1x8x4xbf16> to vector<8x4xbf16>
    %cst_25 = arith.constant dense<0.000000e+00> : vector<256x4xf32>
    %14 = tpu.matmul %10, %13, %cst_25 {dimension_numbers = #tpu.dot_dimension_numbers<[1], [0], [0], [1], [0, 0, 1, 1], [], []>} : vector<256x8xbf16>, vector<8x4xbf16>, vector<256x4xf32> -> vector<256x4xf32>
    %15 = arith.addf %11, %14 : vector<256x4xf32>
    %c0_26 = arith.constant 0 : index
    %c0_27 = arith.constant 0 : index
    %16 = vector.load %arg7[%c0_26, %c0_27] : memref<256x4xf32, #tpu.memory_space<vmem>>, vector<256x4xf32>
    tpu.vector_store %arg7[%c0_26, %c0_27], %15 {strides = array<i32>} : memref<256x4xf32, #tpu.memory_space<vmem>>, vector<256x4xf32>,
    %c1_28 = arith.constant 1 : index
    %c0_29 = arith.constant 0 : index
    %c0_30 = arith.constant 0 : index
    %17 = vector.load %arg6[%c1_28, %c0_29, %c0_30] : memref<18x16x8xbf16, #tpu.memory_space<vmem>>, vector<16x16x8xbf16>
    %18 = vector.shape_cast %17 : vector<16x16x8xbf16> to vector<256x8xbf16>
    %c0_31 = arith.constant 0 : index
    %c0_32 = arith.constant 0 : index
    %19 = vector.load %arg7[%c0_31, %c0_32] : memref<256x4xf32, #tpu.memory_space<vmem>>, vector<256x4xf32>
    %c3 = arith.constant 3 : index
    %c0_33 = arith.constant 0 : index
    %c0_34 = arith.constant 0 : index
    %20 = vector.load %arg2[%c3, %c0_33, %c0_34] : memref<9x8x4xbf16, #tpu.memory_space<vmem>>, vector<1x8x4xbf16>
    %21 = vector.shape_cast %20 : vector<1x8x4xbf16> to vector<8x4xbf16>
    %cst_35 = arith.constant dense<0.000000e+00> : vector<256x4xf32>
    %22 = tpu.matmul %18, %21, %cst_35 {dimension_numbers = #tpu.dot_dimension_numbers<[1], [0], [0], [1], [0, 0, 1, 1], [], []>} : vector<256x8xbf16>, vector<8x4xbf16>, vector<256x4xf32> -> vector<256x4xf32>
    %23 = arith.addf %19, %22 : vector<256x4xf32>
    %c0_36 = arith.constant 0 : index
    %c0_37 = arith.constant 0 : index
    %24 = vector.load %arg7[%c0_36, %c0_37] : memref<256x4xf32, #tpu.memory_space<vmem>>, vector<256x4xf32>
    tpu.vector_store %arg7[%c0_36, %c0_37], %23 {strides = array<i32>} : memref<256x4xf32, #tpu.memory_space<vmem>>, vector<256x4xf32>,
    %c2 = arith.constant 2 : index
    %c0_38 = arith.constant 0 : index
    %c0_39 = arith.constant 0 : index
    %25 = vector.load %arg6[%c2, %c0_38, %c0_39] : memref<18x16x8xbf16, #tpu.memory_space<vmem>>, vector<16x16x8xbf16>
    %26 = vector.shape_cast %25 : vector<16x16x8xbf16> to vector<256x8xbf16>
    %c0_40 = arith.constant 0 : index
    %c0_41 = arith.constant 0 : index
    %27 = vector.load %arg7[%c0_40, %c0_41] : memref<256x4xf32, #tpu.memory_space<vmem>>, vector<256x4xf32>
    %c6 = arith.constant 6 : index
    %c0_42 = arith.constant 0 : index
    %c0_43 = arith.constant 0 : index
    %28 = vector.load %arg2[%c6, %c0_42, %c0_43] : memref<9x8x4xbf16, #tpu.memory_space<vmem>>, vector<1x8x4xbf16>
    %29 = vector.shape_cast %28 : vector<1x8x4xbf16> to vector<8x4xbf16>
    %cst_44 = arith.constant dense<0.000000e+00> : vector<256x4xf32>
    %30 = tpu.matmul %26, %29, %cst_44 {dimension_numbers = #tpu.dot_dimension_numbers<[1], [0], [0], [1], [0, 0, 1, 1], [], []>} : vector<256x8xbf16>, vector<8x4xbf16>, vector<256x4xf32> -> vector<256x4xf32>
    %31 = arith.addf %27, %30 : vector<256x4xf32>
    %c0_45 = arith.constant 0 : index
    %c0_46 = arith.constant 0 : index
    %32 = vector.load %arg7[%c0_45, %c0_46] : memref<256x4xf32, #tpu.memory_space<vmem>>, vector<256x4xf32>
    tpu.vector_store %arg7[%c0_45, %c0_46], %31 {strides = array<i32>} : memref<256x4xf32, #tpu.memory_space<vmem>>, vector<256x4xf32>,
    %c0_47 = arith.constant 0 : index
    %c1_48 = arith.constant 1 : index
    %c0_49 = arith.constant 0 : index
    %33 = vector.load %arg5[%c0_47, %c1_48, %c0_49] : memref<18x18x8xbf16, #tpu.memory_space<vmem>>, vector<18x16x8xbf16>
    %c0_50 = arith.constant 0 : index
    %c0_51 = arith.constant 0 : index
    %c0_52 = arith.constant 0 : index
    %34 = vector.load %arg6[%c0_50, %c0_51, %c0_52] : memref<18x16x8xbf16, #tpu.memory_space<vmem>>, vector<18x16x8xbf16>
    tpu.vector_store %arg6[%c0_50, %c0_51, %c0_52], %33 {strides = array<i32>} : memref<18x16x8xbf16, #tpu.memory_space<vmem>>, vector<18x16x8xbf16>,
    %c0_53 = arith.constant 0 : index
    %c0_54 = arith.constant 0 : index
    %c0_55 = arith.constant 0 : index
    %35 = vector.load %arg6[%c0_53, %c0_54, %c0_55] : memref<18x16x8xbf16, #tpu.memory_space<vmem>>, vector<16x16x8xbf16>
    %36 = vector.shape_cast %35 : vector<16x16x8xbf16> to vector<256x8xbf16>
    %c0_56 = arith.constant 0 : index
    %c0_57 = arith.constant 0 : index
    %37 = vector.load %arg7[%c0_56, %c0_57] : memref<256x4xf32, #tpu.memory_space<vmem>>, vector<256x4xf32>
    %c1_58 = arith.constant 1 : index
    %c0_59 = arith.constant 0 : index
    %c0_60 = arith.constant 0 : index
    %38 = vector.load %arg2[%c1_58, %c0_59, %c0_60] : memref<9x8x4xbf16, #tpu.memory_space<vmem>>, vector<1x8x4xbf16>
    %39 = vector.shape_cast %38 : vector<1x8x4xbf16> to vector<8x4xbf16>
    %cst_61 = arith.constant dense<0.000000e+00> : vector<256x4xf32>
    %40 = tpu.matmul %36, %39, %cst_61 {dimension_numbers = #tpu.dot_dimension_numbers<[1], [0], [0], [1], [0, 0, 1, 1], [], []>} : vector<256x8xbf16>, vector<8x4xbf16>, vector<256x4xf32> -> vector<256x4xf32>
    %41 = arith.addf %37, %40 : vector<256x4xf32>
    %c0_62 = arith.constant 0 : index
    %c0_63 = arith.constant 0 : index
    %42 = vector.load %arg7[%c0_62, %c0_63] : memref<256x4xf32, #tpu.memory_space<vmem>>, vector<256x4xf32>
    tpu.vector_store %arg7[%c0_62, %c0_63], %41 {strides = array<i32>} : memref<256x4xf32, #tpu.memory_space<vmem>>, vector<256x4xf32>,
    %c1_64 = arith.constant 1 : index
    %c0_65 = arith.constant 0 : index
    %c0_66 = arith.constant 0 : index
    %43 = vector.load %arg6[%c1_64, %c0_65, %c0_66] : memref<18x16x8xbf16, #tpu.memory_space<vmem>>, vector<16x16x8xbf16>
    %44 = vector.shape_cast %43 : vector<16x16x8xbf16> to vector<256x8xbf16>
    %c0_67 = arith.constant 0 : index
    %c0_68 = arith.constant 0 : index
    %45 = vector.load %arg7[%c0_67, %c0_68] : memref<256x4xf32, #tpu.memory_space<vmem>>, vector<256x4xf32>
    %c4 = arith.constant 4 : index
    %c0_69 = arith.constant 0 : index
    %c0_70 = arith.constant 0 : index
    %46 = vector.load %arg2[%c4, %c0_69, %c0_70] : memref<9x8x4xbf16, #tpu.memory_space<vmem>>, vector<1x8x4xbf16>
    %47 = vector.shape_cast %46 : vector<1x8x4xbf16> to vector<8x4xbf16>
    %cst_71 = arith.constant dense<0.000000e+00> : vector<256x4xf32>
    %48 = tpu.matmul %44, %47, %cst_71 {dimension_numbers = #tpu.dot_dimension_numbers<[1], [0], [0], [1], [0, 0, 1, 1], [], []>} : vector<256x8xbf16>, vector<8x4xbf16>, vector<256x4xf32> -> vector<256x4xf32>
    %49 = arith.addf %45, %48 : vector<256x4xf32>
    %c0_72 = arith.constant 0 : index
    %c0_73 = arith.constant 0 : index
    %50 = vector.load %arg7[%c0_72, %c0_73] : memref<256x4xf32, #tpu.memory_space<vmem>>, vector<256x4xf32>
    tpu.vector_store %arg7[%c0_72, %c0_73], %49 {strides = array<i32>} : memref<256x4xf32, #tpu.memory_space<vmem>>, vector<256x4xf32>,
    %c2_74 = arith.constant 2 : index
    %c0_75 = arith.constant 0 : index
    %c0_76 = arith.constant 0 : index
    %51 = vector.load %arg6[%c2_74, %c0_75, %c0_76] : memref<18x16x8xbf16, #tpu.memory_space<vmem>>, vector<16x16x8xbf16>
    %52 = vector.shape_cast %51 : vector<16x16x8xbf16> to vector<256x8xbf16>
    %c0_77 = arith.constant 0 : index
    %c0_78 = arith.constant 0 : index
    %53 = vector.load %arg7[%c0_77, %c0_78] : memref<256x4xf32, #tpu.memory_space<vmem>>, vector<256x4xf32>
    %c7 = arith.constant 7 : index
    %c0_79 = arith.constant 0 : index
    %c0_80 = arith.constant 0 : index
    %54 = vector.load %arg2[%c7, %c0_79, %c0_80] : memref<9x8x4xbf16, #tpu.memory_space<vmem>>, vector<1x8x4xbf16>
    %55 = vector.shape_cast %54 : vector<1x8x4xbf16> to vector<8x4xbf16>
    %cst_81 = arith.constant dense<0.000000e+00> : vector<256x4xf32>
    %56 = tpu.matmul %52, %55, %cst_81 {dimension_numbers = #tpu.dot_dimension_numbers<[1], [0], [0], [1], [0, 0, 1, 1], [], []>} : vector<256x8xbf16>, vector<8x4xbf16>, vector<256x4xf32> -> vector<256x4xf32>
    %57 = arith.addf %53, %56 : vector<256x4xf32>
    %c0_82 = arith.constant 0 : index
    %c0_83 = arith.constant 0 : index
    %58 = vector.load %arg7[%c0_82, %c0_83] : memref<256x4xf32, #tpu.memory_space<vmem>>, vector<256x4xf32>
    tpu.vector_store %arg7[%c0_82, %c0_83], %57 {strides = array<i32>} : memref<256x4xf32, #tpu.memory_space<vmem>>, vector<256x4xf32>,
    %c0_84 = arith.constant 0 : index
    %c2_85 = arith.constant 2 : index
    %c0_86 = arith.constant 0 : index
    %59 = vector.load %arg5[%c0_84, %c2_85, %c0_86] : memref<18x18x8xbf16, #tpu.memory_space<vmem>>, vector<18x16x8xbf16>
    %c0_87 = arith.constant 0 : index
    %c0_88 = arith.constant 0 : index
    %c0_89 = arith.constant 0 : index
    %60 = vector.load %arg6[%c0_87, %c0_88, %c0_89] : memref<18x16x8xbf16, #tpu.memory_space<vmem>>, vector<18x16x8xbf16>
    tpu.vector_store %arg6[%c0_87, %c0_88, %c0_89], %59 {strides = array<i32>} : memref<18x16x8xbf16, #tpu.memory_space<vmem>>, vector<18x16x8xbf16>,
    %c0_90 = arith.constant 0 : index
    %c0_91 = arith.constant 0 : index
    %c0_92 = arith.constant 0 : index
    %61 = vector.load %arg6[%c0_90, %c0_91, %c0_92] : memref<18x16x8xbf16, #tpu.memory_space<vmem>>, vector<16x16x8xbf16>
    %62 = vector.shape_cast %61 : vector<16x16x8xbf16> to vector<256x8xbf16>
    %c0_93 = arith.constant 0 : index
    %c0_94 = arith.constant 0 : index
    %63 = vector.load %arg7[%c0_93, %c0_94] : memref<256x4xf32, #tpu.memory_space<vmem>>, vector<256x4xf32>
    %c2_95 = arith.constant 2 : index
    %c0_96 = arith.constant 0 : index
    %c0_97 = arith.constant 0 : index
    %64 = vector.load %arg2[%c2_95, %c0_96, %c0_97] : memref<9x8x4xbf16, #tpu.memory_space<vmem>>, vector<1x8x4xbf16>
    %65 = vector.shape_cast %64 : vector<1x8x4xbf16> to vector<8x4xbf16>
    %cst_98 = arith.constant dense<0.000000e+00> : vector<256x4xf32>
    %66 = tpu.matmul %62, %65, %cst_98 {dimension_numbers = #tpu.dot_dimension_numbers<[1], [0], [0], [1], [0, 0, 1, 1], [], []>} : vector<256x8xbf16>, vector<8x4xbf16>, vector<256x4xf32> -> vector<256x4xf32>
    %67 = arith.addf %63, %66 : vector<256x4xf32>
    %c0_99 = arith.constant 0 : index
    %c0_100 = arith.constant 0 : index
    %68 = vector.load %arg7[%c0_99, %c0_100] : memref<256x4xf32, #tpu.memory_space<vmem>>, vector<256x4xf32>
    tpu.vector_store %arg7[%c0_99, %c0_100], %67 {strides = array<i32>} : memref<256x4xf32, #tpu.memory_space<vmem>>, vector<256x4xf32>,
    %c1_101 = arith.constant 1 : index
    %c0_102 = arith.constant 0 : index
    %c0_103 = arith.constant 0 : index
    %69 = vector.load %arg6[%c1_101, %c0_102, %c0_103] : memref<18x16x8xbf16, #tpu.memory_space<vmem>>, vector<16x16x8xbf16>
    %70 = vector.shape_cast %69 : vector<16x16x8xbf16> to vector<256x8xbf16>
    %c0_104 = arith.constant 0 : index
    %c0_105 = arith.constant 0 : index
    %71 = vector.load %arg7[%c0_104, %c0_105] : memref<256x4xf32, #tpu.memory_space<vmem>>, vector<256x4xf32>
    %c5 = arith.constant 5 : index
    %c0_106 = arith.constant 0 : index
    %c0_107 = arith.constant 0 : index
    %72 = vector.load %arg2[%c5, %c0_106, %c0_107] : memref<9x8x4xbf16, #tpu.memory_space<vmem>>, vector<1x8x4xbf16>
    %73 = vector.shape_cast %72 : vector<1x8x4xbf16> to vector<8x4xbf16>
    %cst_108 = arith.constant dense<0.000000e+00> : vector<256x4xf32>
    %74 = tpu.matmul %70, %73, %cst_108 {dimension_numbers = #tpu.dot_dimension_numbers<[1], [0], [0], [1], [0, 0, 1, 1], [], []>} : vector<256x8xbf16>, vector<8x4xbf16>, vector<256x4xf32> -> vector<256x4xf32>
    %75 = arith.addf %71, %74 : vector<256x4xf32>
    %c0_109 = arith.constant 0 : index
    %c0_110 = arith.constant 0 : index
    %76 = vector.load %arg7[%c0_109, %c0_110] : memref<256x4xf32, #tpu.memory_space<vmem>>, vector<256x4xf32>
    tpu.vector_store %arg7[%c0_109, %c0_110], %75 {strides = array<i32>} : memref<256x4xf32, #tpu.memory_space<vmem>>, vector<256x4xf32>,
    %c2_111 = arith.constant 2 : index
    %c0_112 = arith.constant 0 : index
    %c0_113 = arith.constant 0 : index
    %77 = vector.load %arg6[%c2_111, %c0_112, %c0_113] : memref<18x16x8xbf16, #tpu.memory_space<vmem>>, vector<16x16x8xbf16>
    %78 = vector.shape_cast %77 : vector<16x16x8xbf16> to vector<256x8xbf16>
    %c0_114 = arith.constant 0 : index
    %c0_115 = arith.constant 0 : index
    %79 = vector.load %arg7[%c0_114, %c0_115] : memref<256x4xf32, #tpu.memory_space<vmem>>, vector<256x4xf32>
    %c8 = arith.constant 8 : index
    %c0_116 = arith.constant 0 : index
    %c0_117 = arith.constant 0 : index
    %80 = vector.load %arg2[%c8, %c0_116, %c0_117] : memref<9x8x4xbf16, #tpu.memory_space<vmem>>, vector<1x8x4xbf16>
    %81 = vector.shape_cast %80 : vector<1x8x4xbf16> to vector<8x4xbf16>
    %cst_118 = arith.constant dense<0.000000e+00> : vector<256x4xf32>
    %82 = tpu.matmul %78, %81, %cst_118 {dimension_numbers = #tpu.dot_dimension_numbers<[1], [0], [0], [1], [0, 0, 1, 1], [], []>} : vector<256x8xbf16>, vector<8x4xbf16>, vector<256x4xf32> -> vector<256x4xf32>
    %83 = arith.addf %79, %82 : vector<256x4xf32>
    %c0_119 = arith.constant 0 : index
    %c0_120 = arith.constant 0 : index
    %84 = vector.load %arg7[%c0_119, %c0_120] : memref<256x4xf32, #tpu.memory_space<vmem>>, vector<256x4xf32>
    tpu.vector_store %arg7[%c0_119, %c0_120], %83 {strides = array<i32>} : memref<256x4xf32, #tpu.memory_space<vmem>>, vector<256x4xf32>,
    %c0_121 = arith.constant 0 : index
    %c0_122 = arith.constant 0 : index
    %85 = vector.load %arg7[%c0_121, %c0_122] : memref<256x4xf32, #tpu.memory_space<vmem>>, vector<256x4xf32>
    %c0_123 = arith.constant 0 : index
    %c0_124 = arith.constant 0 : index
    %86 = vector.load %arg3[%c0_123, %c0_124] : memref<1x4xf32, #tpu.memory_space<vmem>>, vector<1x4xf32>
    %87 = vector.broadcast %86 : vector<1x4xf32> to vector<256x4xf32>
    %88 = arith.addf %85, %87 : vector<256x4xf32>
    %cst_125 = arith.constant 0.000000e+00 : f32
    %89 = vector.broadcast %cst_125 : f32 to vector<256x4xf32>
    %90 = arith.maximumf %88, %89 : vector<256x4xf32>
    %c0_126 = arith.constant 0 : index
    %c0_127 = arith.constant 0 : index
    %c0_128 = arith.constant 0 : index
    %91 = vector.load %arg4[%c0_126, %c0_127, %c0_128] : memref<1x256x4xf32, #tpu.memory_space<vmem>>, vector<1x256x4xf32>
    %92 = vector.shape_cast %91 : vector<1x256x4xf32> to vector<256x4xf32>
    %93 = vector.shape_cast %90 : vector<256x4xf32> to vector<1x256x4xf32>
    tpu.vector_store %arg4[%c0_126, %c0_127, %c0_128], %93 {strides = array<i32>} : memref<1x256x4xf32, #tpu.memory_space<vmem>>, vector<1x256x4xf32>,
    return
  }
  func.func @transform_0(%arg0: i32) -> (i32, i32, i32, i32) {
    %c0_i32 = arith.constant 0 : i32
    %c0_i32_0 = arith.constant 0 : i32
    %c0_i32_1 = arith.constant 0 : i32
    %c0_i32_2 = arith.constant 0 : i32
    return %arg0, %c0_i32, %c0_i32_0, %c0_i32_1 : i32, i32, i32, i32
  }
  func.func @transform_1(%arg0: i32) -> (i32, i32, i32) {
    %c0_i32 = arith.constant 0 : i32
    %c0_i32_0 = arith.constant 0 : i32
    %c0_i32_1 = arith.constant 0 : i32
    %c0_i32_2 = arith.constant 0 : i32
    return %c0_i32, %c0_i32_0, %c0_i32_1 : i32, i32, i32
  }
  func.func @transform_2(%arg0: i32) -> (i32, i32) {
    %c0_i32 = arith.constant 0 : i32
    %c0_i32_0 = arith.constant 0 : i32
    %c0_i32_1 = arith.constant 0 : i32
    return %c0_i32, %c0_i32_0 : i32, i32
  }
  func.func @transform_3(%arg0: i32) -> (i32, i32, i32) {
    %c0_i32 = arith.constant 0 : i32
    %c0_i32_0 = arith.constant 0 : i32
    %c0_i32_1 = arith.constant 0 : i32
    return %arg0, %c0_i32, %c0_i32_0 : i32, i32, i32
  }
}

</mosaic_0001>

<llo_original>
// kernel: tpu_custom_call.1
$region0: #{tpu_custom_call.1}
  #allocation0 [shape = 'u32[]', space=smem, size = 0x4, offset = 0x4, fixed_abs, tag = 'smem constant byte address 0x4 - core index']
  #allocation1 [shape = 'u32[144,128]{1,0:T(1,128)}', space=vmem, size = 0x12000, scoped, tag = 'internal scratch']
  #allocation2 [shape = 'bf16[18,18,8]{2,1,0:T(8,128)(2,1)}', space=vmem, size = 0x1b000, scoped, tag = 'scratch operand']
  #allocation3 [shape = 'bf16[18,16,8]{2,1,0:T(8,128)(2,1)}', space=vmem, size = 0x12000, scoped, tag = 'scratch operand']
  #allocation4 [shape = 'f32[256,4]{1,0:T(8,128)}', space=vmem, size = 0x20000, scoped, tag = 'scratch operand']
  %s0 = inlined_call_operand.vmem [shape: bf16[2,16,16,8], index: 0, kind: input, shape index: {}]
  %s1 = inlined_call_operand.vmem [shape: bf16[9,8,4], index: 1, kind: input, shape index: {}]
  %s2 = inlined_call_operand.vmem [shape: f32[1,4], index: 2, kind: input, shape index: {}]
  %s3 = inlined_call_operand.vmem [shape: f32[2,256,4], index: 3, kind: output, shape index: {}]
  %s4 = sld [smem:[#allocation0]]
  $region45: #{tpu_custom_call.1} parent=0
    _
  %s6 = ssub.s32 1, %s4
  %s7 = scalar_select 0, %s6, %s4
  loop: start=0, step=1, limit=4
  $region2: #{tpu_custom_call.1} parent=0 // loop_pre_header
    _
  $region3: #{tpu_custom_call.1} parent=0 // loop_header
    %s9 = sphi 0, %s13
    %p10 = scmp.ge.s32.totalorder %s9, 4
    %s19 = sphi 0, %s21
    %s22 = sphi 0, %s19
    %s23 = sphi 0, %s22
    %s39 = sphi 0, %s23
    %s43 = sphi 0, %s43
    %s45 = sphi 0, %s43
    %s46 = sphi 0, %s45
    %s60 = sphi 0, %s46
    %s64 = sphi 0, %s64
    %s66 = sphi 0, %s64
    %s67 = sphi 0, %s66
    %s81 = sphi 0, %s67
    %s87 = sphi 0, %s89
    %s90 = sphi 0, %s87
    %s91 = sphi 0, %s90
    %s107 = sphi 0, %s91
  $region4: #{tpu_custom_call.1} parent=0 // loop_header_branch
    %12 = sbr.rel (%p10) target = $region8
  $region5: #{tpu_custom_call.1} parent=0 // loop_body
    %s14 = ssub.s32 %s9, 1
    %s15 = ssub.s32 %s9, 2
    %s16 = sadd.s32 %s9, 1
    %s17 = ssub.s32 %s9, %s16
    %p18 = scmp.eq.s32.totalorder %s17, 0
    %s20 = sadd.s32 %s19, 1
    %s21 = scalar_select %p18, %s19, %s20
    %p24 = pneg %p18
    %p25 = scmp.eq.s32.totalorder %s9, 1
    %p26 = por %p24, %p25
    %p27 = scmp.ne.s32.totalorder %s19, %s22
    %p28 = scmp.eq.s32.totalorder %s9, 0
    %p29 = por %p27, %p28
    %p30 = scmp.ne.s32.totalorder %s19, %s22
    %p31 = scmp.eq.s32.totalorder %s14, 1
    %p32 = por %p30, %p31
    %p33 = scmp.ne.s32.totalorder %s22, %s23
    %p34 = scmp.eq.s32.totalorder %s14, 0
    %p35 = por %p33, %p34
    %p36 = scmp.ne.s32.totalorder %s22, %s23
    %p37 = scmp.eq.s32.totalorder %s15, 1
    %p38 = por %p36, %p37
    %p40 = scmp.ne.s32.totalorder %s23, %s39
    %p41 = scmp.eq.s32.totalorder %s15, 0
    %p42 = por %p40, %p41
    %s44 = sadd.s32 %s43, 1
    %p47 = scmp.eq.s32.totalorder %s9, 1
    %p48 = scmp.ne.s32.totalorder %s43, %s45
    %p49 = scmp.eq.s32.totalorder %s9, 0
    %p50 = por %p48, %p49
    %p51 = scmp.ne.s32.totalorder %s43, %s45
    %p52 = scmp.eq.s32.totalorder %s14, 1
    %p53 = por %p51, %p52
    %p54 = scmp.ne.s32.totalorder %s45, %s46
    %p55 = scmp.eq.s32.totalorder %s14, 0
    %p56 = por %p54, %p55
    %p57 = scmp.ne.s32.totalorder %s45, %s46
    %p58 = scmp.eq.s32.totalorder %s15, 1
    %p59 = por %p57, %p58
    %p61 = scmp.ne.s32.totalorder %s46, %s60
    %p62 = scmp.eq.s32.totalorder %s15, 0
    %p63 = por %p61, %p62
    %s65 = sadd.s32 %s64, 1
    %p68 = scmp.eq.s32.totalorder %s9, 1
    %p69 = scmp.ne.s32.totalorder %s64, %s66
    %p70 = scmp.eq.s32.totalorder %s9, 0
    %p71 = por %p69, %p70
    %p72 = scmp.ne.s32.totalorder %s64, %s66
    %p73 = scmp.eq.s32.totalorder %s14, 1
    %p74 = por %p72, %p73
    %p75 = scmp.ne.s32.totalorder %s66, %s67
    %p76 = scmp.eq.s32.totalorder %s14, 0
    %p77 = por %p75, %p76
    %p78 = scmp.ne.s32.totalorder %s66, %s67
    %p79 = scmp.eq.s32.totalorder %s15, 1
    %p80 = por %p78, %p79
    %p82 = scmp.ne.s32.totalorder %s67, %s81
    %p83 = scmp.eq.s32.totalorder %s15, 0
    %p84 = por %p82, %p83
    %s85 = ssub.s32 %s9, %s16
    %p86 = scmp.eq.s32.totalorder %s85, 0
    %s88 = sadd.s32 %s87, 1
    %s89 = scalar_select %p86, %s87, %s88
    %p92 = pneg %p86
    %p93 = scmp.eq.s32.totalorder %s9, 1
    %p94 = por %p92, %p93
    %p95 = scmp.ne.s32.totalorder %s87, %s90
    %p96 = scmp.eq.s32.totalorder %s9, 0
    %p97 = por %p95, %p96
    %p98 = scmp.ne.s32.totalorder %s87, %s90
    %p99 = scmp.eq.s32.totalorder %s14, 1
    %p100 = por %p98, %p99
    %p101 = scmp.ne.s32.totalorder %s90, %s91
    %p102 = scmp.eq.s32.totalorder %s14, 0
    %p103 = por %p101, %p102
    %p104 = scmp.ne.s32.totalorder %s90, %s91
    %p105 = scmp.eq.s32.totalorder %s15, 1
    %p106 = por %p104, %p105
    %p108 = scmp.ne.s32.totalorder %s91, %s107
    %p109 = scmp.eq.s32.totalorder %s15, 0
    %p110 = por %p108, %p109
    %p111 = scmp.le.s32.totalorder 1, %s9
    %p112 = scmp.lt.s32.totalorder %s9, 3
    %p113 = pnand %p111, %p112
    %p114 = pneg %p113
    // Predicated region
    $region9: #{tpu_custom_call.1} parent=5 // pred_check
      _
    $region10: #{tpu_custom_call.1} parent=5 // pred_check_branch
      %116 = sbr.rel (%p113) target = $region12
    $region11: #{tpu_custom_call.1} parent=5 // pred_region
      %s117 = ssub.s32 %s9, 1
      // Predicated region
      $region13: #{tpu_custom_call.1} parent=11 // pred_check
        %p118 = pneg %p56
      $region14: #{tpu_custom_call.1} parent=11 // pred_check_branch
        %120 = sbr.rel (%p118) target = $region16
      $region15: #{tpu_custom_call.1} parent=11 // pred_region
        _
      $region16: #{tpu_custom_call.1} parent=11 // pred_fallthru
        _
      // Predicated region
      $region17: #{tpu_custom_call.1} parent=11 // pred_check
        %p121 = pneg %p77
      $region18: #{tpu_custom_call.1} parent=11 // pred_check_branch
        %123 = sbr.rel (%p121) target = $region20
      $region19: #{tpu_custom_call.1} parent=11 // pred_region
        _
      $region20: #{tpu_custom_call.1} parent=11 // pred_fallthru
        _
    $region12: #{tpu_custom_call.1} parent=5 // pred_fallthru
      _
    %p124 = scmp.lt.s32.totalorder %s9, 2
    // Predicated region
    $region21: #{tpu_custom_call.1} parent=5 // pred_check
      %p125 = pneg %p124
    $region22: #{tpu_custom_call.1} parent=5 // pred_check_branch
      %127 = sbr.rel (%p125) target = $region24
    $region23: #{tpu_custom_call.1} parent=5 // pred_region
      // Predicated region
      $region25: #{tpu_custom_call.1} parent=23 // pred_check
        %p128 = pneg %p29
      $region26: #{tpu_custom_call.1} parent=23 // pred_check_branch
        %130 = sbr.rel (%p128) target = $region28
      $region27: #{tpu_custom_call.1} parent=23 // pred_region
        %p131 = scmp.lt.s32.totalorder %s9, 1
        %s132 = scalar_select %p131, %s9, 1
        %s133 = smul.addr %s132, 32
        %s134 = smul.addr %s133, 4
        %s135 = scalar_lea.vmem %s0, %s134
      $region28: #{tpu_custom_call.1} parent=23 // pred_fallthru
        _
    $region24: #{tpu_custom_call.1} parent=5 // pred_fallthru
      _
    %p136 = scmp.le.s32.totalorder 1, %s9
    %p137 = scmp.lt.s32.totalorder %s9, 3
    %p138 = pnand %p136, %p137
    %p139 = pneg %p138
    // Predicated region
    $region29: #{tpu_custom_call.1} parent=5 // pred_check
      _
    $region30: #{tpu_custom_call.1} parent=5 // pred_check_branch
      %141 = sbr.rel (%p138) target = $region32
    $region31: #{tpu_custom_call.1} parent=5 // pred_region
      %s142 = ssub.s32 %s9, 1
      %p143 = scmp.lt.s32.totalorder %s14, 1
      %s144 = scalar_select %p143, %s14, 1
      %s145 = smul.addr %s144, 32
      %s146 = smul.addr %s145, 4
      %s147 = scalar_lea.vmem %s0, %s146
      %p148 = pneg %p35
      %p149 = pneg %p32
      %p150 = pneg %p56
      %p151 = pneg %p53
      %p152 = pneg %p77
      %p153 = pneg %p74
      %p154 = pneg %p103
      %p155 = pneg %p100
      %p156 = scmp.lt.s32.totalorder %s14, 1
      %s157 = scalar_select %p156, %s14, 1
      %s158 = smul.addr %s157, 32
      %s159 = smul.addr %s158, 8
      %s160 = scalar_lea.vmem %s3, %s159
      %p161 = scmp.lt.s32.totalorder %s14, 1
      %s162 = scalar_select %p161, %s14, 1
      %s163 = smul.addr %s162, 32
      %s164 = smul.addr %s163, 4
      %s165 = scalar_lea.vmem %s0, %s164
      %p166 = scmp.lt.s32.totalorder %s14, 1
      %s167 = scalar_select %p166, %s14, 1
      %s168 = smul.addr %s167, 32
      %s169 = smul.addr %s168, 8
      %s170 = scalar_lea.vmem %s3, %s169
      %vm172 = vcmask 60416
      %173 = vst.msk [vmem:[#allocation2] sm:$0xf] %vm172, 0
      %174 = vst.msk [vmem:[#allocation2 + $0x4] sm:$0xf] %vm172, 0
      %vm175 = vcmask 57344
      %176 = vst.msk [vmem:[#allocation2 + $0x8] sm:$0x1] %vm175, 0
      %177 = vst.msk [vmem:[#allocation2 + $0xc] sm:$0xf] %vm172, 0
      %178 = vst.msk [vmem:[#allocation2 + $0x10] sm:$0xf] %vm172, 0
      %179 = vst.msk [vmem:[#allocation2 + $0x14] sm:$0x1] %vm175, 0
      %180 = vst.msk [vmem:[#allocation2 + $0x18] sm:$0xf] %vm172, 0
      %181 = vst.msk [vmem:[#allocation2 + $0x1c] sm:$0xf] %vm172, 0
      %182 = vst.msk [vmem:[#allocation2 + $0x20] sm:$0x1] %vm175, 0
      %183 = vst.msk [vmem:[#allocation2 + $0x24] sm:$0xf] %vm172, 0
      %184 = vst.msk [vmem:[#allocation2 + $0x28] sm:$0xf] %vm172, 0
      %185 = vst.msk [vmem:[#allocation2 + $0x2c] sm:$0x1] %vm175, 0
      %186 = vst.msk [vmem:[#allocation2 + $0x30] sm:$0xf] %vm172, 0
      %187 = vst.msk [vmem:[#allocation2 + $0x34] sm:$0xf] %vm172, 0
      %188 = vst.msk [vmem:[#allocation2 + $0x38] sm:$0x1] %vm175, 0
      %189 = vst.msk [vmem:[#allocation2 + $0x3c] sm:$0xf] %vm172, 0
      %190 = vst.msk [vmem:[#allocation2 + $0x40] sm:$0xf] %vm172, 0
      %191 = vst.msk [vmem:[#allocation2 + $0x44] sm:$0x1] %vm175, 0
      %192 = vst.msk [vmem:[#allocation2 + $0x48] sm:$0xf] %vm172, 0
      %193 = vst.msk [vmem:[#allocation2 + $0x4c] sm:$0xf] %vm172, 0
      %194 = vst.msk [vmem:[#allocation2 + $0x50] sm:$0x1] %vm175, 0
      %195 = vst.msk [vmem:[#allocation2 + $0x54] sm:$0xf] %vm172, 0
      %196 = vst.msk [vmem:[#allocation2 + $0x58] sm:$0xf] %vm172, 0
      %197 = vst.msk [vmem:[#allocation2 + $0x5c] sm:$0x1] %vm175, 0
      %198 = vst.msk [vmem:[#allocation2 + $0x60] sm:$0xf] %vm172, 0
      %199 = vst.msk [vmem:[#allocation2 + $0x64] sm:$0xf] %vm172, 0
      %200 = vst.msk [vmem:[#allocation2 + $0x68] sm:$0x1] %vm175, 0
      %201 = vst.msk [vmem:[#allocation2 + $0x6c] sm:$0xf] %vm172, 0
      %202 = vst.msk [vmem:[#allocation2 + $0x70] sm:$0xf] %vm172, 0
      %203 = vst.msk [vmem:[#allocation2 + $0x74] sm:$0x1] %vm175, 0
      %204 = vst.msk [vmem:[#allocation2 + $0x78] sm:$0xf] %vm172, 0
      %205 = vst.msk [vmem:[#allocation2 + $0x7c] sm:$0xf] %vm172, 0
      %206 = vst.msk [vmem:[#allocation2 + $0x80] sm:$0x1] %vm175, 0
      %207 = vst.msk [vmem:[#allocation2 + $0x84] sm:$0xf] %vm172, 0
      %208 = vst.msk [vmem:[#allocation2 + $0x88] sm:$0xf] %vm172, 0
      %209 = vst.msk [vmem:[#allocation2 + $0x8c] sm:$0x1] %vm175, 0
      %210 = vst.msk [vmem:[#allocation2 + $0x90] sm:$0xf] %vm172, 0
      %211 = vst.msk [vmem:[#allocation2 + $0x94] sm:$0xf] %vm172, 0
      %212 = vst.msk [vmem:[#allocation2 + $0x98] sm:$0x1] %vm175, 0
      %213 = vst.msk [vmem:[#allocation2 + $0x9c] sm:$0xf] %vm172, 0
      %214 = vst.msk [vmem:[#allocation2 + $0xa0] sm:$0xf] %vm172, 0
      %215 = vst.msk [vmem:[#allocation2 + $0xa4] sm:$0x1] %vm175, 0
      %216 = vst.msk [vmem:[#allocation2 + $0xa8] sm:$0xf] %vm172, 0
      %217 = vst.msk [vmem:[#allocation2 + $0xac] sm:$0xf] %vm172, 0
      %218 = vst.msk [vmem:[#allocation2 + $0xb0] sm:$0x1] %vm175, 0
      %219 = vst.msk [vmem:[#allocation2 + $0xb4] sm:$0xf] %vm172, 0
      %220 = vst.msk [vmem:[#allocation2 + $0xb8] sm:$0xf] %vm172, 0
      %221 = vst.msk [vmem:[#allocation2 + $0xbc] sm:$0x1] %vm175, 0
      %222 = vst.msk [vmem:[#allocation2 + $0xc0] sm:$0xf] %vm172, 0
      %223 = vst.msk [vmem:[#allocation2 + $0xc4] sm:$0xf] %vm172, 0
      %224 = vst.msk [vmem:[#allocation2 + $0xc8] sm:$0x1] %vm175, 0
      %225 = vst.msk [vmem:[#allocation2 + $0xcc] sm:$0xf] %vm172, 0
      %226 = vst.msk [vmem:[#allocation2 + $0xd0] sm:$0xf] %vm172, 0
      %227 = vst.msk [vmem:[#allocation2 + $0xd4] sm:$0x1] %vm175, 0
      %v228 = vld [vmem:[%s165] sm:$0xf]
      %v229 = vld [vmem:[%s165 + $0x4] sm:$0xf]
      %v230 = vld [vmem:[%s165 + $0x8] sm:$0xf]
      %v231 = vld [vmem:[%s165 + $0xc] sm:$0xf]
      %v232 = vld [vmem:[%s165 + $0x10] sm:$0xf]
      %v233 = vld [vmem:[%s165 + $0x14] sm:$0xf]
      %v234 = vld [vmem:[%s165 + $0x18] sm:$0xf]
      %v235 = vld [vmem:[%s165 + $0x1c] sm:$0xf]
      %v236 = vld [vmem:[%s165 + $0x20] sm:$0xf]
      %v237 = vld [vmem:[%s165 + $0x24] sm:$0xf]
      %v238 = vld [vmem:[%s165 + $0x28] sm:$0xf]
      %v239 = vld [vmem:[%s165 + $0x2c] sm:$0xf]
      %v240 = vld [vmem:[%s165 + $0x30] sm:$0xf]
      %v241 = vld [vmem:[%s165 + $0x34] sm:$0xf]
      %v242 = vld [vmem:[%s165 + $0x38] sm:$0xf]
      %v243 = vld [vmem:[%s165 + $0x3c] sm:$0xf]
      %v244 = vld [vmem:[%s165 + $0x40] sm:$0xf]
      %v245 = vld [vmem:[%s165 + $0x44] sm:$0xf]
      %v246 = vld [vmem:[%s165 + $0x48] sm:$0xf]
      %v247 = vld [vmem:[%s165 + $0x4c] sm:$0xf]
      %v248 = vld [vmem:[%s165 + $0x50] sm:$0xf]
      %v249 = vld [vmem:[%s165 + $0x54] sm:$0xf]
      %v250 = vld [vmem:[%s165 + $0x58] sm:$0xf]
      %v251 = vld [vmem:[%s165 + $0x5c] sm:$0xf]
      %v252 = vld [vmem:[%s165 + $0x60] sm:$0xf]
      %v253 = vld [vmem:[%s165 + $0x64] sm:$0xf]
      %v254 = vld [vmem:[%s165 + $0x68] sm:$0xf]
      %v255 = vld [vmem:[%s165 + $0x6c] sm:$0xf]
      %v256 = vld [vmem:[%s165 + $0x70] sm:$0xf]
      %v257 = vld [vmem:[%s165 + $0x74] sm:$0xf]
      %v258 = vld [vmem:[%s165 + $0x78] sm:$0xf]
      %v259 = vld [vmem:[%s165 + $0x7c] sm:$0xf]
      %vm260 = vsmask.f32 256
      %vm261 = vsmask.f32 4368
      %vm262 = vmor %vm260, %vm261
      %v264 = vshrl.u32 %v228, 16
      %v266 = vrot.slane %v264, 7
      %v267 = vshll.u32 %v228, 16
      %v269 = vor.u32 %v266, %v267
      %v270 = vrot.slane %v266, 4
      %v272 = vshrl.u32 %v229, 16
      %v274 = vrot.slane %v272, 7
      %v275 = vshll.u32 %v229, 16
      %v277 = vor.u32 %v274, %v275
      %v278 = vsel %vm262, %v270, %v277
      %v279 = vrot.slane %v274, 4
      %v281 = vshrl.u32 %v230, 16
      %v283 = vrot.slane %v281, 7
      %v284 = vshll.u32 %v230, 16
      %v286 = vor.u32 %v283, %v284
      %v287 = vrot.slane %v283, 4
      %v289 = vshrl.u32 %v231, 16
      %v291 = vrot.slane %v289, 7
      %v292 = vshll.u32 %v231, 16
      %v294 = vor.u32 %v291, %v292
      %v295 = vsel %vm262, %v287, %v294
      %v296 = vrot.slane %v291, 4
      %v298 = vshrl.u32 %v232, 16
      %v300 = vrot.slane %v298, 7
      %v301 = vshll.u32 %v232, 16
      %v303 = vor.u32 %v300, %v301
      %v304 = vrot.slane %v300, 4
      %v306 = vshrl.u32 %v233, 16
      %v308 = vrot.slane %v306, 7
      %v309 = vshll.u32 %v233, 16
      %v311 = vor.u32 %v308, %v309
      %v312 = vsel %vm262, %v304, %v311
      %v313 = vrot.slane %v308, 4
      %v315 = vshrl.u32 %v234, 16
      %v317 = vrot.slane %v315, 7
      %v318 = vshll.u32 %v234, 16
      %v320 = vor.u32 %v317, %v318
      %v321 = vrot.slane %v317, 4
      %v323 = vshrl.u32 %v235, 16
      %v325 = vrot.slane %v323, 7
      %v326 = vshll.u32 %v235, 16
      %v328 = vor.u32 %v325, %v326
      %v329 = vsel %vm262, %v321, %v328
      %v330 = vrot.slane %v325, 4
      %v332 = vshrl.u32 %v236, 16
      %v334 = vrot.slane %v332, 7
      %v335 = vshll.u32 %v236, 16
      %v337 = vor.u32 %v334, %v335
      %v338 = vrot.slane %v334, 4
      %v340 = vshrl.u32 %v237, 16
      %v342 = vrot.slane %v340, 7
      %v343 = vshll.u32 %v237, 16
      %v345 = vor.u32 %v342, %v343
      %v346 = vsel %vm262, %v338, %v345
      %v347 = vrot.slane %v342, 4
      %v349 = vshrl.u32 %v238, 16
      %v351 = vrot.slane %v349, 7
      %v352 = vshll.u32 %v238, 16
      %v354 = vor.u32 %v351, %v352
      %v355 = vrot.slane %v351, 4
      %v357 = vshrl.u32 %v239, 16
      %v359 = vrot.slane %v357, 7
      %v360 = vshll.u32 %v239, 16
      %v362 = vor.u32 %v359, %v360
      %v363 = vsel %vm262, %v355, %v362
      %v364 = vrot.slane %v359, 4
      %v366 = vshrl.u32 %v240, 16
      %v368 = vrot.slane %v366, 7
      %v369 = vshll.u32 %v240, 16
      %v371 = vor.u32 %v368, %v369
      %v372 = vrot.slane %v368, 4
      %v374 = vshrl.u32 %v241, 16
      %v376 = vrot.slane %v374, 7
      %v377 = vshll.u32 %v241, 16
      %v379 = vor.u32 %v376, %v377
      %v380 = vsel %vm262, %v372, %v379
      %v381 = vrot.slane %v376, 4
      %v383 = vshrl.u32 %v242, 16
      %v385 = vrot.slane %v383, 7
      %v386 = vshll.u32 %v242, 16
      %v388 = vor.u32 %v385, %v386
      %v389 = vrot.slane %v385, 4
      %v391 = vshrl.u32 %v243, 16
      %v393 = vrot.slane %v391, 7
      %v394 = vshll.u32 %v243, 16
      %v396 = vor.u32 %v393, %v394
      %v397 = vsel %vm262, %v389, %v396
      %v398 = vrot.slane %v393, 4
      %v400 = vshrl.u32 %v244, 16
      %v402 = vrot.slane %v400, 7
      %v403 = vshll.u32 %v244, 16
      %v405 = vor.u32 %v402, %v403
      %v406 = vrot.slane %v402, 4
      %v408 = vshrl.u32 %v245, 16
      %v410 = vrot.slane %v408, 7
      %v411 = vshll.u32 %v245, 16
      %v413 = vor.u32 %v410, %v411
      %v414 = vsel %vm262, %v406, %v413
      %v415 = vrot.slane %v410, 4
      %v417 = vshrl.u32 %v246, 16
      %v419 = vrot.slane %v417, 7
      %v420 = vshll.u32 %v246, 16
      %v422 = vor.u32 %v419, %v420
      %v423 = vrot.slane %v419, 4
      %v425 = vshrl.u32 %v247, 16
      %v427 = vrot.slane %v425, 7
      %v428 = vshll.u32 %v247, 16
      %v430 = vor.u32 %v427, %v428
      %v431 = vsel %vm262, %v423, %v430
      %v432 = vrot.slane %v427, 4
      %v434 = vshrl.u32 %v248, 16
      %v436 = vrot.slane %v434, 7
      %v437 = vshll.u32 %v248, 16
      %v439 = vor.u32 %v436, %v437
      %v440 = vrot.slane %v436, 4
      %v442 = vshrl.u32 %v249, 16
      %v444 = vrot.slane %v442, 7
      %v445 = vshll.u32 %v249, 16
      %v447 = vor.u32 %v444, %v445
      %v448 = vsel %vm262, %v440, %v447
      %v449 = vrot.slane %v444, 4
      %v451 = vshrl.u32 %v250, 16
      %v453 = vrot.slane %v451, 7
      %v454 = vshll.u32 %v250, 16
      %v456 = vor.u32 %v453, %v454
      %v457 = vrot.slane %v453, 4
      %v459 = vshrl.u32 %v251, 16
      %v461 = vrot.slane %v459, 7
      %v462 = vshll.u32 %v251, 16
      %v464 = vor.u32 %v461, %v462
      %v465 = vsel %vm262, %v457, %v464
      %v466 = vrot.slane %v461, 4
      %v468 = vshrl.u32 %v252, 16
      %v470 = vrot.slane %v468, 7
      %v471 = vshll.u32 %v252, 16
      %v473 = vor.u32 %v470, %v471
      %v474 = vrot.slane %v470, 4
      %v476 = vshrl.u32 %v253, 16
      %v478 = vrot.slane %v476, 7
      %v479 = vshll.u32 %v253, 16
      %v481 = vor.u32 %v478, %v479
      %v482 = vsel %vm262, %v474, %v481
      %v483 = vrot.slane %v478, 4
      %v485 = vshrl.u32 %v254, 16
      %v487 = vrot.slane %v485, 7
      %v488 = vshll.u32 %v254, 16
      %v490 = vor.u32 %v487, %v488
      %v491 = vrot.slane %v487, 4
      %v493 = vshrl.u32 %v255, 16
      %v495 = vrot.slane %v493, 7
      %v496 = vshll.u32 %v255, 16
      %v498 = vor.u32 %v495, %v496
      %v499 = vsel %vm262, %v491, %v498
      %v500 = vrot.slane %v495, 4
      %v502 = vshrl.u32 %v256, 16
      %v504 = vrot.slane %v502, 7
      %v505 = vshll.u32 %v256, 16
      %v507 = vor.u32 %v504, %v505
      %v508 = vrot.slane %v504, 4
      %v510 = vshrl.u32 %v257, 16
      %v512 = vrot.slane %v510, 7
      %v513 = vshll.u32 %v257, 16
      %v515 = vor.u32 %v512, %v513
      %v516 = vsel %vm262, %v508, %v515
      %v517 = vrot.slane %v512, 4
      %v519 = vshrl.u32 %v258, 16
      %v521 = vrot.slane %v519, 7
      %v522 = vshll.u32 %v258, 16
      %v524 = vor.u32 %v521, %v522
      %v525 = vrot.slane %v521, 4
      %v527 = vshrl.u32 %v259, 16
      %v529 = vrot.slane %v527, 7
      %v530 = vshll.u32 %v259, 16
      %v532 = vor.u32 %v529, %v530
      %v533 = vsel %vm262, %v525, %v532
      %v534 = vrot.slane %v529, 4
      %s583 = scalar_lea.vmem [#allocation2], 12
      %vm584 = vcmask 60416
      %vm585 = vsmask.f32 7938
      %vm586 = vmand %vm584, %vm585
      %v587 = vld [vmem:[%s583] sm:$0xf]
      %v588 = vsel %vm586, %v269, %v587
      %589 = vst [vmem:[%s583] sm:$0xf] %v588
      %590 = vst.msk [vmem:[%s583 + $0x4] sm:$0xf] %vm172, %v278
      %vm591 = vcmask 57344
      %vm592 = vmand %vm591, %vm260
      %v593 = vld [vmem:[%s583 + $0x8] sm:$0x1]
      %v594 = vsel %vm592, %v279, %v593
      %595 = vst [vmem:[%s583 + $0x8] sm:$0x1] %v594
      %v596 = vld [vmem:[%s583 + $0xc] sm:$0xf]
      %v597 = vsel %vm586, %v286, %v596
      %598 = vst [vmem:[%s583 + $0xc] sm:$0xf] %v597
      %599 = vst.msk [vmem:[%s583 + $0x10] sm:$0xf] %vm172, %v295
      %v600 = vld [vmem:[%s583 + $0x14] sm:$0x1]
      %v601 = vsel %vm592, %v296, %v600
      %602 = vst [vmem:[%s583 + $0x14] sm:$0x1] %v601
      %v603 = vld [vmem:[%s583 + $0x18] sm:$0xf]
      %v604 = vsel %vm586, %v303, %v603
      %605 = vst [vmem:[%s583 + $0x18] sm:$0xf] %v604
      %606 = vst.msk [vmem:[%s583 + $0x1c] sm:$0xf] %vm172, %v312
      %v607 = vld [vmem:[%s583 + $0x20] sm:$0x1]
      %v608 = vsel %vm592, %v313, %v607
      %609 = vst [vmem:[%s583 + $0x20] sm:$0x1] %v608
      %v610 = vld [vmem:[%s583 + $0x24] sm:$0xf]
      %v611 = vsel %vm586, %v320, %v610
      %612 = vst [vmem:[%s583 + $0x24] sm:$0xf] %v611
      %613 = vst.msk [vmem:[%s583 + $0x28] sm:$0xf] %vm172, %v329
      %v614 = vld [vmem:[%s583 + $0x2c] sm:$0x1]
      %v615 = vsel %vm592, %v330, %v614
      %616 = vst [vmem:[%s583 + $0x2c] sm:$0x1] %v615
      %v617 = vld [vmem:[%s583 + $0x30] sm:$0xf]
      %v618 = vsel %vm586, %v337, %v617
      %619 = vst [vmem:[%s583 + $0x30] sm:$0xf] %v618
      %620 = vst.msk [vmem:[%s583 + $0x34] sm:$0xf] %vm172, %v346
      %v621 = vld [vmem:[%s583 + $0x38] sm:$0x1]
      %v622 = vsel %vm592, %v347, %v621
      %623 = vst [vmem:[%s583 + $0x38] sm:$0x1] %v622
      %v624 = vld [vmem:[%s583 + $0x3c] sm:$0xf]
      %v625 = vsel %vm586, %v354, %v624
      %626 = vst [vmem:[%s583 + $0x3c] sm:$0xf] %v625
      %627 = vst.msk [vmem:[%s583 + $0x40] sm:$0xf] %vm172, %v363
      %v628 = vld [vmem:[%s583 + $0x44] sm:$0x1]
      %v629 = vsel %vm592, %v364, %v628
      %630 = vst [vmem:[%s583 + $0x44] sm:$0x1] %v629
      %v631 = vld [vmem:[%s583 + $0x48] sm:$0xf]
      %v632 = vsel %vm586, %v371, %v631
      %633 = vst [vmem:[%s583 + $0x48] sm:$0xf] %v632
      %634 = vst.msk [vmem:[%s583 + $0x4c] sm:$0xf] %vm172, %v380
      %v635 = vld [vmem:[%s583 + $0x50] sm:$0x1]
      %v636 = vsel %vm592, %v381, %v635
      %637 = vst [vmem:[%s583 + $0x50] sm:$0x1] %v636
      %v638 = vld [vmem:[%s583 + $0x54] sm:$0xf]
      %v639 = vsel %vm586, %v388, %v638
      %640 = vst [vmem:[%s583 + $0x54] sm:$0xf] %v639
      %641 = vst.msk [vmem:[%s583 + $0x58] sm:$0xf] %vm172, %v397
      %v642 = vld [vmem:[%s583 + $0x5c] sm:$0x1]
      %v643 = vsel %vm592, %v398, %v642
      %644 = vst [vmem:[%s583 + $0x5c] sm:$0x1] %v643
      %v645 = vld [vmem:[%s583 + $0x60] sm:$0xf]
      %v646 = vsel %vm586, %v405, %v645
      %647 = vst [vmem:[%s583 + $0x60] sm:$0xf] %v646
      %648 = vst.msk [vmem:[%s583 + $0x64] sm:$0xf] %vm172, %v414
      %v649 = vld [vmem:[%s583 + $0x68] sm:$0x1]
      %v650 = vsel %vm592, %v415, %v649
      %651 = vst [vmem:[%s583 + $0x68] sm:$0x1] %v650
      %v652 = vld [vmem:[%s583 + $0x6c] sm:$0xf]
      %v653 = vsel %vm586, %v422, %v652
      %654 = vst [vmem:[%s583 + $0x6c] sm:$0xf] %v653
      %655 = vst.msk [vmem:[%s583 + $0x70] sm:$0xf] %vm172, %v431
      %v656 = vld [vmem:[%s583 + $0x74] sm:$0x1]
      %v657 = vsel %vm592, %v432, %v656
      %658 = vst [vmem:[%s583 + $0x74] sm:$0x1] %v657
      %v659 = vld [vmem:[%s583 + $0x78] sm:$0xf]
      %v660 = vsel %vm586, %v439, %v659
      %661 = vst [vmem:[%s583 + $0x78] sm:$0xf] %v660
      %662 = vst.msk [vmem:[%s583 + $0x7c] sm:$0xf] %vm172, %v448
      %v663 = vld [vmem:[%s583 + $0x80] sm:$0x1]
      %v664 = vsel %vm592, %v449, %v663
      %665 = vst [vmem:[%s583 + $0x80] sm:$0x1] %v664
      %v666 = vld [vmem:[%s583 + $0x84] sm:$0xf]
      %v667 = vsel %vm586, %v456, %v666
      %668 = vst [vmem:[%s583 + $0x84] sm:$0xf] %v667
      %669 = vst.msk [vmem:[%s583 + $0x88] sm:$0xf] %vm172, %v465
      %v670 = vld [vmem:[%s583 + $0x8c] sm:$0x1]
      %v671 = vsel %vm592, %v466, %v670
      %672 = vst [vmem:[%s583 + $0x8c] sm:$0x1] %v671
      %v673 = vld [vmem:[%s583 + $0x90] sm:$0xf]
      %v674 = vsel %vm586, %v473, %v673
      %675 = vst [vmem:[%s583 + $0x90] sm:$0xf] %v674
      %676 = vst.msk [vmem:[%s583 + $0x94] sm:$0xf] %vm172, %v482
      %v677 = vld [vmem:[%s583 + $0x98] sm:$0x1]
      %v678 = vsel %vm592, %v483, %v677
      %679 = vst [vmem:[%s583 + $0x98] sm:$0x1] %v678
      %v680 = vld [vmem:[%s583 + $0x9c] sm:$0xf]
      %v681 = vsel %vm586, %v490, %v680
      %682 = vst [vmem:[%s583 + $0x9c] sm:$0xf] %v681
      %683 = vst.msk [vmem:[%s583 + $0xa0] sm:$0xf] %vm172, %v499
      %v684 = vld [vmem:[%s583 + $0xa4] sm:$0x1]
      %v685 = vsel %vm592, %v500, %v684
      %686 = vst [vmem:[%s583 + $0xa4] sm:$0x1] %v685
      %v687 = vld [vmem:[%s583 + $0xa8] sm:$0xf]
      %v688 = vsel %vm586, %v507, %v687
      %689 = vst [vmem:[%s583 + $0xa8] sm:$0xf] %v688
      %690 = vst.msk [vmem:[%s583 + $0xac] sm:$0xf] %vm172, %v516
      %v691 = vld [vmem:[%s583 + $0xb0] sm:$0x1]
      %v692 = vsel %vm592, %v517, %v691
      %693 = vst [vmem:[%s583 + $0xb0] sm:$0x1] %v692
      %v694 = vld [vmem:[%s583 + $0xb4] sm:$0xf]
      %v695 = vsel %vm586, %v524, %v694
      %696 = vst [vmem:[%s583 + $0xb4] sm:$0xf] %v695
      %697 = vst.msk [vmem:[%s583 + $0xb8] sm:$0xf] %vm172, %v533
      %v698 = vld [vmem:[%s583 + $0xbc] sm:$0x1]
      %v699 = vsel %vm592, %v534, %v698
      %700 = vst [vmem:[%s583 + $0xbc] sm:$0x1] %v699
      %vm701 = vcmask 31744
      %702 = vst.msk [vmem:[#allocation4] sm:$0xff] %vm701, 0.0
      %703 = vst.msk [vmem:[#allocation4 + $0x8] sm:$0xff] %vm701, 0.0
      %704 = vst.msk [vmem:[#allocation4 + $0x10] sm:$0xff] %vm701, 0.0
      %705 = vst.msk [vmem:[#allocation4 + $0x18] sm:$0xff] %vm701, 0.0
      %706 = vst.msk [vmem:[#allocation4 + $0x20] sm:$0xff] %vm701, 0.0
      %707 = vst.msk [vmem:[#allocation4 + $0x28] sm:$0xff] %vm701, 0.0
      %708 = vst.msk [vmem:[#allocation4 + $0x30] sm:$0xff] %vm701, 0.0
      %709 = vst.msk [vmem:[#allocation4 + $0x38] sm:$0xff] %vm701, 0.0
      %710 = vst.msk [vmem:[#allocation4 + $0x40] sm:$0xff] %vm701, 0.0
      %711 = vst.msk [vmem:[#allocation4 + $0x48] sm:$0xff] %vm701, 0.0
      %712 = vst.msk [vmem:[#allocation4 + $0x50] sm:$0xff] %vm701, 0.0
      %713 = vst.msk [vmem:[#allocation4 + $0x58] sm:$0xff] %vm701, 0.0
      %714 = vst.msk [vmem:[#allocation4 + $0x60] sm:$0xff] %vm701, 0.0
      %715 = vst.msk [vmem:[#allocation4 + $0x68] sm:$0xff] %vm701, 0.0
      %716 = vst.msk [vmem:[#allocation4 + $0x70] sm:$0xff] %vm701, 0.0
      %717 = vst.msk [vmem:[#allocation4 + $0x78] sm:$0xff] %vm701, 0.0
      %718 = vst.msk [vmem:[#allocation4 + $0x80] sm:$0xff] %vm701, 0.0
      %719 = vst.msk [vmem:[#allocation4 + $0x88] sm:$0xff] %vm701, 0.0
      %720 = vst.msk [vmem:[#allocation4 + $0x90] sm:$0xff] %vm701, 0.0
      %721 = vst.msk [vmem:[#allocation4 + $0x98] sm:$0xff] %vm701, 0.0
      %722 = vst.msk [vmem:[#allocation4 + $0xa0] sm:$0xff] %vm701, 0.0
      %723 = vst.msk [vmem:[#allocation4 + $0xa8] sm:$0xff] %vm701, 0.0
      %724 = vst.msk [vmem:[#allocation4 + $0xb0] sm:$0xff] %vm701, 0.0
      %725 = vst.msk [vmem:[#allocation4 + $0xb8] sm:$0xff] %vm701, 0.0
      %726 = vst.msk [vmem:[#allocation4 + $0xc0] sm:$0xff] %vm701, 0.0
      %727 = vst.msk [vmem:[#allocation4 + $0xc8] sm:$0xff] %vm701, 0.0
      %728 = vst.msk [vmem:[#allocation4 + $0xd0] sm:$0xff] %vm701, 0.0
      %729 = vst.msk [vmem:[#allocation4 + $0xd8] sm:$0xff] %vm701, 0.0
      %730 = vst.msk [vmem:[#allocation4 + $0xe0] sm:$0xff] %vm701, 0.0
      %731 = vst.msk [vmem:[#allocation4 + $0xe8] sm:$0xff] %vm701, 0.0
      %732 = vst.msk [vmem:[#allocation4 + $0xf0] sm:$0xff] %vm701, 0.0
      %733 = vst.msk [vmem:[#allocation4 + $0xf8] sm:$0xff] %vm701, 0.0
      %v734 = vld [vmem:[#allocation2] sm:$0xf]
      %v735 = vld [vmem:[#allocation2 + $0x4] sm:$0xf]
      %v736 = vld [vmem:[#allocation2 + $0xc] sm:$0xf]
      %v737 = vld [vmem:[#allocation2 + $0x10] sm:$0xf]
      %v738 = vld [vmem:[#allocation2 + $0x18] sm:$0xf]
      %v739 = vld [vmem:[#allocation2 + $0x1c] sm:$0xf]
      %v740 = vld [vmem:[#allocation2 + $0x24] sm:$0xf]
      %v741 = vld [vmem:[#allocation2 + $0x28] sm:$0xf]
      %v742 = vld [vmem:[#allocation2 + $0x30] sm:$0xf]
      %v743 = vld [vmem:[#allocation2 + $0x34] sm:$0xf]
      %v744 = vld [vmem:[#allocation2 + $0x3c] sm:$0xf]
      %v745 = vld [vmem:[#allocation2 + $0x40] sm:$0xf]
      %v746 = vld [vmem:[#allocation2 + $0x48] sm:$0xf]
      %v747 = vld [vmem:[#allocation2 + $0x4c] sm:$0xf]
      %v748 = vld [vmem:[#allocation2 + $0x54] sm:$0xf]
      %v749 = vld [vmem:[#allocation2 + $0x58] sm:$0xf]
      %v750 = vld [vmem:[#allocation2 + $0x60] sm:$0xf]
      %v751 = vld [vmem:[#allocation2 + $0x64] sm:$0xf]
      %v752 = vld [vmem:[#allocation2 + $0x6c] sm:$0xf]
      %v753 = vld [vmem:[#allocation2 + $0x70] sm:$0xf]
      %v754 = vld [vmem:[#allocation2 + $0x78] sm:$0xf]
      %v755 = vld [vmem:[#allocation2 + $0x7c] sm:$0xf]
      %v756 = vld [vmem:[#allocation2 + $0x84] sm:$0xf]
      %v757 = vld [vmem:[#allocation2 + $0x88] sm:$0xf]
      %v758 = vld [vmem:[#allocation2 + $0x90] sm:$0xf]
      %v759 = vld [vmem:[#allocation2 + $0x94] sm:$0xf]
      %v760 = vld [vmem:[#allocation2 + $0x9c] sm:$0xf]
      %v761 = vld [vmem:[#allocation2 + $0xa0] sm:$0xf]
      %v762 = vld [vmem:[#allocation2 + $0xa8] sm:$0xf]
      %v763 = vld [vmem:[#allocation2 + $0xac] sm:$0xf]
      %v764 = vld [vmem:[#allocation2 + $0xb4] sm:$0xf]
      %v765 = vld [vmem:[#allocation2 + $0xb8] sm:$0xf]
      %v766 = vld [vmem:[#allocation2 + $0xc0] sm:$0xf]
      %v767 = vld [vmem:[#allocation2 + $0xc4] sm:$0xf]
      %v768 = vld [vmem:[#allocation2 + $0xcc] sm:$0xf]
      %v769 = vld [vmem:[#allocation2 + $0xd0] sm:$0xf]
      %770 = vst.msk [vmem:[#allocation3] sm:$0xf] %vm172, %v734
      %771 = vst.msk [vmem:[#allocation3 + $0x4] sm:$0xf] %vm172, %v735
      %772 = vst.msk [vmem:[#allocation3 + $0x8] sm:$0xf] %vm172, %v736
      %773 = vst.msk [vmem:[#allocation3 + $0xc] sm:$0xf] %vm172, %v737
      %774 = vst.msk [vmem:[#allocation3 + $0x10] sm:$0xf] %vm172, %v738
      %775 = vst.msk [vmem:[#allocation3 + $0x14] sm:$0xf] %vm172, %v739
      %776 = vst.msk [vmem:[#allocation3 + $0x18] sm:$0xf] %vm172, %v740
      %777 = vst.msk [vmem:[#allocation3 + $0x1c] sm:$0xf] %vm172, %v741
      %778 = vst.msk [vmem:[#allocation3 + $0x20] sm:$0xf] %vm172, %v742
      %779 = vst.msk [vmem:[#allocation3 + $0x24] sm:$0xf] %vm172, %v743
      %780 = vst.msk [vmem:[#allocation3 + $0x28] sm:$0xf] %vm172, %v744
      %781 = vst.msk [vmem:[#allocation3 + $0x2c] sm:$0xf] %vm172, %v745
      %782 = vst.msk [vmem:[#allocation3 + $0x30] sm:$0xf] %vm172, %v746
      %783 = vst.msk [vmem:[#allocation3 + $0x34] sm:$0xf] %vm172, %v747
      %784 = vst.msk [vmem:[#allocation3 + $0x38] sm:$0xf] %vm172, %v748
      %785 = vst.msk [vmem:[#allocation3 + $0x3c] sm:$0xf] %vm172, %v749
      %786 = vst.msk [vmem:[#allocation3 + $0x40] sm:$0xf] %vm172, %v750
      %787 = vst.msk [vmem:[#allocation3 + $0x44] sm:$0xf] %vm172, %v751
      %788 = vst.msk [vmem:[#allocation3 + $0x48] sm:$0xf] %vm172, %v752
      %789 = vst.msk [vmem:[#allocation3 + $0x4c] sm:$0xf] %vm172, %v753
      %790 = vst.msk [vmem:[#allocation3 + $0x50] sm:$0xf] %vm172, %v754
      %791 = vst.msk [vmem:[#allocation3 + $0x54] sm:$0xf] %vm172, %v755
      %792 = vst.msk [vmem:[#allocation3 + $0x58] sm:$0xf] %vm172, %v756
      %793 = vst.msk [vmem:[#allocation3 + $0x5c] sm:$0xf] %vm172, %v757
      %794 = vst.msk [vmem:[#allocation3 + $0x60] sm:$0xf] %vm172, %v758
      %795 = vst.msk [vmem:[#allocation3 + $0x64] sm:$0xf] %vm172, %v759
      %796 = vst.msk [vmem:[#allocation3 + $0x68] sm:$0xf] %vm172, %v760
      %797 = vst.msk [vmem:[#allocation3 + $0x6c] sm:$0xf] %vm172, %v761
      %798 = vst.msk [vmem:[#allocation3 + $0x70] sm:$0xf] %vm172, %v762
      %799 = vst.msk [vmem:[#allocation3 + $0x74] sm:$0xf] %vm172, %v763
      %800 = vst.msk [vmem:[#allocation3 + $0x78] sm:$0xf] %vm172, %v764
      %801 = vst.msk [vmem:[#allocation3 + $0x7c] sm:$0xf] %vm172, %v765
      %802 = vst.msk [vmem:[#allocation3 + $0x80] sm:$0xf] %vm172, %v766
      %803 = vst.msk [vmem:[#allocation3 + $0x84] sm:$0xf] %vm172, %v767
      %804 = vst.msk [vmem:[#allocation3 + $0x88] sm:$0xf] %vm172, %v768
      %805 = vst.msk [vmem:[#allocation3 + $0x8c] sm:$0xf] %vm172, %v769
      %v806 = vld [vmem:[#allocation3] sm:$0xf]
      %v807 = vld [vmem:[#allocation3 + $0x4] sm:$0xf]
      %v808 = vld [vmem:[#allocation3 + $0x8] sm:$0xf]
      %v809 = vld [vmem:[#allocation3 + $0xc] sm:$0xf]
      %v810 = vld [vmem:[#allocation3 + $0x10] sm:$0xf]
      %v811 = vld [vmem:[#allocation3 + $0x14] sm:$0xf]
      %v812 = vld [vmem:[#allocation3 + $0x18] sm:$0xf]
      %v813 = vld [vmem:[#allocation3 + $0x1c] sm:$0xf]
      %v814 = vld [vmem:[#allocation3 + $0x20] sm:$0xf]
      %v815 = vld [vmem:[#allocation3 + $0x24] sm:$0xf]
      %v816 = vld [vmem:[#allocation3 + $0x28] sm:$0xf]
      %v817 = vld [vmem:[#allocation3 + $0x2c] sm:$0xf]
      %v818 = vld [vmem:[#allocation3 + $0x30] sm:$0xf]
      %v819 = vld [vmem:[#allocation3 + $0x34] sm:$0xf]
      %v820 = vld [vmem:[#allocation3 + $0x38] sm:$0xf]
      %v821 = vld [vmem:[#allocation3 + $0x3c] sm:$0xf]
      %v822 = vld [vmem:[#allocation3 + $0x40] sm:$0xf]
      %v823 = vld [vmem:[#allocation3 + $0x44] sm:$0xf]
      %v824 = vld [vmem:[#allocation3 + $0x48] sm:$0xf]
      %v825 = vld [vmem:[#allocation3 + $0x4c] sm:$0xf]
      %v826 = vld [vmem:[#allocation3 + $0x50] sm:$0xf]
      %v827 = vld [vmem:[#allocation3 + $0x54] sm:$0xf]
      %v828 = vld [vmem:[#allocation3 + $0x58] sm:$0xf]
      %v829 = vld [vmem:[#allocation3 + $0x5c] sm:$0xf]
      %v830 = vld [vmem:[#allocation3 + $0x60] sm:$0xf]
      %v831 = vld [vmem:[#allocation3 + $0x64] sm:$0xf]
      %v832 = vld [vmem:[#allocation3 + $0x68] sm:$0xf]
      %v833 = vld [vmem:[#allocation3 + $0x6c] sm:$0xf]
      %v834 = vld [vmem:[#allocation3 + $0x70] sm:$0xf]
      %v835 = vld [vmem:[#allocation3 + $0x74] sm:$0xf]
      %v836 = vld [vmem:[#allocation3 + $0x78] sm:$0xf]
      %v837 = vld [vmem:[#allocation3 + $0x7c] sm:$0xf]
      %v838 = vld [vmem:[#allocation4] sm:$0xff]
      %v839 = vld [vmem:[#allocation4 + $0x8] sm:$0xff]
      %v840 = vld [vmem:[#allocation4 + $0x10] sm:$0xff]
      %v841 = vld [vmem:[#allocation4 + $0x18] sm:$0xff]
      %v842 = vld [vmem:[#allocation4 + $0x20] sm:$0xff]
      %v843 = vld [vmem:[#allocation4 + $0x28] sm:$0xff]
      %v844 = vld [vmem:[#allocation4 + $0x30] sm:$0xff]
      %v845 = vld [vmem:[#allocation4 + $0x38] sm:$0xff]
      %v846 = vld [vmem:[#allocation4 + $0x40] sm:$0xff]
      %v847 = vld [vmem:[#allocation4 + $0x48] sm:$0xff]
      %v848 = vld [vmem:[#allocation4 + $0x50] sm:$0xff]
      %v849 = vld [vmem:[#allocation4 + $0x58] sm:$0xff]
      %v850 = vld [vmem:[#allocation4 + $0x60] sm:$0xff]
      %v851 = vld [vmem:[#allocation4 + $0x68] sm:$0xff]
      %v852 = vld [vmem:[#allocation4 + $0x70] sm:$0xff]
      %v853 = vld [vmem:[#allocation4 + $0x78] sm:$0xff]
      %v854 = vld [vmem:[#allocation4 + $0x80] sm:$0xff]
      %v855 = vld [vmem:[#allocation4 + $0x88] sm:$0xff]
      %v856 = vld [vmem:[#allocation4 + $0x90] sm:$0xff]
      %v857 = vld [vmem:[#allocation4 + $0x98] sm:$0xff]
      %v858 = vld [vmem:[#allocation4 + $0xa0] sm:$0xff]
      %v859 = vld [vmem:[#allocation4 + $0xa8] sm:$0xff]
      %v860 = vld [vmem:[#allocation4 + $0xb0] sm:$0xff]
      %v861 = vld [vmem:[#allocation4 + $0xb8] sm:$0xff]
      %v862 = vld [vmem:[#allocation4 + $0xc0] sm:$0xff]
      %v863 = vld [vmem:[#allocation4 + $0xc8] sm:$0xff]
      %v864 = vld [vmem:[#allocation4 + $0xd0] sm:$0xff]
      %v865 = vld [vmem:[#allocation4 + $0xd8] sm:$0xff]
      %v866 = vld [vmem:[#allocation4 + $0xe0] sm:$0xff]
      %v867 = vld [vmem:[#allocation4 + $0xe8] sm:$0xff]
      %v868 = vld [vmem:[#allocation4 + $0xf0] sm:$0xff]
      %v869 = vld [vmem:[#allocation4 + $0xf8] sm:$0xff]
      %v870 = vld [vmem:[%s1] sm:$0xf]
      %v903 = vunpack.c.l.b16 %v806
      %v904 = vunpack.c.l.b16 %v807
      %v905 = vunpack.c.l.b16 %v808
      %v906 = vunpack.c.l.b16 %v809
      %v907 = vunpack.c.l.b16 %v810
      %v908 = vunpack.c.l.b16 %v811
      %v909 = vunpack.c.l.b16 %v812
      %v910 = vunpack.c.l.b16 %v813
      %v911 = vunpack.c.l.b16 %v814
      %v912 = vunpack.c.l.b16 %v815
      %v913 = vunpack.c.l.b16 %v816
      %v914 = vunpack.c.l.b16 %v817
      %v915 = vunpack.c.l.b16 %v818
      %v916 = vunpack.c.l.b16 %v819
      %v917 = vunpack.c.l.b16 %v820
      %v918 = vunpack.c.l.b16 %v821
      %v919 = vunpack.c.l.b16 %v822
      %v920 = vunpack.c.l.b16 %v823
      %v921 = vunpack.c.l.b16 %v824
      %v922 = vunpack.c.l.b16 %v825
      %v923 = vunpack.c.l.b16 %v826
      %v924 = vunpack.c.l.b16 %v827
      %v925 = vunpack.c.l.b16 %v828
      %v926 = vunpack.c.l.b16 %v829
      %v927 = vunpack.c.l.b16 %v830
      %v928 = vunpack.c.l.b16 %v831
      %v929 = vunpack.c.l.b16 %v832
      %v930 = vunpack.c.l.b16 %v833
      %v931 = vunpack.c.l.b16 %v834
      %v932 = vunpack.c.l.b16 %v835
      %v933 = vunpack.c.l.b16 %v836
      %v934 = vunpack.c.l.b16 %v837
      %v935 = vpack.c.b16 %v904, %v903
      %v936 = vpack.c.b16 %v906, %v905
      %v937 = vpack.c.b16 %v908, %v907
      %v938 = vpack.c.b16 %v910, %v909
      %v939 = vpack.c.b16 %v912, %v911
      %v940 = vpack.c.b16 %v914, %v913
      %v941 = vpack.c.b16 %v916, %v915
      %v942 = vpack.c.b16 %v918, %v917
      %v943 = vpack.c.b16 %v920, %v919
      %v944 = vpack.c.b16 %v922, %v921
      %v945 = vpack.c.b16 %v924, %v923
      %v946 = vpack.c.b16 %v926, %v925
      %v947 = vpack.c.b16 %v928, %v927
      %v948 = vpack.c.b16 %v930, %v929
      %v949 = vpack.c.b16 %v932, %v931
      %v950 = vpack.c.b16 %v934, %v933
      %vm951 = vcmask 64512
      %v953 = vsel %vm951, %v935, 0
      %v956 = vsel %vm951, %v936, 0
      %v959 = vsel %vm951, %v937, 0
      %v962 = vsel %vm951, %v938, 0
      %v965 = vsel %vm951, %v939, 0
      %v968 = vsel %vm951, %v940, 0
      %v971 = vsel %vm951, %v941, 0
      %v974 = vsel %vm951, %v942, 0
      %v977 = vsel %vm951, %v943, 0
      %v980 = vsel %vm951, %v944, 0
      %v983 = vsel %vm951, %v945, 0
      %v986 = vsel %vm951, %v946, 0
      %v989 = vsel %vm951, %v947, 0
      %v992 = vsel %vm951, %v948, 0
      %v995 = vsel %vm951, %v949, 0
      %v998 = vsel %vm951, %v950, 0
      %vm1000 = vcmask 1043456
      %v1002 = vsel %vm1000, %v870, 0
      %1004 = vmatprep.subr.bf16.mxu0 0
      %1005 = vmatpush1.bf16.msra.mxu0 0
      %1006 = vmatprep.subr.bf16.mxu0 0
      %1007 = vmatpush1.bf16.msra.mxu0 0
      %1008 = vmatprep.subr.bf16.mxu0 0
      %1009 = vmatpush1.bf16.msra.mxu0 0
      %1010 = vmatprep.subr.bf16.mxu0 0
      %1011 = vmatpush1.bf16.msra.mxu0 0
      %1012 = vmatprep.subr.bf16.mxu0 0
      %1013 = vmatpush1.bf16.msra.mxu0 0
      %1014 = vmatprep.subr.bf16.mxu0 0
      %1015 = vmatpush1.bf16.msra.mxu0 0
      %1016 = vmatprep.subr.bf16.mxu0 0
      %1017 = vmatpush1.bf16.msra.mxu0 0
      %1018 = vmatprep.subr.bf16.mxu0 0
      %1019 = vmatpush1.bf16.msra.mxu0 %v1002
      %1020 = vmatprep.subr.bf16.mxu0 0
      %1021 = vmatpush2.bf16.msra.mxu0 0
      %1022 = vmatprep.subr.bf16.mxu0 0
      %1023 = vmatpush2.bf16.msra.mxu0 0
      %1024 = vmatprep.subr.bf16.mxu0 0
      %1025 = vmatpush2.bf16.msra.mxu0 0
      %1026 = vmatprep.subr.bf16.mxu0 0
      %1027 = vmatpush2.bf16.msra.mxu0 0
      %1028 = vmatprep.subr.bf16.mxu0 0
      %1029 = vmatpush2.bf16.msra.mxu0 0
      %1030 = vmatprep.subr.bf16.mxu0 0
      %1031 = vmatpush2.bf16.msra.mxu0 0
      %1032 = vmatprep.subr.bf16.mxu0 0
      %1033 = vmatpush2.bf16.msra.mxu0 0
      %1034 = vmatprep.subr.bf16.mxu0 0
      %1035 = vmatpush2.bf16.msra.mxu0 0
      %1036 = vmatprep.mubr.bf16.mxu0 0
      %1037 = vmatmul.mubr.bf16.gmra.mxu0 %v953
      %v1038 = vpop.f32.mrf.mxu0
      %v1039 = vadd.f32 0.0, %v1038
      %v1040 = vpop.f32.mrf.mxu0
      %v1041 = vpop.f32.mrf.mxu0
      %v1042 = vadd.f32 0.0, %v1041
      %v1043 = vpop.f32.mrf.mxu0
      %1044 = vmatprep.mubr.bf16.mxu0 0
      %1045 = vmatmul.mubr.bf16.gmra.mxu0 %v956
      %v1046 = vpop.f32.mrf.mxu0
      %v1047 = vadd.f32 0.0, %v1046
      %v1048 = vpop.f32.mrf.mxu0
      %v1049 = vpop.f32.mrf.mxu0
      %v1050 = vadd.f32 0.0, %v1049
      %v1051 = vpop.f32.mrf.mxu0
      %1052 = vmatprep.mubr.bf16.mxu0 0
      %1053 = vmatmul.mubr.bf16.gmra.mxu0 %v959
      %v1054 = vpop.f32.mrf.mxu0
      %v1055 = vadd.f32 0.0, %v1054
      %v1056 = vpop.f32.mrf.mxu0
      %v1057 = vpop.f32.mrf.mxu0
      %v1058 = vadd.f32 0.0, %v1057
      %v1059 = vpop.f32.mrf.mxu0
      %1060 = vmatprep.mubr.bf16.mxu0 0
      %1061 = vmatmul.mubr.bf16.gmra.mxu0 %v962
      %v1062 = vpop.f32.mrf.mxu0
      %v1063 = vadd.f32 0.0, %v1062
      %v1064 = vpop.f32.mrf.mxu0
      %v1065 = vpop.f32.mrf.mxu0
      %v1066 = vadd.f32 0.0, %v1065
      %v1067 = vpop.f32.mrf.mxu0
      %1068 = vmatprep.mubr.bf16.mxu0 0
      %1069 = vmatmul.mubr.bf16.gmra.mxu0 %v965
      %v1070 = vpop.f32.mrf.mxu0
      %v1071 = vadd.f32 0.0, %v1070
      %v1072 = vpop.f32.mrf.mxu0
      %v1073 = vpop.f32.mrf.mxu0
      %v1074 = vadd.f32 0.0, %v1073
      %v1075 = vpop.f32.mrf.mxu0
      %1076 = vmatprep.mubr.bf16.mxu0 0
      %1077 = vmatmul.mubr.bf16.gmra.mxu0 %v968
      %v1078 = vpop.f32.mrf.mxu0
      %v1079 = vadd.f32 0.0, %v1078
      %v1080 = vpop.f32.mrf.mxu0
      %v1081 = vpop.f32.mrf.mxu0
      %v1082 = vadd.f32 0.0, %v1081
      %v1083 = vpop.f32.mrf.mxu0
      %1084 = vmatprep.mubr.bf16.mxu0 0
      %1085 = vmatmul.mubr.bf16.gmra.mxu0 %v971
      %v1086 = vpop.f32.mrf.mxu0
      %v1087 = vadd.f32 0.0, %v1086
      %v1088 = vpop.f32.mrf.mxu0
      %v1089 = vpop.f32.mrf.mxu0
      %v1090 = vadd.f32 0.0, %v1089
      %v1091 = vpop.f32.mrf.mxu0
      %1092 = vmatprep.mubr.bf16.mxu0 0
      %1093 = vmatmul.mubr.bf16.gmra.mxu0 %v974
      %v1094 = vpop.f32.mrf.mxu0
      %v1095 = vadd.f32 0.0, %v1094
      %v1096 = vpop.f32.mrf.mxu0
      %v1097 = vpop.f32.mrf.mxu0
      %v1098 = vadd.f32 0.0, %v1097
      %v1099 = vpop.f32.mrf.mxu0
      %1100 = vmatprep.mubr.bf16.mxu0 0
      %1101 = vmatmul.mubr.bf16.gmra.mxu0 %v977
      %v1102 = vpop.f32.mrf.mxu0
      %v1103 = vadd.f32 0.0, %v1102
      %v1104 = vpop.f32.mrf.mxu0
      %v1105 = vpop.f32.mrf.mxu0
      %v1106 = vadd.f32 0.0, %v1105
      %v1107 = vpop.f32.mrf.mxu0
      %1108 = vmatprep.mubr.bf16.mxu0 0
      %1109 = vmatmul.mubr.bf16.gmra.mxu0 %v980
      %v1110 = vpop.f32.mrf.mxu0
      %v1111 = vadd.f32 0.0, %v1110
      %v1112 = vpop.f32.mrf.mxu0
      %v1113 = vpop.f32.mrf.mxu0
      %v1114 = vadd.f32 0.0, %v1113
      %v1115 = vpop.f32.mrf.mxu0
      %1116 = vmatprep.mubr.bf16.mxu0 0
      %1117 = vmatmul.mubr.bf16.gmra.mxu0 %v983
      %v1118 = vpop.f32.mrf.mxu0
      %v1119 = vadd.f32 0.0, %v1118
      %v1120 = vpop.f32.mrf.mxu0
      %v1121 = vpop.f32.mrf.mxu0
      %v1122 = vadd.f32 0.0, %v1121
      %v1123 = vpop.f32.mrf.mxu0
      %1124 = vmatprep.mubr.bf16.mxu0 0
      %1125 = vmatmul.mubr.bf16.gmra.mxu0 %v986
      %v1126 = vpop.f32.mrf.mxu0
      %v1127 = vadd.f32 0.0, %v1126
      %v1128 = vpop.f32.mrf.mxu0
      %v1129 = vpop.f32.mrf.mxu0
      %v1130 = vadd.f32 0.0, %v1129
      %v1131 = vpop.f32.mrf.mxu0
      %1132 = vmatprep.mubr.bf16.mxu0 0
      %1133 = vmatmul.mubr.bf16.gmra.mxu0 %v989
      %v1134 = vpop.f32.mrf.mxu0
      %v1135 = vadd.f32 0.0, %v1134
      %v1136 = vpop.f32.mrf.mxu0
      %v1137 = vpop.f32.mrf.mxu0
      %v1138 = vadd.f32 0.0, %v1137
      %v1139 = vpop.f32.mrf.mxu0
      %1140 = vmatprep.mubr.bf16.mxu0 0
      %1141 = vmatmul.mubr.bf16.gmra.mxu0 %v992
      %v1142 = vpop.f32.mrf.mxu0
      %v1143 = vadd.f32 0.0, %v1142
      %v1144 = vpop.f32.mrf.mxu0
      %v1145 = vpop.f32.mrf.mxu0
      %v1146 = vadd.f32 0.0, %v1145
      %v1147 = vpop.f32.mrf.mxu0
      %1148 = vmatprep.mubr.bf16.mxu0 0
      %1149 = vmatmul.mubr.bf16.gmra.mxu0 %v995
      %v1150 = vpop.f32.mrf.mxu0
      %v1151 = vadd.f32 0.0, %v1150
      %v1152 = vpop.f32.mrf.mxu0
      %v1153 = vpop.f32.mrf.mxu0
      %v1154 = vadd.f32 0.0, %v1153
      %v1155 = vpop.f32.mrf.mxu0
      %1156 = vmatprep.mubr.bf16.mxu0 0
      %1157 = vmatmul.mubr.bf16.gmra.mxu0 %v998
      %v1158 = vpop.f32.mrf.mxu0
      %v1159 = vadd.f32 0.0, %v1158
      %v1160 = vpop.f32.mrf.mxu0
      %v1161 = vpop.f32.mrf.mxu0
      %v1162 = vadd.f32 0.0, %v1161
      %v1163 = vpop.f32.mrf.mxu0
      %1164 = vdwg.mxu0
      %v1165 = vadd.f32 %v838, %v1039
      %v1166 = vadd.f32 %v839, %v1042
      %v1167 = vadd.f32 %v840, %v1047
      %v1168 = vadd.f32 %v841, %v1050
      %v1169 = vadd.f32 %v842, %v1055
      %v1170 = vadd.f32 %v843, %v1058
      %v1171 = vadd.f32 %v844, %v1063
      %v1172 = vadd.f32 %v845, %v1066
      %v1173 = vadd.f32 %v846, %v1071
      %v1174 = vadd.f32 %v847, %v1074
      %v1175 = vadd.f32 %v848, %v1079
      %v1176 = vadd.f32 %v849, %v1082
      %v1177 = vadd.f32 %v850, %v1087
      %v1178 = vadd.f32 %v851, %v1090
      %v1179 = vadd.f32 %v852, %v1095
      %v1180 = vadd.f32 %v853, %v1098
      %v1181 = vadd.f32 %v854, %v1103
      %v1182 = vadd.f32 %v855, %v1106
      %v1183 = vadd.f32 %v856, %v1111
      %v1184 = vadd.f32 %v857, %v1114
      %v1185 = vadd.f32 %v858, %v1119
      %v1186 = vadd.f32 %v859, %v1122
      %v1187 = vadd.f32 %v860, %v1127
      %v1188 = vadd.f32 %v861, %v1130
      %v1189 = vadd.f32 %v862, %v1135
      %v1190 = vadd.f32 %v863, %v1138
      %v1191 = vadd.f32 %v864, %v1143
      %v1192 = vadd.f32 %v865, %v1146
      %v1193 = vadd.f32 %v866, %v1151
      %v1194 = vadd.f32 %v867, %v1154
      %v1195 = vadd.f32 %v868, %v1159
      %v1196 = vadd.f32 %v869, %v1162
      %1197 = vst.msk [vmem:[#allocation4] sm:$0xff] %vm701, %v1165
      %1198 = vst.msk [vmem:[#allocation4 + $0x8] sm:$0xff] %vm701, %v1166
      %1199 = vst.msk [vmem:[#allocation4 + $0x10] sm:$0xff] %vm701, %v1167
      %1200 = vst.msk [vmem:[#allocation4 + $0x18] sm:$0xff] %vm701, %v1168
      %1201 = vst.msk [vmem:[#allocation4 + $0x20] sm:$0xff] %vm701, %v1169
      %1202 = vst.msk [vmem:[#allocation4 + $0x28] sm:$0xff] %vm701, %v1170
      %1203 = vst.msk [vmem:[#allocation4 + $0x30] sm:$0xff] %vm701, %v1171
      %1204 = vst.msk [vmem:[#allocation4 + $0x38] sm:$0xff] %vm701, %v1172
      %1205 = vst.msk [vmem:[#allocation4 + $0x40] sm:$0xff] %vm701, %v1173
      %1206 = vst.msk [vmem:[#allocation4 + $0x48] sm:$0xff] %vm701, %v1174
      %1207 = vst.msk [vmem:[#allocation4 + $0x50] sm:$0xff] %vm701, %v1175
      %1208 = vst.msk [vmem:[#allocation4 + $0x58] sm:$0xff] %vm701, %v1176
      %1209 = vst.msk [vmem:[#allocation4 + $0x60] sm:$0xff] %vm701, %v1177
      %1210 = vst.msk [vmem:[#allocation4 + $0x68] sm:$0xff] %vm701, %v1178
      %1211 = vst.msk [vmem:[#allocation4 + $0x70] sm:$0xff] %vm701, %v1179
      %1212 = vst.msk [vmem:[#allocation4 + $0x78] sm:$0xff] %vm701, %v1180
      %1213 = vst.msk [vmem:[#allocation4 + $0x80] sm:$0xff] %vm701, %v1181
      %1214 = vst.msk [vmem:[#allocation4 + $0x88] sm:$0xff] %vm701, %v1182
      %1215 = vst.msk [vmem:[#allocation4 + $0x90] sm:$0xff] %vm701, %v1183
      %1216 = vst.msk [vmem:[#allocation4 + $0x98] sm:$0xff] %vm701, %v1184
      %1217 = vst.msk [vmem:[#allocation4 + $0xa0] sm:$0xff] %vm701, %v1185
      %1218 = vst.msk [vmem:[#allocation4 + $0xa8] sm:$0xff] %vm701, %v1186
      %1219 = vst.msk [vmem:[#allocation4 + $0xb0] sm:$0xff] %vm701, %v1187
      %1220 = vst.msk [vmem:[#allocation4 + $0xb8] sm:$0xff] %vm701, %v1188
      %1221 = vst.msk [vmem:[#allocation4 + $0xc0] sm:$0xff] %vm701, %v1189
      %1222 = vst.msk [vmem:[#allocation4 + $0xc8] sm:$0xff] %vm701, %v1190
      %1223 = vst.msk [vmem:[#allocation4 + $0xd0] sm:$0xff] %vm701, %v1191
      %1224 = vst.msk [vmem:[#allocation4 + $0xd8] sm:$0xff] %vm701, %v1192
      %1225 = vst.msk [vmem:[#allocation4 + $0xe0] sm:$0xff] %vm701, %v1193
      %1226 = vst.msk [vmem:[#allocation4 + $0xe8] sm:$0xff] %vm701, %v1194
      %1227 = vst.msk [vmem:[#allocation4 + $0xf0] sm:$0xff] %vm701, %v1195
      %1228 = vst.msk [vmem:[#allocation4 + $0xf8] sm:$0xff] %vm701, %v1196
      %s1229 = scalar_lea.vmem [#allocation3], 8
      %v1230 = vld [vmem:[%s1229] sm:$0xf]
      %v1231 = vld [vmem:[%s1229 + $0x4] sm:$0xf]
      %v1232 = vld [vmem:[%s1229 + $0x8] sm:$0xf]
      %v1233 = vld [vmem:[%s1229 + $0xc] sm:$0xf]
      %v1234 = vld [vmem:[%s1229 + $0x10] sm:$0xf]
      %v1235 = vld [vmem:[%s1229 + $0x14] sm:$0xf]
      %v1236 = vld [vmem:[%s1229 + $0x18] sm:$0xf]
      %v1237 = vld [vmem:[%s1229 + $0x1c] sm:$0xf]
      %v1238 = vld [vmem:[%s1229 + $0x20] sm:$0xf]
      %v1239 = vld [vmem:[%s1229 + $0x24] sm:$0xf]
      %v1240 = vld [vmem:[%s1229 + $0x28] sm:$0xf]
      %v1241 = vld [vmem:[%s1229 + $0x2c] sm:$0xf]
      %v1242 = vld [vmem:[%s1229 + $0x30] sm:$0xf]
      %v1243 = vld [vmem:[%s1229 + $0x34] sm:$0xf]
      %v1244 = vld [vmem:[%s1229 + $0x38] sm:$0xf]
      %v1245 = vld [vmem:[%s1229 + $0x3c] sm:$0xf]
      %v1246 = vld [vmem:[%s1229 + $0x40] sm:$0xf]
      %v1247 = vld [vmem:[%s1229 + $0x44] sm:$0xf]
      %v1248 = vld [vmem:[%s1229 + $0x48] sm:$0xf]
      %v1249 = vld [vmem:[%s1229 + $0x4c] sm:$0xf]
      %v1250 = vld [vmem:[%s1229 + $0x50] sm:$0xf]
      %v1251 = vld [vmem:[%s1229 + $0x54] sm:$0xf]
      %v1252 = vld [vmem:[%s1229 + $0x58] sm:$0xf]
      %v1253 = vld [vmem:[%s1229 + $0x5c] sm:$0xf]
      %v1254 = vld [vmem:[%s1229 + $0x60] sm:$0xf]
      %v1255 = vld [vmem:[%s1229 + $0x64] sm:$0xf]
      %v1256 = vld [vmem:[%s1229 + $0x68] sm:$0xf]
      %v1257 = vld [vmem:[%s1229 + $0x6c] sm:$0xf]
      %v1258 = vld [vmem:[%s1229 + $0x70] sm:$0xf]
      %v1259 = vld [vmem:[%s1229 + $0x74] sm:$0xf]
      %v1260 = vld [vmem:[%s1229 + $0x78] sm:$0xf]
      %v1261 = vld [vmem:[%s1229 + $0x7c] sm:$0xf]
      %v1262 = vld [vmem:[#allocation4] sm:$0xff]
      %v1263 = vld [vmem:[#allocation4 + $0x8] sm:$0xff]
      %v1264 = vld [vmem:[#allocation4 + $0x10] sm:$0xff]
      %v1265 = vld [vmem:[#allocation4 + $0x18] sm:$0xff]
      %v1266 = vld [vmem:[#allocation4 + $0x20] sm:$0xff]
      %v1267 = vld [vmem:[#allocation4 + $0x28] sm:$0xff]
      %v1268 = vld [vmem:[#allocation4 + $0x30] sm:$0xff]
      %v1269 = vld [vmem:[#allocation4 + $0x38] sm:$0xff]
      %v1270 = vld [vmem:[#allocation4 + $0x40] sm:$0xff]
      %v1271 = vld [vmem:[#allocation4 + $0x48] sm:$0xff]
      %v1272 = vld [vmem:[#allocation4 + $0x50] sm:$0xff]
      %v1273 = vld [vmem:[#allocation4 + $0x58] sm:$0xff]
      %v1274 = vld [vmem:[#allocation4 + $0x60] sm:$0xff]
      %v1275 = vld [vmem:[#allocation4 + $0x68] sm:$0xff]
      %v1276 = vld [vmem:[#allocation4 + $0x70] sm:$0xff]
      %v1277 = vld [vmem:[#allocation4 + $0x78] sm:$0xff]
      %v1278 = vld [vmem:[#allocation4 + $0x80] sm:$0xff]
      %v1279 = vld [vmem:[#allocation4 + $0x88] sm:$0xff]
      %v1280 = vld [vmem:[#allocation4 + $0x90] sm:$0xff]
      %v1281 = vld [vmem:[#allocation4 + $0x98] sm:$0xff]
      %v1282 = vld [vmem:[#allocation4 + $0xa0] sm:$0xff]
      %v1283 = vld [vmem:[#allocation4 + $0xa8] sm:$0xff]
      %v1284 = vld [vmem:[#allocation4 + $0xb0] sm:$0xff]
      %v1285 = vld [vmem:[#allocation4 + $0xb8] sm:$0xff]
      %v1286 = vld [vmem:[#allocation4 + $0xc0] sm:$0xff]
      %v1287 = vld [vmem:[#allocation4 + $0xc8] sm:$0xff]
      %v1288 = vld [vmem:[#allocation4 + $0xd0] sm:$0xff]
      %v1289 = vld [vmem:[#allocation4 + $0xd8] sm:$0xff]
      %v1290 = vld [vmem:[#allocation4 + $0xe0] sm:$0xff]
      %v1291 = vld [vmem:[#allocation4 + $0xe8] sm:$0xff]
      %v1292 = vld [vmem:[#allocation4 + $0xf0] sm:$0xff]
      %v1293 = vld [vmem:[#allocation4 + $0xf8] sm:$0xff]
      %s1294 = scalar_lea.vmem %s1, 12
      %v1295 = vld [vmem:[%s1294] sm:$0xf]
      %v1328 = vunpack.c.l.b16 %v1230
      %v1329 = vunpack.c.l.b16 %v1231
      %v1330 = vunpack.c.l.b16 %v1232
      %v1331 = vunpack.c.l.b16 %v1233
      %v1332 = vunpack.c.l.b16 %v1234
      %v1333 = vunpack.c.l.b16 %v1235
      %v1334 = vunpack.c.l.b16 %v1236
      %v1335 = vunpack.c.l.b16 %v1237
      %v1336 = vunpack.c.l.b16 %v1238
      %v1337 = vunpack.c.l.b16 %v1239
      %v1338 = vunpack.c.l.b16 %v1240
      %v1339 = vunpack.c.l.b16 %v1241
      %v1340 = vunpack.c.l.b16 %v1242
      %v1341 = vunpack.c.l.b16 %v1243
      %v1342 = vunpack.c.l.b16 %v1244
      %v1343 = vunpack.c.l.b16 %v1245
      %v1344 = vunpack.c.l.b16 %v1246
      %v1345 = vunpack.c.l.b16 %v1247
      %v1346 = vunpack.c.l.b16 %v1248
      %v1347 = vunpack.c.l.b16 %v1249
      %v1348 = vunpack.c.l.b16 %v1250
      %v1349 = vunpack.c.l.b16 %v1251
      %v1350 = vunpack.c.l.b16 %v1252
      %v1351 = vunpack.c.l.b16 %v1253
      %v1352 = vunpack.c.l.b16 %v1254
      %v1353 = vunpack.c.l.b16 %v1255
      %v1354 = vunpack.c.l.b16 %v1256
      %v1355 = vunpack.c.l.b16 %v1257
      %v1356 = vunpack.c.l.b16 %v1258
      %v1357 = vunpack.c.l.b16 %v1259
      %v1358 = vunpack.c.l.b16 %v1260
      %v1359 = vunpack.c.l.b16 %v1261
      %v1360 = vpack.c.b16 %v1329, %v1328
      %v1361 = vpack.c.b16 %v1331, %v1330
      %v1362 = vpack.c.b16 %v1333, %v1332
      %v1363 = vpack.c.b16 %v1335, %v1334
      %v1364 = vpack.c.b16 %v1337, %v1336
      %v1365 = vpack.c.b16 %v1339, %v1338
      %v1366 = vpack.c.b16 %v1341, %v1340
      %v1367 = vpack.c.b16 %v1343, %v1342
      %v1368 = vpack.c.b16 %v1345, %v1344
      %v1369 = vpack.c.b16 %v1347, %v1346
      %v1370 = vpack.c.b16 %v1349, %v1348
      %v1371 = vpack.c.b16 %v1351, %v1350
      %v1372 = vpack.c.b16 %v1353, %v1352
      %v1373 = vpack.c.b16 %v1355, %v1354
      %v1374 = vpack.c.b16 %v1357, %v1356
      %v1375 = vpack.c.b16 %v1359, %v1358
      %v1377 = vsel %vm951, %v1360, 0
      %v1380 = vsel %vm951, %v1361, 0
      %v1383 = vsel %vm951, %v1362, 0
      %v1386 = vsel %vm951, %v1363, 0
      %v1389 = vsel %vm951, %v1364, 0
      %v1392 = vsel %vm951, %v1365, 0
      %v1395 = vsel %vm951, %v1366, 0
      %v1398 = vsel %vm951, %v1367, 0
      %v1401 = vsel %vm951, %v1368, 0
      %v1404 = vsel %vm951, %v1369, 0
      %v1407 = vsel %vm951, %v1370, 0
      %v1410 = vsel %vm951, %v1371, 0
      %v1413 = vsel %vm951, %v1372, 0
      %v1416 = vsel %vm951, %v1373, 0
      %v1419 = vsel %vm951, %v1374, 0
      %v1422 = vsel %vm951, %v1375, 0
      %v1425 = vsel %vm1000, %v1295, 0
      %1427 = vmatprep.subr.bf16.mxu0 0
      %1428 = vmatpush1.bf16.msra.mxu0 0
      %1429 = vmatprep.subr.bf16.mxu0 0
      %1430 = vmatpush1.bf16.msra.mxu0 0
      %1431 = vmatprep.subr.bf16.mxu0 0
      %1432 = vmatpush1.bf16.msra.mxu0 0
      %1433 = vmatprep.subr.bf16.mxu0 0
      %1434 = vmatpush1.bf16.msra.mxu0 0
      %1435 = vmatprep.subr.bf16.mxu0 0
      %1436 = vmatpush1.bf16.msra.mxu0 0
      %1437 = vmatprep.subr.bf16.mxu0 0
      %1438 = vmatpush1.bf16.msra.mxu0 0
      %1439 = vmatprep.subr.bf16.mxu0 0
      %1440 = vmatpush1.bf16.msra.mxu0 0
      %1441 = vmatprep.subr.bf16.mxu0 0
      %1442 = vmatpush1.bf16.msra.mxu0 %v1425
      %1443 = vmatprep.subr.bf16.mxu0 0
      %1444 = vmatpush2.bf16.msra.mxu0 0
      %1445 = vmatprep.subr.bf16.mxu0 0
      %1446 = vmatpush2.bf16.msra.mxu0 0
      %1447 = vmatprep.subr.bf16.mxu0 0
      %1448 = vmatpush2.bf16.msra.mxu0 0
      %1449 = vmatprep.subr.bf16.mxu0 0
      %1450 = vmatpush2.bf16.msra.mxu0 0
      %1451 = vmatprep.subr.bf16.mxu0 0
      %1452 = vmatpush2.bf16.msra.mxu0 0
      %1453 = vmatprep.subr.bf16.mxu0 0
      %1454 = vmatpush2.bf16.msra.mxu0 0
      %1455 = vmatprep.subr.bf16.mxu0 0
      %1456 = vmatpush2.bf16.msra.mxu0 0
      %1457 = vmatprep.subr.bf16.mxu0 0
      %1458 = vmatpush2.bf16.msra.mxu0 0
      %1459 = vmatprep.mubr.bf16.mxu0 0
      %1460 = vmatmul.mubr.bf16.gmra.mxu0 %v1377
      %v1461 = vpop.f32.mrf.mxu0
      %v1462 = vadd.f32 0.0, %v1461
      %v1463 = vpop.f32.mrf.mxu0
      %v1464 = vpop.f32.mrf.mxu0
      %v1465 = vadd.f32 0.0, %v1464
      %v1466 = vpop.f32.mrf.mxu0
      %1467 = vmatprep.mubr.bf16.mxu0 0
      %1468 = vmatmul.mubr.bf16.gmra.mxu0 %v1380
      %v1469 = vpop.f32.mrf.mxu0
      %v1470 = vadd.f32 0.0, %v1469
      %v1471 = vpop.f32.mrf.mxu0
      %v1472 = vpop.f32.mrf.mxu0
      %v1473 = vadd.f32 0.0, %v1472
      %v1474 = vpop.f32.mrf.mxu0
      %1475 = vmatprep.mubr.bf16.mxu0 0
      %1476 = vmatmul.mubr.bf16.gmra.mxu0 %v1383
      %v1477 = vpop.f32.mrf.mxu0
      %v1478 = vadd.f32 0.0, %v1477
      %v1479 = vpop.f32.mrf.mxu0
      %v1480 = vpop.f32.mrf.mxu0
      %v1481 = vadd.f32 0.0, %v1480
      %v1482 = vpop.f32.mrf.mxu0
      %1483 = vmatprep.mubr.bf16.mxu0 0
      %1484 = vmatmul.mubr.bf16.gmra.mxu0 %v1386
      %v1485 = vpop.f32.mrf.mxu0
      %v1486 = vadd.f32 0.0, %v1485
      %v1487 = vpop.f32.mrf.mxu0
      %v1488 = vpop.f32.mrf.mxu0
      %v1489 = vadd.f32 0.0, %v1488
      %v1490 = vpop.f32.mrf.mxu0
      %1491 = vmatprep.mubr.bf16.mxu0 0
      %1492 = vmatmul.mubr.bf16.gmra.mxu0 %v1389
      %v1493 = vpop.f32.mrf.mxu0
      %v1494 = vadd.f32 0.0, %v1493
      %v1495 = vpop.f32.mrf.mxu0
      %v1496 = vpop.f32.mrf.mxu0
      %v1497 = vadd.f32 0.0, %v1496
      %v1498 = vpop.f32.mrf.mxu0
      %1499 = vmatprep.mubr.bf16.mxu0 0
      %1500 = vmatmul.mubr.bf16.gmra.mxu0 %v1392
      %v1501 = vpop.f32.mrf.mxu0
      %v1502 = vadd.f32 0.0, %v1501
      %v1503 = vpop.f32.mrf.mxu0
      %v1504 = vpop.f32.mrf.mxu0
      %v1505 = vadd.f32 0.0, %v1504
      %v1506 = vpop.f32.mrf.mxu0
      %1507 = vmatprep.mubr.bf16.mxu0 0
      %1508 = vmatmul.mubr.bf16.gmra.mxu0 %v1395
      %v1509 = vpop.f32.mrf.mxu0
      %v1510 = vadd.f32 0.0, %v1509
      %v1511 = vpop.f32.mrf.mxu0
      %v1512 = vpop.f32.mrf.mxu0
      %v1513 = vadd.f32 0.0, %v1512
      %v1514 = vpop.f32.mrf.mxu0
      %1515 = vmatprep.mubr.bf16.mxu0 0
      %1516 = vmatmul.mubr.bf16.gmra.mxu0 %v1398
      %v1517 = vpop.f32.mrf.mxu0
      %v1518 = vadd.f32 0.0, %v1517
      %v1519 = vpop.f32.mrf.mxu0
      %v1520 = vpop.f32.mrf.mxu0
      %v1521 = vadd.f32 0.0, %v1520
      %v1522 = vpop.f32.mrf.mxu0
      %1523 = vmatprep.mubr.bf16.mxu0 0
      %1524 = vmatmul.mubr.bf16.gmra.mxu0 %v1401
      %v1525 = vpop.f32.mrf.mxu0
      %v1526 = vadd.f32 0.0, %v1525
      %v1527 = vpop.f32.mrf.mxu0
      %v1528 = vpop.f32.mrf.mxu0
      %v1529 = vadd.f32 0.0, %v1528
      %v1530 = vpop.f32.mrf.mxu0
      %1531 = vmatprep.mubr.bf16.mxu0 0
      %1532 = vmatmul.mubr.bf16.gmra.mxu0 %v1404
      %v1533 = vpop.f32.mrf.mxu0
      %v1534 = vadd.f32 0.0, %v1533
      %v1535 = vpop.f32.mrf.mxu0
      %v1536 = vpop.f32.mrf.mxu0
      %v1537 = vadd.f32 0.0, %v1536
      %v1538 = vpop.f32.mrf.mxu0
      %1539 = vmatprep.mubr.bf16.mxu0 0
      %1540 = vmatmul.mubr.bf16.gmra.mxu0 %v1407
      %v1541 = vpop.f32.mrf.mxu0
      %v1542 = vadd.f32 0.0, %v1541
      %v1543 = vpop.f32.mrf.mxu0
      %v1544 = vpop.f32.mrf.mxu0
      %v1545 = vadd.f32 0.0, %v1544
      %v1546 = vpop.f32.mrf.mxu0
      %1547 = vmatprep.mubr.bf16.mxu0 0
      %1548 = vmatmul.mubr.bf16.gmra.mxu0 %v1410
      %v1549 = vpop.f32.mrf.mxu0
      %v1550 = vadd.f32 0.0, %v1549
      %v1551 = vpop.f32.mrf.mxu0
      %v1552 = vpop.f32.mrf.mxu0
      %v1553 = vadd.f32 0.0, %v1552
      %v1554 = vpop.f32.mrf.mxu0
      %1555 = vmatprep.mubr.bf16.mxu0 0
      %1556 = vmatmul.mubr.bf16.gmra.mxu0 %v1413
      %v1557 = vpop.f32.mrf.mxu0
      %v1558 = vadd.f32 0.0, %v1557
      %v1559 = vpop.f32.mrf.mxu0
      %v1560 = vpop.f32.mrf.mxu0
      %v1561 = vadd.f32 0.0, %v1560
      %v1562 = vpop.f32.mrf.mxu0
      %1563 = vmatprep.mubr.bf16.mxu0 0
      %1564 = vmatmul.mubr.bf16.gmra.mxu0 %v1416
      %v1565 = vpop.f32.mrf.mxu0
      %v1566 = vadd.f32 0.0, %v1565
      %v1567 = vpop.f32.mrf.mxu0
      %v1568 = vpop.f32.mrf.mxu0
      %v1569 = vadd.f32 0.0, %v1568
      %v1570 = vpop.f32.mrf.mxu0
      %1571 = vmatprep.mubr.bf16.mxu0 0
      %1572 = vmatmul.mubr.bf16.gmra.mxu0 %v1419
      %v1573 = vpop.f32.mrf.mxu0
      %v1574 = vadd.f32 0.0, %v1573
      %v1575 = vpop.f32.mrf.mxu0
      %v1576 = vpop.f32.mrf.mxu0
      %v1577 = vadd.f32 0.0, %v1576
      %v1578 = vpop.f32.mrf.mxu0
      %1579 = vmatprep.mubr.bf16.mxu0 0
      %1580 = vmatmul.mubr.bf16.gmra.mxu0 %v1422
      %v1581 = vpop.f32.mrf.mxu0
      %v1582 = vadd.f32 0.0, %v1581
      %v1583 = vpop.f32.mrf.mxu0
      %v1584 = vpop.f32.mrf.mxu0
      %v1585 = vadd.f32 0.0, %v1584
      %v1586 = vpop.f32.mrf.mxu0
      %1587 = vdwg.mxu0
      %v1588 = vadd.f32 %v1262, %v1462
      %v1589 = vadd.f32 %v1263, %v1465
      %v1590 = vadd.f32 %v1264, %v1470
      %v1591 = vadd.f32 %v1265, %v1473
      %v1592 = vadd.f32 %v1266, %v1478
      %v1593 = vadd.f32 %v1267, %v1481
      %v1594 = vadd.f32 %v1268, %v1486
      %v1595 = vadd.f32 %v1269, %v1489
      %v1596 = vadd.f32 %v1270, %v1494
      %v1597 = vadd.f32 %v1271, %v1497
      %v1598 = vadd.f32 %v1272, %v1502
      %v1599 = vadd.f32 %v1273, %v1505
      %v1600 = vadd.f32 %v1274, %v1510
      %v1601 = vadd.f32 %v1275, %v1513
      %v1602 = vadd.f32 %v1276, %v1518
      %v1603 = vadd.f32 %v1277, %v1521
      %v1604 = vadd.f32 %v1278, %v1526
      %v1605 = vadd.f32 %v1279, %v1529
      %v1606 = vadd.f32 %v1280, %v1534
      %v1607 = vadd.f32 %v1281, %v1537
      %v1608 = vadd.f32 %v1282, %v1542
      %v1609 = vadd.f32 %v1283, %v1545
      %v1610 = vadd.f32 %v1284, %v1550
      %v1611 = vadd.f32 %v1285, %v1553
      %v1612 = vadd.f32 %v1286, %v1558
      %v1613 = vadd.f32 %v1287, %v1561
      %v1614 = vadd.f32 %v1288, %v1566
      %v1615 = vadd.f32 %v1289, %v1569
      %v1616 = vadd.f32 %v1290, %v1574
      %v1617 = vadd.f32 %v1291, %v1577
      %v1618 = vadd.f32 %v1292, %v1582
      %v1619 = vadd.f32 %v1293, %v1585
      %1620 = vst.msk [vmem:[#allocation4] sm:$0xff] %vm701, %v1588
      %1621 = vst.msk [vmem:[#allocation4 + $0x8] sm:$0xff] %vm701, %v1589
      %1622 = vst.msk [vmem:[#allocation4 + $0x10] sm:$0xff] %vm701, %v1590
      %1623 = vst.msk [vmem:[#allocation4 + $0x18] sm:$0xff] %vm701, %v1591
      %1624 = vst.msk [vmem:[#allocation4 + $0x20] sm:$0xff] %vm701, %v1592
      %1625 = vst.msk [vmem:[#allocation4 + $0x28] sm:$0xff] %vm701, %v1593
      %1626 = vst.msk [vmem:[#allocation4 + $0x30] sm:$0xff] %vm701, %v1594
      %1627 = vst.msk [vmem:[#allocation4 + $0x38] sm:$0xff] %vm701, %v1595
      %1628 = vst.msk [vmem:[#allocation4 + $0x40] sm:$0xff] %vm701, %v1596
      %1629 = vst.msk [vmem:[#allocation4 + $0x48] sm:$0xff] %vm701, %v1597
      %1630 = vst.msk [vmem:[#allocation4 + $0x50] sm:$0xff] %vm701, %v1598
      %1631 = vst.msk [vmem:[#allocation4 + $0x58] sm:$0xff] %vm701, %v1599
      %1632 = vst.msk [vmem:[#allocation4 + $0x60] sm:$0xff] %vm701, %v1600
      %1633 = vst.msk [vmem:[#allocation4 + $0x68] sm:$0xff] %vm701, %v1601
      %1634 = vst.msk [vmem:[#allocation4 + $0x70] sm:$0xff] %vm701, %v1602
      %1635 = vst.msk [vmem:[#allocation4 + $0x78] sm:$0xff] %vm701, %v1603
      %1636 = vst.msk [vmem:[#allocation4 + $0x80] sm:$0xff] %vm701, %v1604
      %1637 = vst.msk [vmem:[#allocation4 + $0x88] sm:$0xff] %vm701, %v1605
      %1638 = vst.msk [vmem:[#allocation4 + $0x90] sm:$0xff] %vm701, %v1606
      %1639 = vst.msk [vmem:[#allocation4 + $0x98] sm:$0xff] %vm701, %v1607
      %1640 = vst.msk [vmem:[#allocation4 + $0xa0] sm:$0xff] %vm701, %v1608
      %1641 = vst.msk [vmem:[#allocation4 + $0xa8] sm:$0xff] %vm701, %v1609
      %1642 = vst.msk [vmem:[#allocation4 + $0xb0] sm:$0xff] %vm701, %v1610
      %1643 = vst.msk [vmem:[#allocation4 + $0xb8] sm:$0xff] %vm701, %v1611
      %1644 = vst.msk [vmem:[#allocation4 + $0xc0] sm:$0xff] %vm701, %v1612
      %1645 = vst.msk [vmem:[#allocation4 + $0xc8] sm:$0xff] %vm701, %v1613
      %1646 = vst.msk [vmem:[#allocation4 + $0xd0] sm:$0xff] %vm701, %v1614
      %1647 = vst.msk [vmem:[#allocation4 + $0xd8] sm:$0xff] %vm701, %v1615
      %1648 = vst.msk [vmem:[#allocation4 + $0xe0] sm:$0xff] %vm701, %v1616
      %1649 = vst.msk [vmem:[#allocation4 + $0xe8] sm:$0xff] %vm701, %v1617
      %1650 = vst.msk [vmem:[#allocation4 + $0xf0] sm:$0xff] %vm701, %v1618
      %1651 = vst.msk [vmem:[#allocation4 + $0xf8] sm:$0xff] %vm701, %v1619
      %s1652 = scalar_lea.vmem [#allocation3], 16
      %v1653 = vld [vmem:[%s1652] sm:$0xf]
      %v1654 = vld [vmem:[%s1652 + $0x4] sm:$0xf]
      %v1655 = vld [vmem:[%s1652 + $0x8] sm:$0xf]
      %v1656 = vld [vmem:[%s1652 + $0xc] sm:$0xf]
      %v1657 = vld [vmem:[%s1652 + $0x10] sm:$0xf]
      %v1658 = vld [vmem:[%s1652 + $0x14] sm:$0xf]
      %v1659 = vld [vmem:[%s1652 + $0x18] sm:$0xf]
      %v1660 = vld [vmem:[%s1652 + $0x1c] sm:$0xf]
      %v1661 = vld [vmem:[%s1652 + $0x20] sm:$0xf]
      %v1662 = vld [vmem:[%s1652 + $0x24] sm:$0xf]
      %v1663 = vld [vmem:[%s1652 + $0x28] sm:$0xf]
      %v1664 = vld [vmem:[%s1652 + $0x2c] sm:$0xf]
      %v1665 = vld [vmem:[%s1652 + $0x30] sm:$0xf]
      %v1666 = vld [vmem:[%s1652 + $0x34] sm:$0xf]
      %v1667 = vld [vmem:[%s1652 + $0x38] sm:$0xf]
      %v1668 = vld [vmem:[%s1652 + $0x3c] sm:$0xf]
      %v1669 = vld [vmem:[%s1652 + $0x40] sm:$0xf]
      %v1670 = vld [vmem:[%s1652 + $0x44] sm:$0xf]
      %v1671 = vld [vmem:[%s1652 + $0x48] sm:$0xf]
      %v1672 = vld [vmem:[%s1652 + $0x4c] sm:$0xf]
      %v1673 = vld [vmem:[%s1652 + $0x50] sm:$0xf]
      %v1674 = vld [vmem:[%s1652 + $0x54] sm:$0xf]
      %v1675 = vld [vmem:[%s1652 + $0x58] sm:$0xf]
      %v1676 = vld [vmem:[%s1652 + $0x5c] sm:$0xf]
      %v1677 = vld [vmem:[%s1652 + $0x60] sm:$0xf]
      %v1678 = vld [vmem:[%s1652 + $0x64] sm:$0xf]
      %v1679 = vld [vmem:[%s1652 + $0x68] sm:$0xf]
      %v1680 = vld [vmem:[%s1652 + $0x6c] sm:$0xf]
      %v1681 = vld [vmem:[%s1652 + $0x70] sm:$0xf]
      %v1682 = vld [vmem:[%s1652 + $0x74] sm:$0xf]
      %v1683 = vld [vmem:[%s1652 + $0x78] sm:$0xf]
      %v1684 = vld [vmem:[%s1652 + $0x7c] sm:$0xf]
      %v1685 = vld [vmem:[#allocation4] sm:$0xff]
      %v1686 = vld [vmem:[#allocation4 + $0x8] sm:$0xff]
      %v1687 = vld [vmem:[#allocation4 + $0x10] sm:$0xff]
      %v1688 = vld [vmem:[#allocation4 + $0x18] sm:$0xff]
      %v1689 = vld [vmem:[#allocation4 + $0x20] sm:$0xff]
      %v1690 = vld [vmem:[#allocation4 + $0x28] sm:$0xff]
      %v1691 = vld [vmem:[#allocation4 + $0x30] sm:$0xff]
      %v1692 = vld [vmem:[#allocation4 + $0x38] sm:$0xff]
      %v1693 = vld [vmem:[#allocation4 + $0x40] sm:$0xff]
      %v1694 = vld [vmem:[#allocation4 + $0x48] sm:$0xff]
      %v1695 = vld [vmem:[#allocation4 + $0x50] sm:$0xff]
      %v1696 = vld [vmem:[#allocation4 + $0x58] sm:$0xff]
      %v1697 = vld [vmem:[#allocation4 + $0x60] sm:$0xff]
      %v1698 = vld [vmem:[#allocation4 + $0x68] sm:$0xff]
      %v1699 = vld [vmem:[#allocation4 + $0x70] sm:$0xff]
      %v1700 = vld [vmem:[#allocation4 + $0x78] sm:$0xff]
      %v1701 = vld [vmem:[#allocation4 + $0x80] sm:$0xff]
      %v1702 = vld [vmem:[#allocation4 + $0x88] sm:$0xff]
      %v1703 = vld [vmem:[#allocation4 + $0x90] sm:$0xff]
      %v1704 = vld [vmem:[#allocation4 + $0x98] sm:$0xff]
      %v1705 = vld [vmem:[#allocation4 + $0xa0] sm:$0xff]
      %v1706 = vld [vmem:[#allocation4 + $0xa8] sm:$0xff]
      %v1707 = vld [vmem:[#allocation4 + $0xb0] sm:$0xff]
      %v1708 = vld [vmem:[#allocation4 + $0xb8] sm:$0xff]
      %v1709 = vld [vmem:[#allocation4 + $0xc0] sm:$0xff]
      %v1710 = vld [vmem:[#allocation4 + $0xc8] sm:$0xff]
      %v1711 = vld [vmem:[#allocation4 + $0xd0] sm:$0xff]
      %v1712 = vld [vmem:[#allocation4 + $0xd8] sm:$0xff]
      %v1713 = vld [vmem:[#allocation4 + $0xe0] sm:$0xff]
      %v1714 = vld [vmem:[#allocation4 + $0xe8] sm:$0xff]
      %v1715 = vld [vmem:[#allocation4 + $0xf0] sm:$0xff]
      %v1716 = vld [vmem:[#allocation4 + $0xf8] sm:$0xff]
      %s1717 = scalar_lea.vmem %s1, 24
      %v1718 = vld [vmem:[%s1717] sm:$0xf]
      %v1751 = vunpack.c.l.b16 %v1653
      %v1752 = vunpack.c.l.b16 %v1654
      %v1753 = vunpack.c.l.b16 %v1655
      %v1754 = vunpack.c.l.b16 %v1656
      %v1755 = vunpack.c.l.b16 %v1657
      %v1756 = vunpack.c.l.b16 %v1658
      %v1757 = vunpack.c.l.b16 %v1659
      %v1758 = vunpack.c.l.b16 %v1660
      %v1759 = vunpack.c.l.b16 %v1661
      %v1760 = vunpack.c.l.b16 %v1662
      %v1761 = vunpack.c.l.b16 %v1663
      %v1762 = vunpack.c.l.b16 %v1664
      %v1763 = vunpack.c.l.b16 %v1665
      %v1764 = vunpack.c.l.b16 %v1666
      %v1765 = vunpack.c.l.b16 %v1667
      %v1766 = vunpack.c.l.b16 %v1668
      %v1767 = vunpack.c.l.b16 %v1669
      %v1768 = vunpack.c.l.b16 %v1670
      %v1769 = vunpack.c.l.b16 %v1671
      %v1770 = vunpack.c.l.b16 %v1672
      %v1771 = vunpack.c.l.b16 %v1673
      %v1772 = vunpack.c.l.b16 %v1674
      %v1773 = vunpack.c.l.b16 %v1675
      %v1774 = vunpack.c.l.b16 %v1676
      %v1775 = vunpack.c.l.b16 %v1677
      %v1776 = vunpack.c.l.b16 %v1678
      %v1777 = vunpack.c.l.b16 %v1679
      %v1778 = vunpack.c.l.b16 %v1680
      %v1779 = vunpack.c.l.b16 %v1681
      %v1780 = vunpack.c.l.b16 %v1682
      %v1781 = vunpack.c.l.b16 %v1683
      %v1782 = vunpack.c.l.b16 %v1684
      %v1783 = vpack.c.b16 %v1752, %v1751
      %v1784 = vpack.c.b16 %v1754, %v1753
      %v1785 = vpack.c.b16 %v1756, %v1755
      %v1786 = vpack.c.b16 %v1758, %v1757
      %v1787 = vpack.c.b16 %v1760, %v1759
      %v1788 = vpack.c.b16 %v1762, %v1761
      %v1789 = vpack.c.b16 %v1764, %v1763
      %v1790 = vpack.c.b16 %v1766, %v1765
      %v1791 = vpack.c.b16 %v1768, %v1767
      %v1792 = vpack.c.b16 %v1770, %v1769
      %v1793 = vpack.c.b16 %v1772, %v1771
      %v1794 = vpack.c.b16 %v1774, %v1773
      %v1795 = vpack.c.b16 %v1776, %v1775
      %v1796 = vpack.c.b16 %v1778, %v1777
      %v1797 = vpack.c.b16 %v1780, %v1779
      %v1798 = vpack.c.b16 %v1782, %v1781
      %v1800 = vsel %vm951, %v1783, 0
      %v1803 = vsel %vm951, %v1784, 0
      %v1806 = vsel %vm951, %v1785, 0
      %v1809 = vsel %vm951, %v1786, 0
      %v1812 = vsel %vm951, %v1787, 0
      %v1815 = vsel %vm951, %v1788, 0
      %v1818 = vsel %vm951, %v1789, 0
      %v1821 = vsel %vm951, %v1790, 0
      %v1824 = vsel %vm951, %v1791, 0
      %v1827 = vsel %vm951, %v1792, 0
      %v1830 = vsel %vm951, %v1793, 0
      %v1833 = vsel %vm951, %v1794, 0
      %v1836 = vsel %vm951, %v1795, 0
      %v1839 = vsel %vm951, %v1796, 0
      %v1842 = vsel %vm951, %v1797, 0
      %v1845 = vsel %vm951, %v1798, 0
      %v1848 = vsel %vm1000, %v1718, 0
      %1850 = vmatprep.subr.bf16.mxu0 0
      %1851 = vmatpush1.bf16.msra.mxu0 0
      %1852 = vmatprep.subr.bf16.mxu0 0
      %1853 = vmatpush1.bf16.msra.mxu0 0
      %1854 = vmatprep.subr.bf16.mxu0 0
      %1855 = vmatpush1.bf16.msra.mxu0 0
      %1856 = vmatprep.subr.bf16.mxu0 0
      %1857 = vmatpush1.bf16.msra.mxu0 0
      %1858 = vmatprep.subr.bf16.mxu0 0
      %1859 = vmatpush1.bf16.msra.mxu0 0
      %1860 = vmatprep.subr.bf16.mxu0 0
      %1861 = vmatpush1.bf16.msra.mxu0 0
      %1862 = vmatprep.subr.bf16.mxu0 0
      %1863 = vmatpush1.bf16.msra.mxu0 0
      %1864 = vmatprep.subr.bf16.mxu0 0
      %1865 = vmatpush1.bf16.msra.mxu0 %v1848
      %1866 = vmatprep.subr.bf16.mxu0 0
      %1867 = vmatpush2.bf16.msra.mxu0 0
      %1868 = vmatprep.subr.bf16.mxu0 0
      %1869 = vmatpush2.bf16.msra.mxu0 0
      %1870 = vmatprep.subr.bf16.mxu0 0
      %1871 = vmatpush2.bf16.msra.mxu0 0
      %1872 = vmatprep.subr.bf16.mxu0 0
      %1873 = vmatpush2.bf16.msra.mxu0 0
      %1874 = vmatprep.subr.bf16.mxu0 0
      %1875 = vmatpush2.bf16.msra.mxu0 0
      %1876 = vmatprep.subr.bf16.mxu0 0
      %1877 = vmatpush2.bf16.msra.mxu0 0
      %1878 = vmatprep.subr.bf16.mxu0 0
      %1879 = vmatpush2.bf16.msra.mxu0 0
      %1880 = vmatprep.subr.bf16.mxu0 0
      %1881 = vmatpush2.bf16.msra.mxu0 0
      %1882 = vmatprep.mubr.bf16.mxu0 0
      %1883 = vmatmul.mubr.bf16.gmra.mxu0 %v1800
      %v1884 = vpop.f32.mrf.mxu0
      %v1885 = vadd.f32 0.0, %v1884
      %v1886 = vpop.f32.mrf.mxu0
      %v1887 = vpop.f32.mrf.mxu0
      %v1888 = vadd.f32 0.0, %v1887
      %v1889 = vpop.f32.mrf.mxu0
      %1890 = vmatprep.mubr.bf16.mxu0 0
      %1891 = vmatmul.mubr.bf16.gmra.mxu0 %v1803
      %v1892 = vpop.f32.mrf.mxu0
      %v1893 = vadd.f32 0.0, %v1892
      %v1894 = vpop.f32.mrf.mxu0
      %v1895 = vpop.f32.mrf.mxu0
      %v1896 = vadd.f32 0.0, %v1895
      %v1897 = vpop.f32.mrf.mxu0
      %1898 = vmatprep.mubr.bf16.mxu0 0
      %1899 = vmatmul.mubr.bf16.gmra.mxu0 %v1806
      %v1900 = vpop.f32.mrf.mxu0
      %v1901 = vadd.f32 0.0, %v1900
      %v1902 = vpop.f32.mrf.mxu0
      %v1903 = vpop.f32.mrf.mxu0
      %v1904 = vadd.f32 0.0, %v1903
      %v1905 = vpop.f32.mrf.mxu0
      %1906 = vmatprep.mubr.bf16.mxu0 0
      %1907 = vmatmul.mubr.bf16.gmra.mxu0 %v1809
      %v1908 = vpop.f32.mrf.mxu0
      %v1909 = vadd.f32 0.0, %v1908
      %v1910 = vpop.f32.mrf.mxu0
      %v1911 = vpop.f32.mrf.mxu0
      %v1912 = vadd.f32 0.0, %v1911
      %v1913 = vpop.f32.mrf.mxu0
      %1914 = vmatprep.mubr.bf16.mxu0 0
      %1915 = vmatmul.mubr.bf16.gmra.mxu0 %v1812
      %v1916 = vpop.f32.mrf.mxu0
      %v1917 = vadd.f32 0.0, %v1916
      %v1918 = vpop.f32.mrf.mxu0
      %v1919 = vpop.f32.mrf.mxu0
      %v1920 = vadd.f32 0.0, %v1919
      %v1921 = vpop.f32.mrf.mxu0
      %1922 = vmatprep.mubr.bf16.mxu0 0
      %1923 = vmatmul.mubr.bf16.gmra.mxu0 %v1815
      %v1924 = vpop.f32.mrf.mxu0
      %v1925 = vadd.f32 0.0, %v1924
      %v1926 = vpop.f32.mrf.mxu0
      %v1927 = vpop.f32.mrf.mxu0
      %v1928 = vadd.f32 0.0, %v1927
      %v1929 = vpop.f32.mrf.mxu0
      %1930 = vmatprep.mubr.bf16.mxu0 0
      %1931 = vmatmul.mubr.bf16.gmra.mxu0 %v1818
      %v1932 = vpop.f32.mrf.mxu0
      %v1933 = vadd.f32 0.0, %v1932
      %v1934 = vpop.f32.mrf.mxu0
      %v1935 = vpop.f32.mrf.mxu0
      %v1936 = vadd.f32 0.0, %v1935
      %v1937 = vpop.f32.mrf.mxu0
      %1938 = vmatprep.mubr.bf16.mxu0 0
      %1939 = vmatmul.mubr.bf16.gmra.mxu0 %v1821
      %v1940 = vpop.f32.mrf.mxu0
      %v1941 = vadd.f32 0.0, %v1940
      %v1942 = vpop.f32.mrf.mxu0
      %v1943 = vpop.f32.mrf.mxu0
      %v1944 = vadd.f32 0.0, %v1943
      %v1945 = vpop.f32.mrf.mxu0
      %1946 = vmatprep.mubr.bf16.mxu0 0
      %1947 = vmatmul.mubr.bf16.gmra.mxu0 %v1824
      %v1948 = vpop.f32.mrf.mxu0
      %v1949 = vadd.f32 0.0, %v1948
      %v1950 = vpop.f32.mrf.mxu0
      %v1951 = vpop.f32.mrf.mxu0
      %v1952 = vadd.f32 0.0, %v1951
      %v1953 = vpop.f32.mrf.mxu0
      %1954 = vmatprep.mubr.bf16.mxu0 0
      %1955 = vmatmul.mubr.bf16.gmra.mxu0 %v1827
      %v1956 = vpop.f32.mrf.mxu0
      %v1957 = vadd.f32 0.0, %v1956
      %v1958 = vpop.f32.mrf.mxu0
      %v1959 = vpop.f32.mrf.mxu0
      %v1960 = vadd.f32 0.0, %v1959
      %v1961 = vpop.f32.mrf.mxu0
      %1962 = vmatprep.mubr.bf16.mxu0 0
      %1963 = vmatmul.mubr.bf16.gmra.mxu0 %v1830
      %v1964 = vpop.f32.mrf.mxu0
      %v1965 = vadd.f32 0.0, %v1964
      %v1966 = vpop.f32.mrf.mxu0
      %v1967 = vpop.f32.mrf.mxu0
      %v1968 = vadd.f32 0.0, %v1967
      %v1969 = vpop.f32.mrf.mxu0
      %1970 = vmatprep.mubr.bf16.mxu0 0
      %1971 = vmatmul.mubr.bf16.gmra.mxu0 %v1833
      %v1972 = vpop.f32.mrf.mxu0
      %v1973 = vadd.f32 0.0, %v1972
      %v1974 = vpop.f32.mrf.mxu0
      %v1975 = vpop.f32.mrf.mxu0
      %v1976 = vadd.f32 0.0, %v1975
      %v1977 = vpop.f32.mrf.mxu0
      %1978 = vmatprep.mubr.bf16.mxu0 0
      %1979 = vmatmul.mubr.bf16.gmra.mxu0 %v1836
      %v1980 = vpop.f32.mrf.mxu0
      %v1981 = vadd.f32 0.0, %v1980
      %v1982 = vpop.f32.mrf.mxu0
      %v1983 = vpop.f32.mrf.mxu0
      %v1984 = vadd.f32 0.0, %v1983
      %v1985 = vpop.f32.mrf.mxu0
      %1986 = vmatprep.mubr.bf16.mxu0 0
      %1987 = vmatmul.mubr.bf16.gmra.mxu0 %v1839
      %v1988 = vpop.f32.mrf.mxu0
      %v1989 = vadd.f32 0.0, %v1988
      %v1990 = vpop.f32.mrf.mxu0
      %v1991 = vpop.f32.mrf.mxu0
      %v1992 = vadd.f32 0.0, %v1991
      %v1993 = vpop.f32.mrf.mxu0
      %1994 = vmatprep.mubr.bf16.mxu0 0
      %1995 = vmatmul.mubr.bf16.gmra.mxu0 %v1842
      %v1996 = vpop.f32.mrf.mxu0
      %v1997 = vadd.f32 0.0, %v1996
      %v1998 = vpop.f32.mrf.mxu0
      %v1999 = vpop.f32.mrf.mxu0
      %v2000 = vadd.f32 0.0, %v1999
      %v2001 = vpop.f32.mrf.mxu0
      %2002 = vmatprep.mubr.bf16.mxu0 0
      %2003 = vmatmul.mubr.bf16.gmra.mxu0 %v1845
      %v2004 = vpop.f32.mrf.mxu0
      %v2005 = vadd.f32 0.0, %v2004
      %v2006 = vpop.f32.mrf.mxu0
      %v2007 = vpop.f32.mrf.mxu0
      %v2008 = vadd.f32 0.0, %v2007
      %v2009 = vpop.f32.mrf.mxu0
      %2010 = vdwg.mxu0
      %v2011 = vadd.f32 %v1685, %v1885
      %v2012 = vadd.f32 %v1686, %v1888
      %v2013 = vadd.f32 %v1687, %v1893
      %v2014 = vadd.f32 %v1688, %v1896
      %v2015 = vadd.f32 %v1689, %v1901
      %v2016 = vadd.f32 %v1690, %v1904
      %v2017 = vadd.f32 %v1691, %v1909
      %v2018 = vadd.f32 %v1692, %v1912
      %v2019 = vadd.f32 %v1693, %v1917
      %v2020 = vadd.f32 %v1694, %v1920
      %v2021 = vadd.f32 %v1695, %v1925
      %v2022 = vadd.f32 %v1696, %v1928
      %v2023 = vadd.f32 %v1697, %v1933
      %v2024 = vadd.f32 %v1698, %v1936
      %v2025 = vadd.f32 %v1699, %v1941
      %v2026 = vadd.f32 %v1700, %v1944
      %v2027 = vadd.f32 %v1701, %v1949
      %v2028 = vadd.f32 %v1702, %v1952
      %v2029 = vadd.f32 %v1703, %v1957
      %v2030 = vadd.f32 %v1704, %v1960
      %v2031 = vadd.f32 %v1705, %v1965
      %v2032 = vadd.f32 %v1706, %v1968
      %v2033 = vadd.f32 %v1707, %v1973
      %v2034 = vadd.f32 %v1708, %v1976
      %v2035 = vadd.f32 %v1709, %v1981
      %v2036 = vadd.f32 %v1710, %v1984
      %v2037 = vadd.f32 %v1711, %v1989
      %v2038 = vadd.f32 %v1712, %v1992
      %v2039 = vadd.f32 %v1713, %v1997
      %v2040 = vadd.f32 %v1714, %v2000
      %v2041 = vadd.f32 %v1715, %v2005
      %v2042 = vadd.f32 %v1716, %v2008
      %2043 = vst.msk [vmem:[#allocation4] sm:$0xff] %vm701, %v2011
      %2044 = vst.msk [vmem:[#allocation4 + $0x8] sm:$0xff] %vm701, %v2012
      %2045 = vst.msk [vmem:[#allocation4 + $0x10] sm:$0xff] %vm701, %v2013
      %2046 = vst.msk [vmem:[#allocation4 + $0x18] sm:$0xff] %vm701, %v2014
      %2047 = vst.msk [vmem:[#allocation4 + $0x20] sm:$0xff] %vm701, %v2015
      %2048 = vst.msk [vmem:[#allocation4 + $0x28] sm:$0xff] %vm701, %v2016
      %2049 = vst.msk [vmem:[#allocation4 + $0x30] sm:$0xff] %vm701, %v2017
      %2050 = vst.msk [vmem:[#allocation4 + $0x38] sm:$0xff] %vm701, %v2018
      %2051 = vst.msk [vmem:[#allocation4 + $0x40] sm:$0xff] %vm701, %v2019
      %2052 = vst.msk [vmem:[#allocation4 + $0x48] sm:$0xff] %vm701, %v2020
      %2053 = vst.msk [vmem:[#allocation4 + $0x50] sm:$0xff] %vm701, %v2021
      %2054 = vst.msk [vmem:[#allocation4 + $0x58] sm:$0xff] %vm701, %v2022
      %2055 = vst.msk [vmem:[#allocation4 + $0x60] sm:$0xff] %vm701, %v2023
      %2056 = vst.msk [vmem:[#allocation4 + $0x68] sm:$0xff] %vm701, %v2024
      %2057 = vst.msk [vmem:[#allocation4 + $0x70] sm:$0xff] %vm701, %v2025
      %2058 = vst.msk [vmem:[#allocation4 + $0x78] sm:$0xff] %vm701, %v2026
      %2059 = vst.msk [vmem:[#allocation4 + $0x80] sm:$0xff] %vm701, %v2027
      %2060 = vst.msk [vmem:[#allocation4 + $0x88] sm:$0xff] %vm701, %v2028
      %2061 = vst.msk [vmem:[#allocation4 + $0x90] sm:$0xff] %vm701, %v2029
      %2062 = vst.msk [vmem:[#allocation4 + $0x98] sm:$0xff] %vm701, %v2030
      %2063 = vst.msk [vmem:[#allocation4 + $0xa0] sm:$0xff] %vm701, %v2031
      %2064 = vst.msk [vmem:[#allocation4 + $0xa8] sm:$0xff] %vm701, %v2032
      %2065 = vst.msk [vmem:[#allocation4 + $0xb0] sm:$0xff] %vm701, %v2033
      %2066 = vst.msk [vmem:[#allocation4 + $0xb8] sm:$0xff] %vm701, %v2034
      %2067 = vst.msk [vmem:[#allocation4 + $0xc0] sm:$0xff] %vm701, %v2035
      %2068 = vst.msk [vmem:[#allocation4 + $0xc8] sm:$0xff] %vm701, %v2036
      %2069 = vst.msk [vmem:[#allocation4 + $0xd0] sm:$0xff] %vm701, %v2037
      %2070 = vst.msk [vmem:[#allocation4 + $0xd8] sm:$0xff] %vm701, %v2038
      %2071 = vst.msk [vmem:[#allocation4 + $0xe0] sm:$0xff] %vm701, %v2039
      %2072 = vst.msk [vmem:[#allocation4 + $0xe8] sm:$0xff] %vm701, %v2040
      %2073 = vst.msk [vmem:[#allocation4 + $0xf0] sm:$0xff] %vm701, %v2041
      %2074 = vst.msk [vmem:[#allocation4 + $0xf8] sm:$0xff] %vm701, %v2042
      %v2075 = vld [vmem:[#allocation2] sm:$0xf]
      %v2076 = vld [vmem:[#allocation2 + $0x4] sm:$0xf]
      %v2077 = vld [vmem:[#allocation2 + $0x8] sm:$0x1]
      %v2078 = vld [vmem:[#allocation2 + $0xc] sm:$0xf]
      %v2079 = vld [vmem:[#allocation2 + $0x10] sm:$0xf]
      %v2080 = vld [vmem:[#allocation2 + $0x14] sm:$0x1]
      %v2081 = vld [vmem:[#allocation2 + $0x18] sm:$0xf]
      %v2082 = vld [vmem:[#allocation2 + $0x1c] sm:$0xf]
      %v2083 = vld [vmem:[#allocation2 + $0x20] sm:$0x1]
      %v2084 = vld [vmem:[#allocation2 + $0x24] sm:$0xf]
      %v2085 = vld [vmem:[#allocation2 + $0x28] sm:$0xf]
      %v2086 = vld [vmem:[#allocation2 + $0x2c] sm:$0x1]
      %v2087 = vld [vmem:[#allocation2 + $0x30] sm:$0xf]
      %v2088 = vld [vmem:[#allocation2 + $0x34] sm:$0xf]
      %v2089 = vld [vmem:[#allocation2 + $0x38] sm:$0x1]
      %v2090 = vld [vmem:[#allocation2 + $0x3c] sm:$0xf]
      %v2091 = vld [vmem:[#allocation2 + $0x40] sm:$0xf]
      %v2092 = vld [vmem:[#allocation2 + $0x44] sm:$0x1]
      %v2093 = vld [vmem:[#allocation2 + $0x48] sm:$0xf]
      %v2094 = vld [vmem:[#allocation2 + $0x4c] sm:$0xf]
      %v2095 = vld [vmem:[#allocation2 + $0x50] sm:$0x1]
      %v2096 = vld [vmem:[#allocation2 + $0x54] sm:$0xf]
      %v2097 = vld [vmem:[#allocation2 + $0x58] sm:$0xf]
      %v2098 = vld [vmem:[#allocation2 + $0x5c] sm:$0x1]
      %v2099 = vld [vmem:[#allocation2 + $0x60] sm:$0xf]
      %v2100 = vld [vmem:[#allocation2 + $0x64] sm:$0xf]
      %v2101 = vld [vmem:[#allocation2 + $0x68] sm:$0x1]
      %v2102 = vld [vmem:[#allocation2 + $0x6c] sm:$0xf]
      %v2103 = vld [vmem:[#allocation2 + $0x70] sm:$0xf]
      %v2104 = vld [vmem:[#allocation2 + $0x74] sm:$0x1]
      %v2105 = vld [vmem:[#allocation2 + $0x78] sm:$0xf]
      %v2106 = vld [vmem:[#allocation2 + $0x7c] sm:$0xf]
      %v2107 = vld [vmem:[#allocation2 + $0x80] sm:$0x1]
      %v2108 = vld [vmem:[#allocation2 + $0x84] sm:$0xf]
      %v2109 = vld [vmem:[#allocation2 + $0x88] sm:$0xf]
      %v2110 = vld [vmem:[#allocation2 + $0x8c] sm:$0x1]
      %v2111 = vld [vmem:[#allocation2 + $0x90] sm:$0xf]
      %v2112 = vld [vmem:[#allocation2 + $0x94] sm:$0xf]
      %v2113 = vld [vmem:[#allocation2 + $0x98] sm:$0x1]
      %v2114 = vld [vmem:[#allocation2 + $0x9c] sm:$0xf]
      %v2115 = vld [vmem:[#allocation2 + $0xa0] sm:$0xf]
      %v2116 = vld [vmem:[#allocation2 + $0xa4] sm:$0x1]
      %v2117 = vld [vmem:[#allocation2 + $0xa8] sm:$0xf]
      %v2118 = vld [vmem:[#allocation2 + $0xac] sm:$0xf]
      %v2119 = vld [vmem:[#allocation2 + $0xb0] sm:$0x1]
      %v2120 = vld [vmem:[#allocation2 + $0xb4] sm:$0xf]
      %v2121 = vld [vmem:[#allocation2 + $0xb8] sm:$0xf]
      %v2122 = vld [vmem:[#allocation2 + $0xbc] sm:$0x1]
      %v2123 = vld [vmem:[#allocation2 + $0xc0] sm:$0xf]
      %v2124 = vld [vmem:[#allocation2 + $0xc4] sm:$0xf]
      %v2125 = vld [vmem:[#allocation2 + $0xc8] sm:$0x1]
      %v2126 = vld [vmem:[#allocation2 + $0xcc] sm:$0xf]
      %v2127 = vld [vmem:[#allocation2 + $0xd0] sm:$0xf]
      %v2128 = vld [vmem:[#allocation2 + $0xd4] sm:$0x1]
      %vm2129 = vsmask.f32 3328
      %vm2130 = vsmask.f32 7440
      %vm2131 = vmor %vm2129, %vm2130
      %v2133 = vshrl.u32 %v2075, 16
      %v2135 = vrot.slane %v2133, 4
      %v2136 = vshll.u32 %v2075, 16
      %v2138 = vrot.slane %v2136, 5
      %v2139 = vor.u32 %v2135, %v2138
      %v2140 = vrot.slane %v2139, 4
      %v2142 = vshll.u32 %v2076, 16
      %v2144 = vrot.slane %v2142, 5
      %v2145 = vsel %vm2131, %v2140, %v2144
      %v2146 = vshrl.u32 %v2076, 16
      %v2148 = vrot.slane %v2146, 4
      %v2149 = vor.u32 %v2148, %v2144
      %v2150 = vrot.slane %v2149, 4
      %v2152 = vshll.u32 %v2077, 16
      %v2154 = vrot.slane %v2152, 5
      %v2155 = vsel %vm2131, %v2150, %v2154
      %v2157 = vshrl.u32 %v2078, 16
      %v2159 = vrot.slane %v2157, 4
      %v2160 = vshll.u32 %v2078, 16
      %v2162 = vrot.slane %v2160, 5
      %v2163 = vor.u32 %v2159, %v2162
      %v2164 = vrot.slane %v2163, 4
      %v2166 = vshll.u32 %v2079, 16
      %v2168 = vrot.slane %v2166, 5
      %v2169 = vsel %vm2131, %v2164, %v2168
      %v2170 = vshrl.u32 %v2079, 16
      %v2172 = vrot.slane %v2170, 4
      %v2173 = vor.u32 %v2172, %v2168
      %v2174 = vrot.slane %v2173, 4
      %v2176 = vshll.u32 %v2080, 16
      %v2178 = vrot.slane %v2176, 5
      %v2179 = vsel %vm2131, %v2174, %v2178
      %v2181 = vshrl.u32 %v2081, 16
      %v2183 = vrot.slane %v2181, 4
      %v2184 = vshll.u32 %v2081, 16
      %v2186 = vrot.slane %v2184, 5
      %v2187 = vor.u32 %v2183, %v2186
      %v2188 = vrot.slane %v2187, 4
      %v2190 = vshll.u32 %v2082, 16
      %v2192 = vrot.slane %v2190, 5
      %v2193 = vsel %vm2131, %v2188, %v2192
      %v2194 = vshrl.u32 %v2082, 16
      %v2196 = vrot.slane %v2194, 4
      %v2197 = vor.u32 %v2196, %v2192
      %v2198 = vrot.slane %v2197, 4
      %v2200 = vshll.u32 %v2083, 16
      %v2202 = vrot.slane %v2200, 5
      %v2203 = vsel %vm2131, %v2198, %v2202
      %v2205 = vshrl.u32 %v2084, 16
      %v2207 = vrot.slane %v2205, 4
      %v2208 = vshll.u32 %v2084, 16
      %v2210 = vrot.slane %v2208, 5
      %v2211 = vor.u32 %v2207, %v2210
      %v2212 = vrot.slane %v2211, 4
      %v2214 = vshll.u32 %v2085, 16
      %v2216 = vrot.slane %v2214, 5
      %v2217 = vsel %vm2131, %v2212, %v2216
      %v2218 = vshrl.u32 %v2085, 16
      %v2220 = vrot.slane %v2218, 4
      %v2221 = vor.u32 %v2220, %v2216
      %v2222 = vrot.slane %v2221, 4
      %v2224 = vshll.u32 %v2086, 16
      %v2226 = vrot.slane %v2224, 5
      %v2227 = vsel %vm2131, %v2222, %v2226
      %v2229 = vshrl.u32 %v2087, 16
      %v2231 = vrot.slane %v2229, 4
      %v2232 = vshll.u32 %v2087, 16
      %v2234 = vrot.slane %v2232, 5
      %v2235 = vor.u32 %v2231, %v2234
      %v2236 = vrot.slane %v2235, 4
      %v2238 = vshll.u32 %v2088, 16
      %v2240 = vrot.slane %v2238, 5
      %v2241 = vsel %vm2131, %v2236, %v2240
      %v2242 = vshrl.u32 %v2088, 16
      %v2244 = vrot.slane %v2242, 4
      %v2245 = vor.u32 %v2244, %v2240
      %v2246 = vrot.slane %v2245, 4
      %v2248 = vshll.u32 %v2089, 16
      %v2250 = vrot.slane %v2248, 5
      %v2251 = vsel %vm2131, %v2246, %v2250
      %v2253 = vshrl.u32 %v2090, 16
      %v2255 = vrot.slane %v2253, 4
      %v2256 = vshll.u32 %v2090, 16
      %v2258 = vrot.slane %v2256, 5
      %v2259 = vor.u32 %v2255, %v2258
      %v2260 = vrot.slane %v2259, 4
      %v2262 = vshll.u32 %v2091, 16
      %v2264 = vrot.slane %v2262, 5
      %v2265 = vsel %vm2131, %v2260, %v2264
      %v2266 = vshrl.u32 %v2091, 16
      %v2268 = vrot.slane %v2266, 4
      %v2269 = vor.u32 %v2268, %v2264
      %v2270 = vrot.slane %v2269, 4
      %v2272 = vshll.u32 %v2092, 16
      %v2274 = vrot.slane %v2272, 5
      %v2275 = vsel %vm2131, %v2270, %v2274
      %v2277 = vshrl.u32 %v2093, 16
      %v2279 = vrot.slane %v2277, 4
      %v2280 = vshll.u32 %v2093, 16
      %v2282 = vrot.slane %v2280, 5
      %v2283 = vor.u32 %v2279, %v2282
      %v2284 = vrot.slane %v2283, 4
      %v2286 = vshll.u32 %v2094, 16
      %v2288 = vrot.slane %v2286, 5
      %v2289 = vsel %vm2131, %v2284, %v2288
      %v2290 = vshrl.u32 %v2094, 16
      %v2292 = vrot.slane %v2290, 4
      %v2293 = vor.u32 %v2292, %v2288
      %v2294 = vrot.slane %v2293, 4
      %v2296 = vshll.u32 %v2095, 16
      %v2298 = vrot.slane %v2296, 5
      %v2299 = vsel %vm2131, %v2294, %v2298
      %v2301 = vshrl.u32 %v2096, 16
      %v2303 = vrot.slane %v2301, 4
      %v2304 = vshll.u32 %v2096, 16
      %v2306 = vrot.slane %v2304, 5
      %v2307 = vor.u32 %v2303, %v2306
      %v2308 = vrot.slane %v2307, 4
      %v2310 = vshll.u32 %v2097, 16
      %v2312 = vrot.slane %v2310, 5
      %v2313 = vsel %vm2131, %v2308, %v2312
      %v2314 = vshrl.u32 %v2097, 16
      %v2316 = vrot.slane %v2314, 4
      %v2317 = vor.u32 %v2316, %v2312
      %v2318 = vrot.slane %v2317, 4
      %v2320 = vshll.u32 %v2098, 16
      %v2322 = vrot.slane %v2320, 5
      %v2323 = vsel %vm2131, %v2318, %v2322
      %v2325 = vshrl.u32 %v2099, 16
      %v2327 = vrot.slane %v2325, 4
      %v2328 = vshll.u32 %v2099, 16
      %v2330 = vrot.slane %v2328, 5
      %v2331 = vor.u32 %v2327, %v2330
      %v2332 = vrot.slane %v2331, 4
      %v2334 = vshll.u32 %v2100, 16
      %v2336 = vrot.slane %v2334, 5
      %v2337 = vsel %vm2131, %v2332, %v2336
      %v2338 = vshrl.u32 %v2100, 16
      %v2340 = vrot.slane %v2338, 4
      %v2341 = vor.u32 %v2340, %v2336
      %v2342 = vrot.slane %v2341, 4
      %v2344 = vshll.u32 %v2101, 16
      %v2346 = vrot.slane %v2344, 5
      %v2347 = vsel %vm2131, %v2342, %v2346
      %v2349 = vshrl.u32 %v2102, 16
      %v2351 = vrot.slane %v2349, 4
      %v2352 = vshll.u32 %v2102, 16
      %v2354 = vrot.slane %v2352, 5
      %v2355 = vor.u32 %v2351, %v2354
      %v2356 = vrot.slane %v2355, 4
      %v2358 = vshll.u32 %v2103, 16
      %v2360 = vrot.slane %v2358, 5
      %v2361 = vsel %vm2131, %v2356, %v2360
      %v2362 = vshrl.u32 %v2103, 16
      %v2364 = vrot.slane %v2362, 4
      %v2365 = vor.u32 %v2364, %v2360
      %v2366 = vrot.slane %v2365, 4
      %v2368 = vshll.u32 %v2104, 16
      %v2370 = vrot.slane %v2368, 5
      %v2371 = vsel %vm2131, %v2366, %v2370
      %v2373 = vshrl.u32 %v2105, 16
      %v2375 = vrot.slane %v2373, 4
      %v2376 = vshll.u32 %v2105, 16
      %v2378 = vrot.slane %v2376, 5
      %v2379 = vor.u32 %v2375, %v2378
      %v2380 = vrot.slane %v2379, 4
      %v2382 = vshll.u32 %v2106, 16
      %v2384 = vrot.slane %v2382, 5
      %v2385 = vsel %vm2131, %v2380, %v2384
      %v2386 = vshrl.u32 %v2106, 16
      %v2388 = vrot.slane %v2386, 4
      %v2389 = vor.u32 %v2388, %v2384
      %v2390 = vrot.slane %v2389, 4
      %v2392 = vshll.u32 %v2107, 16
      %v2394 = vrot.slane %v2392, 5
      %v2395 = vsel %vm2131, %v2390, %v2394
      %v2397 = vshrl.u32 %v2108, 16
      %v2399 = vrot.slane %v2397, 4
      %v2400 = vshll.u32 %v2108, 16
      %v2402 = vrot.slane %v2400, 5
      %v2403 = vor.u32 %v2399, %v2402
      %v2404 = vrot.slane %v2403, 4
      %v2406 = vshll.u32 %v2109, 16
      %v2408 = vrot.slane %v2406, 5
      %v2409 = vsel %vm2131, %v2404, %v2408
      %v2410 = vshrl.u32 %v2109, 16
      %v2412 = vrot.slane %v2410, 4
      %v2413 = vor.u32 %v2412, %v2408
      %v2414 = vrot.slane %v2413, 4
      %v2416 = vshll.u32 %v2110, 16
      %v2418 = vrot.slane %v2416, 5
      %v2419 = vsel %vm2131, %v2414, %v2418
      %v2421 = vshrl.u32 %v2111, 16
      %v2423 = vrot.slane %v2421, 4
      %v2424 = vshll.u32 %v2111, 16
      %v2426 = vrot.slane %v2424, 5
      %v2427 = vor.u32 %v2423, %v2426
      %v2428 = vrot.slane %v2427, 4
      %v2430 = vshll.u32 %v2112, 16
      %v2432 = vrot.slane %v2430, 5
      %v2433 = vsel %vm2131, %v2428, %v2432
      %v2434 = vshrl.u32 %v2112, 16
      %v2436 = vrot.slane %v2434, 4
      %v2437 = vor.u32 %v2436, %v2432
      %v2438 = vrot.slane %v2437, 4
      %v2440 = vshll.u32 %v2113, 16
      %v2442 = vrot.slane %v2440, 5
      %v2443 = vsel %vm2131, %v2438, %v2442
      %v2445 = vshrl.u32 %v2114, 16
      %v2447 = vrot.slane %v2445, 4
      %v2448 = vshll.u32 %v2114, 16
      %v2450 = vrot.slane %v2448, 5
      %v2451 = vor.u32 %v2447, %v2450
      %v2452 = vrot.slane %v2451, 4
      %v2454 = vshll.u32 %v2115, 16
      %v2456 = vrot.slane %v2454, 5
      %v2457 = vsel %vm2131, %v2452, %v2456
      %v2458 = vshrl.u32 %v2115, 16
      %v2460 = vrot.slane %v2458, 4
      %v2461 = vor.u32 %v2460, %v2456
      %v2462 = vrot.slane %v2461, 4
      %v2464 = vshll.u32 %v2116, 16
      %v2466 = vrot.slane %v2464, 5
      %v2467 = vsel %vm2131, %v2462, %v2466
      %v2469 = vshrl.u32 %v2117, 16
      %v2471 = vrot.slane %v2469, 4
      %v2472 = vshll.u32 %v2117, 16
      %v2474 = vrot.slane %v2472, 5
      %v2475 = vor.u32 %v2471, %v2474
      %v2476 = vrot.slane %v2475, 4
      %v2478 = vshll.u32 %v2118, 16
      %v2480 = vrot.slane %v2478, 5
      %v2481 = vsel %vm2131, %v2476, %v2480
      %v2482 = vshrl.u32 %v2118, 16
      %v2484 = vrot.slane %v2482, 4
      %v2485 = vor.u32 %v2484, %v2480
      %v2486 = vrot.slane %v2485, 4
      %v2488 = vshll.u32 %v2119, 16
      %v2490 = vrot.slane %v2488, 5
      %v2491 = vsel %vm2131, %v2486, %v2490
      %v2493 = vshrl.u32 %v2120, 16
      %v2495 = vrot.slane %v2493, 4
      %v2496 = vshll.u32 %v2120, 16
      %v2498 = vrot.slane %v2496, 5
      %v2499 = vor.u32 %v2495, %v2498
      %v2500 = vrot.slane %v2499, 4
      %v2502 = vshll.u32 %v2121, 16
      %v2504 = vrot.slane %v2502, 5
      %v2505 = vsel %vm2131, %v2500, %v2504
      %v2506 = vshrl.u32 %v2121, 16
      %v2508 = vrot.slane %v2506, 4
      %v2509 = vor.u32 %v2508, %v2504
      %v2510 = vrot.slane %v2509, 4
      %v2512 = vshll.u32 %v2122, 16
      %v2514 = vrot.slane %v2512, 5
      %v2515 = vsel %vm2131, %v2510, %v2514
      %v2517 = vshrl.u32 %v2123, 16
      %v2519 = vrot.slane %v2517, 4
      %v2520 = vshll.u32 %v2123, 16
      %v2522 = vrot.slane %v2520, 5
      %v2523 = vor.u32 %v2519, %v2522
      %v2524 = vrot.slane %v2523, 4
      %v2526 = vshll.u32 %v2124, 16
      %v2528 = vrot.slane %v2526, 5
      %v2529 = vsel %vm2131, %v2524, %v2528
      %v2530 = vshrl.u32 %v2124, 16
      %v2532 = vrot.slane %v2530, 4
      %v2533 = vor.u32 %v2532, %v2528
      %v2534 = vrot.slane %v2533, 4
      %v2536 = vshll.u32 %v2125, 16
      %v2538 = vrot.slane %v2536, 5
      %v2539 = vsel %vm2131, %v2534, %v2538
      %v2541 = vshrl.u32 %v2126, 16
      %v2543 = vrot.slane %v2541, 4
      %v2544 = vshll.u32 %v2126, 16
      %v2546 = vrot.slane %v2544, 5
      %v2547 = vor.u32 %v2543, %v2546
      %v2548 = vrot.slane %v2547, 4
      %v2550 = vshll.u32 %v2127, 16
      %v2552 = vrot.slane %v2550, 5
      %v2553 = vsel %vm2131, %v2548, %v2552
      %v2554 = vshrl.u32 %v2127, 16
      %v2556 = vrot.slane %v2554, 4
      %v2557 = vor.u32 %v2556, %v2552
      %v2558 = vrot.slane %v2557, 4
      %v2560 = vshll.u32 %v2128, 16
      %v2562 = vrot.slane %v2560, 5
      %v2563 = vsel %vm2131, %v2558, %v2562
      %2600 = vst.msk [vmem:[#allocation3] sm:$0xf] %vm172, %v2145
      %2601 = vst.msk [vmem:[#allocation3 + $0x4] sm:$0xf] %vm172, %v2155
      %2602 = vst.msk [vmem:[#allocation3 + $0x8] sm:$0xf] %vm172, %v2169
      %2603 = vst.msk [vmem:[#allocation3 + $0xc] sm:$0xf] %vm172, %v2179
      %2604 = vst.msk [vmem:[#allocation3 + $0x10] sm:$0xf] %vm172, %v2193
      %2605 = vst.msk [vmem:[#allocation3 + $0x14] sm:$0xf] %vm172, %v2203
      %2606 = vst.msk [vmem:[#allocation3 + $0x18] sm:$0xf] %vm172, %v2217
      %2607 = vst.msk [vmem:[#allocation3 + $0x1c] sm:$0xf] %vm172, %v2227
      %2608 = vst.msk [vmem:[#allocation3 + $0x20] sm:$0xf] %vm172, %v2241
      %2609 = vst.msk [vmem:[#allocation3 + $0x24] sm:$0xf] %vm172, %v2251
      %2610 = vst.msk [vmem:[#allocation3 + $0x28] sm:$0xf] %vm172, %v2265
      %2611 = vst.msk [vmem:[#allocation3 + $0x2c] sm:$0xf] %vm172, %v2275
      %2612 = vst.msk [vmem:[#allocation3 + $0x30] sm:$0xf] %vm172, %v2289
      %2613 = vst.msk [vmem:[#allocation3 + $0x34] sm:$0xf] %vm172, %v2299
      %2614 = vst.msk [vmem:[#allocation3 + $0x38] sm:$0xf] %vm172, %v2313
      %2615 = vst.msk [vmem:[#allocation3 + $0x3c] sm:$0xf] %vm172, %v2323
      %2616 = vst.msk [vmem:[#allocation3 + $0x40] sm:$0xf] %vm172, %v2337
      %2617 = vst.msk [vmem:[#allocation3 + $0x44] sm:$0xf] %vm172, %v2347
      %2618 = vst.msk [vmem:[#allocation3 + $0x48] sm:$0xf] %vm172, %v2361
      %2619 = vst.msk [vmem:[#allocation3 + $0x4c] sm:$0xf] %vm172, %v2371
      %2620 = vst.msk [vmem:[#allocation3 + $0x50] sm:$0xf] %vm172, %v2385
      %2621 = vst.msk [vmem:[#allocation3 + $0x54] sm:$0xf] %vm172, %v2395
      %2622 = vst.msk [vmem:[#allocation3 + $0x58] sm:$0xf] %vm172, %v2409
      %2623 = vst.msk [vmem:[#allocation3 + $0x5c] sm:$0xf] %vm172, %v2419
      %2624 = vst.msk [vmem:[#allocation3 + $0x60] sm:$0xf] %vm172, %v2433
      %2625 = vst.msk [vmem:[#allocation3 + $0x64] sm:$0xf] %vm172, %v2443
      %2626 = vst.msk [vmem:[#allocation3 + $0x68] sm:$0xf] %vm172, %v2457
      %2627 = vst.msk [vmem:[#allocation3 + $0x6c] sm:$0xf] %vm172, %v2467
      %2628 = vst.msk [vmem:[#allocation3 + $0x70] sm:$0xf] %vm172, %v2481
      %2629 = vst.msk [vmem:[#allocation3 + $0x74] sm:$0xf] %vm172, %v2491
      %2630 = vst.msk [vmem:[#allocation3 + $0x78] sm:$0xf] %vm172, %v2505
      %2631 = vst.msk [vmem:[#allocation3 + $0x7c] sm:$0xf] %vm172, %v2515
      %2632 = vst.msk [vmem:[#allocation3 + $0x80] sm:$0xf] %vm172, %v2529
      %2633 = vst.msk [vmem:[#allocation3 + $0x84] sm:$0xf] %vm172, %v2539
      %2634 = vst.msk [vmem:[#allocation3 + $0x88] sm:$0xf] %vm172, %v2553
      %2635 = vst.msk [vmem:[#allocation3 + $0x8c] sm:$0xf] %vm172, %v2563
      %v2636 = vld [vmem:[#allocation3] sm:$0xf]
      %v2637 = vld [vmem:[#allocation3 + $0x4] sm:$0xf]
      %v2638 = vld [vmem:[#allocation3 + $0x8] sm:$0xf]
      %v2639 = vld [vmem:[#allocation3 + $0xc] sm:$0xf]
      %v2640 = vld [vmem:[#allocation3 + $0x10] sm:$0xf]
      %v2641 = vld [vmem:[#allocation3 + $0x14] sm:$0xf]
      %v2642 = vld [vmem:[#allocation3 + $0x18] sm:$0xf]
      %v2643 = vld [vmem:[#allocation3 + $0x1c] sm:$0xf]
      %v2644 = vld [vmem:[#allocation3 + $0x20] sm:$0xf]
      %v2645 = vld [vmem:[#allocation3 + $0x24] sm:$0xf]
      %v2646 = vld [vmem:[#allocation3 + $0x28] sm:$0xf]
      %v2647 = vld [vmem:[#allocation3 + $0x2c] sm:$0xf]
      %v2648 = vld [vmem:[#allocation3 + $0x30] sm:$0xf]
      %v2649 = vld [vmem:[#allocation3 + $0x34] sm:$0xf]
      %v2650 = vld [vmem:[#allocation3 + $0x38] sm:$0xf]
      %v2651 = vld [vmem:[#allocation3 + $0x3c] sm:$0xf]
      %v2652 = vld [vmem:[#allocation3 + $0x40] sm:$0xf]
      %v2653 = vld [vmem:[#allocation3 + $0x44] sm:$0xf]
      %v2654 = vld [vmem:[#allocation3 + $0x48] sm:$0xf]
      %v2655 = vld [vmem:[#allocation3 + $0x4c] sm:$0xf]
      %v2656 = vld [vmem:[#allocation3 + $0x50] sm:$0xf]
      %v2657 = vld [vmem:[#allocation3 + $0x54] sm:$0xf]
      %v2658 = vld [vmem:[#allocation3 + $0x58] sm:$0xf]
      %v2659 = vld [vmem:[#allocation3 + $0x5c] sm:$0xf]
      %v2660 = vld [vmem:[#allocation3 + $0x60] sm:$0xf]
      %v2661 = vld [vmem:[#allocation3 + $0x64] sm:$0xf]
      %v2662 = vld [vmem:[#allocation3 + $0x68] sm:$0xf]
      %v2663 = vld [vmem:[#allocation3 + $0x6c] sm:$0xf]
      %v2664 = vld [vmem:[#allocation3 + $0x70] sm:$0xf]
      %v2665 = vld [vmem:[#allocation3 + $0x74] sm:$0xf]
      %v2666 = vld [vmem:[#allocation3 + $0x78] sm:$0xf]
      %v2667 = vld [vmem:[#allocation3 + $0x7c] sm:$0xf]
      %v2668 = vld [vmem:[#allocation4] sm:$0xff]
      %v2669 = vld [vmem:[#allocation4 + $0x8] sm:$0xff]
      %v2670 = vld [vmem:[#allocation4 + $0x10] sm:$0xff]
      %v2671 = vld [vmem:[#allocation4 + $0x18] sm:$0xff]
      %v2672 = vld [vmem:[#allocation4 + $0x20] sm:$0xff]
      %v2673 = vld [vmem:[#allocation4 + $0x28] sm:$0xff]
      %v2674 = vld [vmem:[#allocation4 + $0x30] sm:$0xff]
      %v2675 = vld [vmem:[#allocation4 + $0x38] sm:$0xff]
      %v2676 = vld [vmem:[#allocation4 + $0x40] sm:$0xff]
      %v2677 = vld [vmem:[#allocation4 + $0x48] sm:$0xff]
      %v2678 = vld [vmem:[#allocation4 + $0x50] sm:$0xff]
      %v2679 = vld [vmem:[#allocation4 + $0x58] sm:$0xff]
      %v2680 = vld [vmem:[#allocation4 + $0x60] sm:$0xff]
      %v2681 = vld [vmem:[#allocation4 + $0x68] sm:$0xff]
      %v2682 = vld [vmem:[#allocation4 + $0x70] sm:$0xff]
      %v2683 = vld [vmem:[#allocation4 + $0x78] sm:$0xff]
      %v2684 = vld [vmem:[#allocation4 + $0x80] sm:$0xff]
      %v2685 = vld [vmem:[#allocation4 + $0x88] sm:$0xff]
      %v2686 = vld [vmem:[#allocation4 + $0x90] sm:$0xff]
      %v2687 = vld [vmem:[#allocation4 + $0x98] sm:$0xff]
      %v2688 = vld [vmem:[#allocation4 + $0xa0] sm:$0xff]
      %v2689 = vld [vmem:[#allocation4 + $0xa8] sm:$0xff]
      %v2690 = vld [vmem:[#allocation4 + $0xb0] sm:$0xff]
      %v2691 = vld [vmem:[#allocation4 + $0xb8] sm:$0xff]
      %v2692 = vld [vmem:[#allocation4 + $0xc0] sm:$0xff]
      %v2693 = vld [vmem:[#allocation4 + $0xc8] sm:$0xff]
      %v2694 = vld [vmem:[#allocation4 + $0xd0] sm:$0xff]
      %v2695 = vld [vmem:[#allocation4 + $0xd8] sm:$0xff]
      %v2696 = vld [vmem:[#allocation4 + $0xe0] sm:$0xff]
      %v2697 = vld [vmem:[#allocation4 + $0xe8] sm:$0xff]
      %v2698 = vld [vmem:[#allocation4 + $0xf0] sm:$0xff]
      %v2699 = vld [vmem:[#allocation4 + $0xf8] sm:$0xff]
      %s2700 = scalar_lea.vmem %s1, 4
      %v2701 = vld [vmem:[%s2700] sm:$0xf]
      %v2734 = vunpack.c.l.b16 %v2636
      %v2735 = vunpack.c.l.b16 %v2637
      %v2736 = vunpack.c.l.b16 %v2638
      %v2737 = vunpack.c.l.b16 %v2639
      %v2738 = vunpack.c.l.b16 %v2640
      %v2739 = vunpack.c.l.b16 %v2641
      %v2740 = vunpack.c.l.b16 %v2642
      %v2741 = vunpack.c.l.b16 %v2643
      %v2742 = vunpack.c.l.b16 %v2644
      %v2743 = vunpack.c.l.b16 %v2645
      %v2744 = vunpack.c.l.b16 %v2646
      %v2745 = vunpack.c.l.b16 %v2647
      %v2746 = vunpack.c.l.b16 %v2648
      %v2747 = vunpack.c.l.b16 %v2649
      %v2748 = vunpack.c.l.b16 %v2650
      %v2749 = vunpack.c.l.b16 %v2651
      %v2750 = vunpack.c.l.b16 %v2652
      %v2751 = vunpack.c.l.b16 %v2653
      %v2752 = vunpack.c.l.b16 %v2654
      %v2753 = vunpack.c.l.b16 %v2655
      %v2754 = vunpack.c.l.b16 %v2656
      %v2755 = vunpack.c.l.b16 %v2657
      %v2756 = vunpack.c.l.b16 %v2658
      %v2757 = vunpack.c.l.b16 %v2659
      %v2758 = vunpack.c.l.b16 %v2660
      %v2759 = vunpack.c.l.b16 %v2661
      %v2760 = vunpack.c.l.b16 %v2662
      %v2761 = vunpack.c.l.b16 %v2663
      %v2762 = vunpack.c.l.b16 %v2664
      %v2763 = vunpack.c.l.b16 %v2665
      %v2764 = vunpack.c.l.b16 %v2666
      %v2765 = vunpack.c.l.b16 %v2667
      %v2766 = vpack.c.b16 %v2735, %v2734
      %v2767 = vpack.c.b16 %v2737, %v2736
      %v2768 = vpack.c.b16 %v2739, %v2738
      %v2769 = vpack.c.b16 %v2741, %v2740
      %v2770 = vpack.c.b16 %v2743, %v2742
      %v2771 = vpack.c.b16 %v2745, %v2744
      %v2772 = vpack.c.b16 %v2747, %v2746
      %v2773 = vpack.c.b16 %v2749, %v2748
      %v2774 = vpack.c.b16 %v2751, %v2750
      %v2775 = vpack.c.b16 %v2753, %v2752
      %v2776 = vpack.c.b16 %v2755, %v2754
      %v2777 = vpack.c.b16 %v2757, %v2756
      %v2778 = vpack.c.b16 %v2759, %v2758
      %v2779 = vpack.c.b16 %v2761, %v2760
      %v2780 = vpack.c.b16 %v2763, %v2762
      %v2781 = vpack.c.b16 %v2765, %v2764
      %v2783 = vsel %vm951, %v2766, 0
      %v2786 = vsel %vm951, %v2767, 0
      %v2789 = vsel %vm951, %v2768, 0
      %v2792 = vsel %vm951, %v2769, 0
      %v2795 = vsel %vm951, %v2770, 0
      %v2798 = vsel %vm951, %v2771, 0
      %v2801 = vsel %vm951, %v2772, 0
      %v2804 = vsel %vm951, %v2773, 0
      %v2807 = vsel %vm951, %v2774, 0
      %v2810 = vsel %vm951, %v2775, 0
      %v2813 = vsel %vm951, %v2776, 0
      %v2816 = vsel %vm951, %v2777, 0
      %v2819 = vsel %vm951, %v2778, 0
      %v2822 = vsel %vm951, %v2779, 0
      %v2825 = vsel %vm951, %v2780, 0
      %v2828 = vsel %vm951, %v2781, 0
      %v2831 = vsel %vm1000, %v2701, 0
      %2833 = vmatprep.subr.bf16.mxu0 0
      %2834 = vmatpush1.bf16.msra.mxu0 0
      %2835 = vmatprep.subr.bf16.mxu0 0
      %2836 = vmatpush1.bf16.msra.mxu0 0
      %2837 = vmatprep.subr.bf16.mxu0 0
      %2838 = vmatpush1.bf16.msra.mxu0 0
      %2839 = vmatprep.subr.bf16.mxu0 0
      %2840 = vmatpush1.bf16.msra.mxu0 0
      %2841 = vmatprep.subr.bf16.mxu0 0
      %2842 = vmatpush1.bf16.msra.mxu0 0
      %2843 = vmatprep.subr.bf16.mxu0 0
      %2844 = vmatpush1.bf16.msra.mxu0 0
      %2845 = vmatprep.subr.bf16.mxu0 0
      %2846 = vmatpush1.bf16.msra.mxu0 0
      %2847 = vmatprep.subr.bf16.mxu0 0
      %2848 = vmatpush1.bf16.msra.mxu0 %v2831
      %2849 = vmatprep.subr.bf16.mxu0 0
      %2850 = vmatpush2.bf16.msra.mxu0 0
      %2851 = vmatprep.subr.bf16.mxu0 0
      %2852 = vmatpush2.bf16.msra.mxu0 0
      %2853 = vmatprep.subr.bf16.mxu0 0
      %2854 = vmatpush2.bf16.msra.mxu0 0
      %2855 = vmatprep.subr.bf16.mxu0 0
      %2856 = vmatpush2.bf16.msra.mxu0 0
      %2857 = vmatprep.subr.bf16.mxu0 0
      %2858 = vmatpush2.bf16.msra.mxu0 0
      %2859 = vmatprep.subr.bf16.mxu0 0
      %2860 = vmatpush2.bf16.msra.mxu0 0
      %2861 = vmatprep.subr.bf16.mxu0 0
      %2862 = vmatpush2.bf16.msra.mxu0 0
      %2863 = vmatprep.subr.bf16.mxu0 0
      %2864 = vmatpush2.bf16.msra.mxu0 0
      %2865 = vmatprep.mubr.bf16.mxu0 0
      %2866 = vmatmul.mubr.bf16.gmra.mxu0 %v2783
      %v2867 = vpop.f32.mrf.mxu0
      %v2868 = vadd.f32 0.0, %v2867
      %v2869 = vpop.f32.mrf.mxu0
      %v2870 = vpop.f32.mrf.mxu0
      %v2871 = vadd.f32 0.0, %v2870
      %v2872 = vpop.f32.mrf.mxu0
      %2873 = vmatprep.mubr.bf16.mxu0 0
      %2874 = vmatmul.mubr.bf16.gmra.mxu0 %v2786
      %v2875 = vpop.f32.mrf.mxu0
      %v2876 = vadd.f32 0.0, %v2875
      %v2877 = vpop.f32.mrf.mxu0
      %v2878 = vpop.f32.mrf.mxu0
      %v2879 = vadd.f32 0.0, %v2878
      %v2880 = vpop.f32.mrf.mxu0
      %2881 = vmatprep.mubr.bf16.mxu0 0
      %2882 = vmatmul.mubr.bf16.gmra.mxu0 %v2789
      %v2883 = vpop.f32.mrf.mxu0
      %v2884 = vadd.f32 0.0, %v2883
      %v2885 = vpop.f32.mrf.mxu0
      %v2886 = vpop.f32.mrf.mxu0
      %v2887 = vadd.f32 0.0, %v2886
      %v2888 = vpop.f32.mrf.mxu0
      %2889 = vmatprep.mubr.bf16.mxu0 0
      %2890 = vmatmul.mubr.bf16.gmra.mxu0 %v2792
      %v2891 = vpop.f32.mrf.mxu0
      %v2892 = vadd.f32 0.0, %v2891
      %v2893 = vpop.f32.mrf.mxu0
      %v2894 = vpop.f32.mrf.mxu0
      %v2895 = vadd.f32 0.0, %v2894
      %v2896 = vpop.f32.mrf.mxu0
      %2897 = vmatprep.mubr.bf16.mxu0 0
      %2898 = vmatmul.mubr.bf16.gmra.mxu0 %v2795
      %v2899 = vpop.f32.mrf.mxu0
      %v2900 = vadd.f32 0.0, %v2899
      %v2901 = vpop.f32.mrf.mxu0
      %v2902 = vpop.f32.mrf.mxu0
      %v2903 = vadd.f32 0.0, %v2902
      %v2904 = vpop.f32.mrf.mxu0
      %2905 = vmatprep.mubr.bf16.mxu0 0
      %2906 = vmatmul.mubr.bf16.gmra.mxu0 %v2798
      %v2907 = vpop.f32.mrf.mxu0
      %v2908 = vadd.f32 0.0, %v2907
      %v2909 = vpop.f32.mrf.mxu0
      %v2910 = vpop.f32.mrf.mxu0
      %v2911 = vadd.f32 0.0, %v2910
      %v2912 = vpop.f32.mrf.mxu0
      %2913 = vmatprep.mubr.bf16.mxu0 0
      %2914 = vmatmul.mubr.bf16.gmra.mxu0 %v2801
      %v2915 = vpop.f32.mrf.mxu0
      %v2916 = vadd.f32 0.0, %v2915
      %v2917 = vpop.f32.mrf.mxu0
      %v2918 = vpop.f32.mrf.mxu0
      %v2919 = vadd.f32 0.0, %v2918
      %v2920 = vpop.f32.mrf.mxu0
      %2921 = vmatprep.mubr.bf16.mxu0 0
      %2922 = vmatmul.mubr.bf16.gmra.mxu0 %v2804
      %v2923 = vpop.f32.mrf.mxu0
      %v2924 = vadd.f32 0.0, %v2923
      %v2925 = vpop.f32.mrf.mxu0
      %v2926 = vpop.f32.mrf.mxu0
      %v2927 = vadd.f32 0.0, %v2926
      %v2928 = vpop.f32.mrf.mxu0
      %2929 = vmatprep.mubr.bf16.mxu0 0
      %2930 = vmatmul.mubr.bf16.gmra.mxu0 %v2807
      %v2931 = vpop.f32.mrf.mxu0
      %v2932 = vadd.f32 0.0, %v2931
      %v2933 = vpop.f32.mrf.mxu0
      %v2934 = vpop.f32.mrf.mxu0
      %v2935 = vadd.f32 0.0, %v2934
      %v2936 = vpop.f32.mrf.mxu0
      %2937 = vmatprep.mubr.bf16.mxu0 0
      %2938 = vmatmul.mubr.bf16.gmra.mxu0 %v2810
      %v2939 = vpop.f32.mrf.mxu0
      %v2940 = vadd.f32 0.0, %v2939
      %v2941 = vpop.f32.mrf.mxu0
      %v2942 = vpop.f32.mrf.mxu0
      %v2943 = vadd.f32 0.0, %v2942
      %v2944 = vpop.f32.mrf.mxu0
      %2945 = vmatprep.mubr.bf16.mxu0 0
      %2946 = vmatmul.mubr.bf16.gmra.mxu0 %v2813
      %v2947 = vpop.f32.mrf.mxu0
      %v2948 = vadd.f32 0.0, %v2947
      %v2949 = vpop.f32.mrf.mxu0
      %v2950 = vpop.f32.mrf.mxu0
      %v2951 = vadd.f32 0.0, %v2950
      %v2952 = vpop.f32.mrf.mxu0
      %2953 = vmatprep.mubr.bf16.mxu0 0
      %2954 = vmatmul.mubr.bf16.gmra.mxu0 %v2816
      %v2955 = vpop.f32.mrf.mxu0
      %v2956 = vadd.f32 0.0, %v2955
      %v2957 = vpop.f32.mrf.mxu0
      %v2958 = vpop.f32.mrf.mxu0
      %v2959 = vadd.f32 0.0, %v2958
      %v2960 = vpop.f32.mrf.mxu0
      %2961 = vmatprep.mubr.bf16.mxu0 0
      %2962 = vmatmul.mubr.bf16.gmra.mxu0 %v2819
      %v2963 = vpop.f32.mrf.mxu0
      %v2964 = vadd.f32 0.0, %v2963
      %v2965 = vpop.f32.mrf.mxu0
      %v2966 = vpop.f32.mrf.mxu0
      %v2967 = vadd.f32 0.0, %v2966
      %v2968 = vpop.f32.mrf.mxu0
      %2969 = vmatprep.mubr.bf16.mxu0 0
      %2970 = vmatmul.mubr.bf16.gmra.mxu0 %v2822
      %v2971 = vpop.f32.mrf.mxu0
      %v2972 = vadd.f32 0.0, %v2971
      %v2973 = vpop.f32.mrf.mxu0
      %v2974 = vpop.f32.mrf.mxu0
      %v2975 = vadd.f32 0.0, %v2974
      %v2976 = vpop.f32.mrf.mxu0
      %2977 = vmatprep.mubr.bf16.mxu0 0
      %2978 = vmatmul.mubr.bf16.gmra.mxu0 %v2825
      %v2979 = vpop.f32.mrf.mxu0
      %v2980 = vadd.f32 0.0, %v2979
      %v2981 = vpop.f32.mrf.mxu0
      %v2982 = vpop.f32.mrf.mxu0
      %v2983 = vadd.f32 0.0, %v2982
      %v2984 = vpop.f32.mrf.mxu0
      %2985 = vmatprep.mubr.bf16.mxu0 0
      %2986 = vmatmul.mubr.bf16.gmra.mxu0 %v2828
      %v2987 = vpop.f32.mrf.mxu0
      %v2988 = vadd.f32 0.0, %v2987
      %v2989 = vpop.f32.mrf.mxu0
      %v2990 = vpop.f32.mrf.mxu0
      %v2991 = vadd.f32 0.0, %v2990
      %v2992 = vpop.f32.mrf.mxu0
      %2993 = vdwg.mxu0
      %v2994 = vadd.f32 %v2668, %v2868
      %v2995 = vadd.f32 %v2669, %v2871
      %v2996 = vadd.f32 %v2670, %v2876
      %v2997 = vadd.f32 %v2671, %v2879
      %v2998 = vadd.f32 %v2672, %v2884
      %v2999 = vadd.f32 %v2673, %v2887
      %v3000 = vadd.f32 %v2674, %v2892
      %v3001 = vadd.f32 %v2675, %v2895
      %v3002 = vadd.f32 %v2676, %v2900
      %v3003 = vadd.f32 %v2677, %v2903
      %v3004 = vadd.f32 %v2678, %v2908
      %v3005 = vadd.f32 %v2679, %v2911
      %v3006 = vadd.f32 %v2680, %v2916
      %v3007 = vadd.f32 %v2681, %v2919
      %v3008 = vadd.f32 %v2682, %v2924
      %v3009 = vadd.f32 %v2683, %v2927
      %v3010 = vadd.f32 %v2684, %v2932
      %v3011 = vadd.f32 %v2685, %v2935
      %v3012 = vadd.f32 %v2686, %v2940
      %v3013 = vadd.f32 %v2687, %v2943
      %v3014 = vadd.f32 %v2688, %v2948
      %v3015 = vadd.f32 %v2689, %v2951
      %v3016 = vadd.f32 %v2690, %v2956
      %v3017 = vadd.f32 %v2691, %v2959
      %v3018 = vadd.f32 %v2692, %v2964
      %v3019 = vadd.f32 %v2693, %v2967
      %v3020 = vadd.f32 %v2694, %v2972
      %v3021 = vadd.f32 %v2695, %v2975
      %v3022 = vadd.f32 %v2696, %v2980
      %v3023 = vadd.f32 %v2697, %v2983
      %v3024 = vadd.f32 %v2698, %v2988
      %v3025 = vadd.f32 %v2699, %v2991
      %3026 = vst.msk [vmem:[#allocation4] sm:$0xff] %vm701, %v2994
      %3027 = vst.msk [vmem:[#allocation4 + $0x8] sm:$0xff] %vm701, %v2995
      %3028 = vst.msk [vmem:[#allocation4 + $0x10] sm:$0xff] %vm701, %v2996
      %3029 = vst.msk [vmem:[#allocation4 + $0x18] sm:$0xff] %vm701, %v2997
      %3030 = vst.msk [vmem:[#allocation4 + $0x20] sm:$0xff] %vm701, %v2998
      %3031 = vst.msk [vmem:[#allocation4 + $0x28] sm:$0xff] %vm701, %v2999
      %3032 = vst.msk [vmem:[#allocation4 + $0x30] sm:$0xff] %vm701, %v3000
      %3033 = vst.msk [vmem:[#allocation4 + $0x38] sm:$0xff] %vm701, %v3001
      %3034 = vst.msk [vmem:[#allocation4 + $0x40] sm:$0xff] %vm701, %v3002
      %3035 = vst.msk [vmem:[#allocation4 + $0x48] sm:$0xff] %vm701, %v3003
      %3036 = vst.msk [vmem:[#allocation4 + $0x50] sm:$0xff] %vm701, %v3004
      %3037 = vst.msk [vmem:[#allocation4 + $0x58] sm:$0xff] %vm701, %v3005
      %3038 = vst.msk [vmem:[#allocation4 + $0x60] sm:$0xff] %vm701, %v3006
      %3039 = vst.msk [vmem:[#allocation4 + $0x68] sm:$0xff] %vm701, %v3007
      %3040 = vst.msk [vmem:[#allocation4 + $0x70] sm:$0xff] %vm701, %v3008
      %3041 = vst.msk [vmem:[#allocation4 + $0x78] sm:$0xff] %vm701, %v3009
      %3042 = vst.msk [vmem:[#allocation4 + $0x80] sm:$0xff] %vm701, %v3010
      %3043 = vst.msk [vmem:[#allocation4 + $0x88] sm:$0xff] %vm701, %v3011
      %3044 = vst.msk [vmem:[#allocation4 + $0x90] sm:$0xff] %vm701, %v3012
      %3045 = vst.msk [vmem:[#allocation4 + $0x98] sm:$0xff] %vm701, %v3013
      %3046 = vst.msk [vmem:[#allocation4 + $0xa0] sm:$0xff] %vm701, %v3014
      %3047 = vst.msk [vmem:[#allocation4 + $0xa8] sm:$0xff] %vm701, %v3015
      %3048 = vst.msk [vmem:[#allocation4 + $0xb0] sm:$0xff] %vm701, %v3016
      %3049 = vst.msk [vmem:[#allocation4 + $0xb8] sm:$0xff] %vm701, %v3017
      %3050 = vst.msk [vmem:[#allocation4 + $0xc0] sm:$0xff] %vm701, %v3018
      %3051 = vst.msk [vmem:[#allocation4 + $0xc8] sm:$0xff] %vm701, %v3019
      %3052 = vst.msk [vmem:[#allocation4 + $0xd0] sm:$0xff] %vm701, %v3020
      %3053 = vst.msk [vmem:[#allocation4 + $0xd8] sm:$0xff] %vm701, %v3021
      %3054 = vst.msk [vmem:[#allocation4 + $0xe0] sm:$0xff] %vm701, %v3022
      %3055 = vst.msk [vmem:[#allocation4 + $0xe8] sm:$0xff] %vm701, %v3023
      %3056 = vst.msk [vmem:[#allocation4 + $0xf0] sm:$0xff] %vm701, %v3024
      %3057 = vst.msk [vmem:[#allocation4 + $0xf8] sm:$0xff] %vm701, %v3025
      %v3058 = vld [vmem:[%s1229] sm:$0xf]
      %v3059 = vld [vmem:[%s1229 + $0x4] sm:$0xf]
      %v3060 = vld [vmem:[%s1229 + $0x8] sm:$0xf]
      %v3061 = vld [vmem:[%s1229 + $0xc] sm:$0xf]
      %v3062 = vld [vmem:[%s1229 + $0x10] sm:$0xf]
      %v3063 = vld [vmem:[%s1229 + $0x14] sm:$0xf]
      %v3064 = vld [vmem:[%s1229 + $0x18] sm:$0xf]
      %v3065 = vld [vmem:[%s1229 + $0x1c] sm:$0xf]
      %v3066 = vld [vmem:[%s1229 + $0x20] sm:$0xf]
      %v3067 = vld [vmem:[%s1229 + $0x24] sm:$0xf]
      %v3068 = vld [vmem:[%s1229 + $0x28] sm:$0xf]
      %v3069 = vld [vmem:[%s1229 + $0x2c] sm:$0xf]
      %v3070 = vld [vmem:[%s1229 + $0x30] sm:$0xf]
      %v3071 = vld [vmem:[%s1229 + $0x34] sm:$0xf]
      %v3072 = vld [vmem:[%s1229 + $0x38] sm:$0xf]
      %v3073 = vld [vmem:[%s1229 + $0x3c] sm:$0xf]
      %v3074 = vld [vmem:[%s1229 + $0x40] sm:$0xf]
      %v3075 = vld [vmem:[%s1229 + $0x44] sm:$0xf]
      %v3076 = vld [vmem:[%s1229 + $0x48] sm:$0xf]
      %v3077 = vld [vmem:[%s1229 + $0x4c] sm:$0xf]
      %v3078 = vld [vmem:[%s1229 + $0x50] sm:$0xf]
      %v3079 = vld [vmem:[%s1229 + $0x54] sm:$0xf]
      %v3080 = vld [vmem:[%s1229 + $0x58] sm:$0xf]
      %v3081 = vld [vmem:[%s1229 + $0x5c] sm:$0xf]
      %v3082 = vld [vmem:[%s1229 + $0x60] sm:$0xf]
      %v3083 = vld [vmem:[%s1229 + $0x64] sm:$0xf]
      %v3084 = vld [vmem:[%s1229 + $0x68] sm:$0xf]
      %v3085 = vld [vmem:[%s1229 + $0x6c] sm:$0xf]
      %v3086 = vld [vmem:[%s1229 + $0x70] sm:$0xf]
      %v3087 = vld [vmem:[%s1229 + $0x74] sm:$0xf]
      %v3088 = vld [vmem:[%s1229 + $0x78] sm:$0xf]
      %v3089 = vld [vmem:[%s1229 + $0x7c] sm:$0xf]
      %v3090 = vld [vmem:[#allocation4] sm:$0xff]
      %v3091 = vld [vmem:[#allocation4 + $0x8] sm:$0xff]
      %v3092 = vld [vmem:[#allocation4 + $0x10] sm:$0xff]
      %v3093 = vld [vmem:[#allocation4 + $0x18] sm:$0xff]
      %v3094 = vld [vmem:[#allocation4 + $0x20] sm:$0xff]
      %v3095 = vld [vmem:[#allocation4 + $0x28] sm:$0xff]
      %v3096 = vld [vmem:[#allocation4 + $0x30] sm:$0xff]
      %v3097 = vld [vmem:[#allocation4 + $0x38] sm:$0xff]
      %v3098 = vld [vmem:[#allocation4 + $0x40] sm:$0xff]
      %v3099 = vld [vmem:[#allocation4 + $0x48] sm:$0xff]
      %v3100 = vld [vmem:[#allocation4 + $0x50] sm:$0xff]
      %v3101 = vld [vmem:[#allocation4 + $0x58] sm:$0xff]
      %v3102 = vld [vmem:[#allocation4 + $0x60] sm:$0xff]
      %v3103 = vld [vmem:[#allocation4 + $0x68] sm:$0xff]
      %v3104 = vld [vmem:[#allocation4 + $0x70] sm:$0xff]
      %v3105 = vld [vmem:[#allocation4 + $0x78] sm:$0xff]
      %v3106 = vld [vmem:[#allocation4 + $0x80] sm:$0xff]
      %v3107 = vld [vmem:[#allocation4 + $0x88] sm:$0xff]
      %v3108 = vld [vmem:[#allocation4 + $0x90] sm:$0xff]
      %v3109 = vld [vmem:[#allocation4 + $0x98] sm:$0xff]
      %v3110 = vld [vmem:[#allocation4 + $0xa0] sm:$0xff]
      %v3111 = vld [vmem:[#allocation4 + $0xa8] sm:$0xff]
      %v3112 = vld [vmem:[#allocation4 + $0xb0] sm:$0xff]
      %v3113 = vld [vmem:[#allocation4 + $0xb8] sm:$0xff]
      %v3114 = vld [vmem:[#allocation4 + $0xc0] sm:$0xff]
      %v3115 = vld [vmem:[#allocation4 + $0xc8] sm:$0xff]
      %v3116 = vld [vmem:[#allocation4 + $0xd0] sm:$0xff]
      %v3117 = vld [vmem:[#allocation4 + $0xd8] sm:$0xff]
      %v3118 = vld [vmem:[#allocation4 + $0xe0] sm:$0xff]
      %v3119 = vld [vmem:[#allocation4 + $0xe8] sm:$0xff]
      %v3120 = vld [vmem:[#allocation4 + $0xf0] sm:$0xff]
      %v3121 = vld [vmem:[#allocation4 + $0xf8] sm:$0xff]
      %s3122 = scalar_lea.vmem %s1, 16
      %v3123 = vld [vmem:[%s3122] sm:$0xf]
      %v3156 = vunpack.c.l.b16 %v3058
      %v3157 = vunpack.c.l.b16 %v3059
      %v3158 = vunpack.c.l.b16 %v3060
      %v3159 = vunpack.c.l.b16 %v3061
      %v3160 = vunpack.c.l.b16 %v3062
      %v3161 = vunpack.c.l.b16 %v3063
      %v3162 = vunpack.c.l.b16 %v3064
      %v3163 = vunpack.c.l.b16 %v3065
      %v3164 = vunpack.c.l.b16 %v3066
      %v3165 = vunpack.c.l.b16 %v3067
      %v3166 = vunpack.c.l.b16 %v3068
      %v3167 = vunpack.c.l.b16 %v3069
      %v3168 = vunpack.c.l.b16 %v3070
      %v3169 = vunpack.c.l.b16 %v3071
      %v3170 = vunpack.c.l.b16 %v3072
      %v3171 = vunpack.c.l.b16 %v3073
      %v3172 = vunpack.c.l.b16 %v3074
      %v3173 = vunpack.c.l.b16 %v3075
      %v3174 = vunpack.c.l.b16 %v3076
      %v3175 = vunpack.c.l.b16 %v3077
      %v3176 = vunpack.c.l.b16 %v3078
      %v3177 = vunpack.c.l.b16 %v3079
      %v3178 = vunpack.c.l.b16 %v3080
      %v3179 = vunpack.c.l.b16 %v3081
      %v3180 = vunpack.c.l.b16 %v3082
      %v3181 = vunpack.c.l.b16 %v3083
      %v3182 = vunpack.c.l.b16 %v3084
      %v3183 = vunpack.c.l.b16 %v3085
      %v3184 = vunpack.c.l.b16 %v3086
      %v3185 = vunpack.c.l.b16 %v3087
      %v3186 = vunpack.c.l.b16 %v3088
      %v3187 = vunpack.c.l.b16 %v3089
      %v3188 = vpack.c.b16 %v3157, %v3156
      %v3189 = vpack.c.b16 %v3159, %v3158
      %v3190 = vpack.c.b16 %v3161, %v3160
      %v3191 = vpack.c.b16 %v3163, %v3162
      %v3192 = vpack.c.b16 %v3165, %v3164
      %v3193 = vpack.c.b16 %v3167, %v3166
      %v3194 = vpack.c.b16 %v3169, %v3168
      %v3195 = vpack.c.b16 %v3171, %v3170
      %v3196 = vpack.c.b16 %v3173, %v3172
      %v3197 = vpack.c.b16 %v3175, %v3174
      %v3198 = vpack.c.b16 %v3177, %v3176
      %v3199 = vpack.c.b16 %v3179, %v3178
      %v3200 = vpack.c.b16 %v3181, %v3180
      %v3201 = vpack.c.b16 %v3183, %v3182
      %v3202 = vpack.c.b16 %v3185, %v3184
      %v3203 = vpack.c.b16 %v3187, %v3186
      %v3205 = vsel %vm951, %v3188, 0
      %v3208 = vsel %vm951, %v3189, 0
      %v3211 = vsel %vm951, %v3190, 0
      %v3214 = vsel %vm951, %v3191, 0
      %v3217 = vsel %vm951, %v3192, 0
      %v3220 = vsel %vm951, %v3193, 0
      %v3223 = vsel %vm951, %v3194, 0
      %v3226 = vsel %vm951, %v3195, 0
      %v3229 = vsel %vm951, %v3196, 0
      %v3232 = vsel %vm951, %v3197, 0
      %v3235 = vsel %vm951, %v3198, 0
      %v3238 = vsel %vm951, %v3199, 0
      %v3241 = vsel %vm951, %v3200, 0
      %v3244 = vsel %vm951, %v3201, 0
      %v3247 = vsel %vm951, %v3202, 0
      %v3250 = vsel %vm951, %v3203, 0
      %v3253 = vsel %vm1000, %v3123, 0
      %3255 = vmatprep.subr.bf16.mxu0 0
      %3256 = vmatpush1.bf16.msra.mxu0 0
      %3257 = vmatprep.subr.bf16.mxu0 0
      %3258 = vmatpush1.bf16.msra.mxu0 0
      %3259 = vmatprep.subr.bf16.mxu0 0
      %3260 = vmatpush1.bf16.msra.mxu0 0
      %3261 = vmatprep.subr.bf16.mxu0 0
      %3262 = vmatpush1.bf16.msra.mxu0 0
      %3263 = vmatprep.subr.bf16.mxu0 0
      %3264 = vmatpush1.bf16.msra.mxu0 0
      %3265 = vmatprep.subr.bf16.mxu0 0
      %3266 = vmatpush1.bf16.msra.mxu0 0
      %3267 = vmatprep.subr.bf16.mxu0 0
      %3268 = vmatpush1.bf16.msra.mxu0 0
      %3269 = vmatprep.subr.bf16.mxu0 0
      %3270 = vmatpush1.bf16.msra.mxu0 %v3253
      %3271 = vmatprep.subr.bf16.mxu0 0
      %3272 = vmatpush2.bf16.msra.mxu0 0
      %3273 = vmatprep.subr.bf16.mxu0 0
      %3274 = vmatpush2.bf16.msra.mxu0 0
      %3275 = vmatprep.subr.bf16.mxu0 0
      %3276 = vmatpush2.bf16.msra.mxu0 0
      %3277 = vmatprep.subr.bf16.mxu0 0
      %3278 = vmatpush2.bf16.msra.mxu0 0
      %3279 = vmatprep.subr.bf16.mxu0 0
      %3280 = vmatpush2.bf16.msra.mxu0 0
      %3281 = vmatprep.subr.bf16.mxu0 0
      %3282 = vmatpush2.bf16.msra.mxu0 0
      %3283 = vmatprep.subr.bf16.mxu0 0
      %3284 = vmatpush2.bf16.msra.mxu0 0
      %3285 = vmatprep.subr.bf16.mxu0 0
      %3286 = vmatpush2.bf16.msra.mxu0 0
      %3287 = vmatprep.mubr.bf16.mxu0 0
      %3288 = vmatmul.mubr.bf16.gmra.mxu0 %v3205
      %v3289 = vpop.f32.mrf.mxu0
      %v3290 = vadd.f32 0.0, %v3289
      %v3291 = vpop.f32.mrf.mxu0
      %v3292 = vpop.f32.mrf.mxu0
      %v3293 = vadd.f32 0.0, %v3292
      %v3294 = vpop.f32.mrf.mxu0
      %3295 = vmatprep.mubr.bf16.mxu0 0
      %3296 = vmatmul.mubr.bf16.gmra.mxu0 %v3208
      %v3297 = vpop.f32.mrf.mxu0
      %v3298 = vadd.f32 0.0, %v3297
      %v3299 = vpop.f32.mrf.mxu0
      %v3300 = vpop.f32.mrf.mxu0
      %v3301 = vadd.f32 0.0, %v3300
      %v3302 = vpop.f32.mrf.mxu0
      %3303 = vmatprep.mubr.bf16.mxu0 0
      %3304 = vmatmul.mubr.bf16.gmra.mxu0 %v3211
      %v3305 = vpop.f32.mrf.mxu0
      %v3306 = vadd.f32 0.0, %v3305
      %v3307 = vpop.f32.mrf.mxu0
      %v3308 = vpop.f32.mrf.mxu0
      %v3309 = vadd.f32 0.0, %v3308
      %v3310 = vpop.f32.mrf.mxu0
      %3311 = vmatprep.mubr.bf16.mxu0 0
      %3312 = vmatmul.mubr.bf16.gmra.mxu0 %v3214
      %v3313 = vpop.f32.mrf.mxu0
      %v3314 = vadd.f32 0.0, %v3313
      %v3315 = vpop.f32.mrf.mxu0
      %v3316 = vpop.f32.mrf.mxu0
      %v3317 = vadd.f32 0.0, %v3316
      %v3318 = vpop.f32.mrf.mxu0
      %3319 = vmatprep.mubr.bf16.mxu0 0
      %3320 = vmatmul.mubr.bf16.gmra.mxu0 %v3217
      %v3321 = vpop.f32.mrf.mxu0
      %v3322 = vadd.f32 0.0, %v3321
      %v3323 = vpop.f32.mrf.mxu0
      %v3324 = vpop.f32.mrf.mxu0
      %v3325 = vadd.f32 0.0, %v3324
      %v3326 = vpop.f32.mrf.mxu0
      %3327 = vmatprep.mubr.bf16.mxu0 0
      %3328 = vmatmul.mubr.bf16.gmra.mxu0 %v3220
      %v3329 = vpop.f32.mrf.mxu0
      %v3330 = vadd.f32 0.0, %v3329
      %v3331 = vpop.f32.mrf.mxu0
      %v3332 = vpop.f32.mrf.mxu0
      %v3333 = vadd.f32 0.0, %v3332
      %v3334 = vpop.f32.mrf.mxu0
      %3335 = vmatprep.mubr.bf16.mxu0 0
      %3336 = vmatmul.mubr.bf16.gmra.mxu0 %v3223
      %v3337 = vpop.f32.mrf.mxu0
      %v3338 = vadd.f32 0.0, %v3337
      %v3339 = vpop.f32.mrf.mxu0
      %v3340 = vpop.f32.mrf.mxu0
      %v3341 = vadd.f32 0.0, %v3340
      %v3342 = vpop.f32.mrf.mxu0
      %3343 = vmatprep.mubr.bf16.mxu0 0
      %3344 = vmatmul.mubr.bf16.gmra.mxu0 %v3226
      %v3345 = vpop.f32.mrf.mxu0
      %v3346 = vadd.f32 0.0, %v3345
      %v3347 = vpop.f32.mrf.mxu0
      %v3348 = vpop.f32.mrf.mxu0
      %v3349 = vadd.f32 0.0, %v3348
      %v3350 = vpop.f32.mrf.mxu0
      %3351 = vmatprep.mubr.bf16.mxu0 0
      %3352 = vmatmul.mubr.bf16.gmra.mxu0 %v3229
      %v3353 = vpop.f32.mrf.mxu0
      %v3354 = vadd.f32 0.0, %v3353
      %v3355 = vpop.f32.mrf.mxu0
      %v3356 = vpop.f32.mrf.mxu0
      %v3357 = vadd.f32 0.0, %v3356
      %v3358 = vpop.f32.mrf.mxu0
      %3359 = vmatprep.mubr.bf16.mxu0 0
      %3360 = vmatmul.mubr.bf16.gmra.mxu0 %v3232
      %v3361 = vpop.f32.mrf.mxu0
      %v3362 = vadd.f32 0.0, %v3361
      %v3363 = vpop.f32.mrf.mxu0
      %v3364 = vpop.f32.mrf.mxu0
      %v3365 = vadd.f32 0.0, %v3364
      %v3366 = vpop.f32.mrf.mxu0
      %3367 = vmatprep.mubr.bf16.mxu0 0
      %3368 = vmatmul.mubr.bf16.gmra.mxu0 %v3235
      %v3369 = vpop.f32.mrf.mxu0
      %v3370 = vadd.f32 0.0, %v3369
      %v3371 = vpop.f32.mrf.mxu0
      %v3372 = vpop.f32.mrf.mxu0
      %v3373 = vadd.f32 0.0, %v3372
      %v3374 = vpop.f32.mrf.mxu0
      %3375 = vmatprep.mubr.bf16.mxu0 0
      %3376 = vmatmul.mubr.bf16.gmra.mxu0 %v3238
      %v3377 = vpop.f32.mrf.mxu0
      %v3378 = vadd.f32 0.0, %v3377
      %v3379 = vpop.f32.mrf.mxu0
      %v3380 = vpop.f32.mrf.mxu0
      %v3381 = vadd.f32 0.0, %v3380
      %v3382 = vpop.f32.mrf.mxu0
      %3383 = vmatprep.mubr.bf16.mxu0 0
      %3384 = vmatmul.mubr.bf16.gmra.mxu0 %v3241
      %v3385 = vpop.f32.mrf.mxu0
      %v3386 = vadd.f32 0.0, %v3385
      %v3387 = vpop.f32.mrf.mxu0
      %v3388 = vpop.f32.mrf.mxu0
      %v3389 = vadd.f32 0.0, %v3388
      %v3390 = vpop.f32.mrf.mxu0
      %3391 = vmatprep.mubr.bf16.mxu0 0
      %3392 = vmatmul.mubr.bf16.gmra.mxu0 %v3244
      %v3393 = vpop.f32.mrf.mxu0
      %v3394 = vadd.f32 0.0, %v3393
      %v3395 = vpop.f32.mrf.mxu0
      %v3396 = vpop.f32.mrf.mxu0
      %v3397 = vadd.f32 0.0, %v3396
      %v3398 = vpop.f32.mrf.mxu0
      %3399 = vmatprep.mubr.bf16.mxu0 0
      %3400 = vmatmul.mubr.bf16.gmra.mxu0 %v3247
      %v3401 = vpop.f32.mrf.mxu0
      %v3402 = vadd.f32 0.0, %v3401
      %v3403 = vpop.f32.mrf.mxu0
      %v3404 = vpop.f32.mrf.mxu0
      %v3405 = vadd.f32 0.0, %v3404
      %v3406 = vpop.f32.mrf.mxu0
      %3407 = vmatprep.mubr.bf16.mxu0 0
      %3408 = vmatmul.mubr.bf16.gmra.mxu0 %v3250
      %v3409 = vpop.f32.mrf.mxu0
      %v3410 = vadd.f32 0.0, %v3409
      %v3411 = vpop.f32.mrf.mxu0
      %v3412 = vpop.f32.mrf.mxu0
      %v3413 = vadd.f32 0.0, %v3412
      %v3414 = vpop.f32.mrf.mxu0
      %3415 = vdwg.mxu0
      %v3416 = vadd.f32 %v3090, %v3290
      %v3417 = vadd.f32 %v3091, %v3293
      %v3418 = vadd.f32 %v3092, %v3298
      %v3419 = vadd.f32 %v3093, %v3301
      %v3420 = vadd.f32 %v3094, %v3306
      %v3421 = vadd.f32 %v3095, %v3309
      %v3422 = vadd.f32 %v3096, %v3314
      %v3423 = vadd.f32 %v3097, %v3317
      %v3424 = vadd.f32 %v3098, %v3322
      %v3425 = vadd.f32 %v3099, %v3325
      %v3426 = vadd.f32 %v3100, %v3330
      %v3427 = vadd.f32 %v3101, %v3333
      %v3428 = vadd.f32 %v3102, %v3338
      %v3429 = vadd.f32 %v3103, %v3341
      %v3430 = vadd.f32 %v3104, %v3346
      %v3431 = vadd.f32 %v3105, %v3349
      %v3432 = vadd.f32 %v3106, %v3354
      %v3433 = vadd.f32 %v3107, %v3357
      %v3434 = vadd.f32 %v3108, %v3362
      %v3435 = vadd.f32 %v3109, %v3365
      %v3436 = vadd.f32 %v3110, %v3370
      %v3437 = vadd.f32 %v3111, %v3373
      %v3438 = vadd.f32 %v3112, %v3378
      %v3439 = vadd.f32 %v3113, %v3381
      %v3440 = vadd.f32 %v3114, %v3386
      %v3441 = vadd.f32 %v3115, %v3389
      %v3442 = vadd.f32 %v3116, %v3394
      %v3443 = vadd.f32 %v3117, %v3397
      %v3444 = vadd.f32 %v3118, %v3402
      %v3445 = vadd.f32 %v3119, %v3405
      %v3446 = vadd.f32 %v3120, %v3410
      %v3447 = vadd.f32 %v3121, %v3413
      %3448 = vst.msk [vmem:[#allocation4] sm:$0xff] %vm701, %v3416
      %3449 = vst.msk [vmem:[#allocation4 + $0x8] sm:$0xff] %vm701, %v3417
      %3450 = vst.msk [vmem:[#allocation4 + $0x10] sm:$0xff] %vm701, %v3418
      %3451 = vst.msk [vmem:[#allocation4 + $0x18] sm:$0xff] %vm701, %v3419
      %3452 = vst.msk [vmem:[#allocation4 + $0x20] sm:$0xff] %vm701, %v3420
      %3453 = vst.msk [vmem:[#allocation4 + $0x28] sm:$0xff] %vm701, %v3421
      %3454 = vst.msk [vmem:[#allocation4 + $0x30] sm:$0xff] %vm701, %v3422
      %3455 = vst.msk [vmem:[#allocation4 + $0x38] sm:$0xff] %vm701, %v3423
      %3456 = vst.msk [vmem:[#allocation4 + $0x40] sm:$0xff] %vm701, %v3424
      %3457 = vst.msk [vmem:[#allocation4 + $0x48] sm:$0xff] %vm701, %v3425
      %3458 = vst.msk [vmem:[#allocation4 + $0x50] sm:$0xff] %vm701, %v3426
      %3459 = vst.msk [vmem:[#allocation4 + $0x58] sm:$0xff] %vm701, %v3427
      %3460 = vst.msk [vmem:[#allocation4 + $0x60] sm:$0xff] %vm701, %v3428
      %3461 = vst.msk [vmem:[#allocation4 + $0x68] sm:$0xff] %vm701, %v3429
      %3462 = vst.msk [vmem:[#allocation4 + $0x70] sm:$0xff] %vm701, %v3430
      %3463 = vst.msk [vmem:[#allocation4 + $0x78] sm:$0xff] %vm701, %v3431
      %3464 = vst.msk [vmem:[#allocation4 + $0x80] sm:$0xff] %vm701, %v3432
      %3465 = vst.msk [vmem:[#allocation4 + $0x88] sm:$0xff] %vm701, %v3433
      %3466 = vst.msk [vmem:[#allocation4 + $0x90] sm:$0xff] %vm701, %v3434
      %3467 = vst.msk [vmem:[#allocation4 + $0x98] sm:$0xff] %vm701, %v3435
      %3468 = vst.msk [vmem:[#allocation4 + $0xa0] sm:$0xff] %vm701, %v3436
      %3469 = vst.msk [vmem:[#allocation4 + $0xa8] sm:$0xff] %vm701, %v3437
      %3470 = vst.msk [vmem:[#allocation4 + $0xb0] sm:$0xff] %vm701, %v3438
      %3471 = vst.msk [vmem:[#allocation4 + $0xb8] sm:$0xff] %vm701, %v3439
      %3472 = vst.msk [vmem:[#allocation4 + $0xc0] sm:$0xff] %vm701, %v3440
      %3473 = vst.msk [vmem:[#allocation4 + $0xc8] sm:$0xff] %vm701, %v3441
      %3474 = vst.msk [vmem:[#allocation4 + $0xd0] sm:$0xff] %vm701, %v3442
      %3475 = vst.msk [vmem:[#allocation4 + $0xd8] sm:$0xff] %vm701, %v3443
      %3476 = vst.msk [vmem:[#allocation4 + $0xe0] sm:$0xff] %vm701, %v3444
      %3477 = vst.msk [vmem:[#allocation4 + $0xe8] sm:$0xff] %vm701, %v3445
      %3478 = vst.msk [vmem:[#allocation4 + $0xf0] sm:$0xff] %vm701, %v3446
      %3479 = vst.msk [vmem:[#allocation4 + $0xf8] sm:$0xff] %vm701, %v3447
      %v3480 = vld [vmem:[%s1652] sm:$0xf]
      %v3481 = vld [vmem:[%s1652 + $0x4] sm:$0xf]
      %v3482 = vld [vmem:[%s1652 + $0x8] sm:$0xf]
      %v3483 = vld [vmem:[%s1652 + $0xc] sm:$0xf]
      %v3484 = vld [vmem:[%s1652 + $0x10] sm:$0xf]
      %v3485 = vld [vmem:[%s1652 + $0x14] sm:$0xf]
      %v3486 = vld [vmem:[%s1652 + $0x18] sm:$0xf]
      %v3487 = vld [vmem:[%s1652 + $0x1c] sm:$0xf]
      %v3488 = vld [vmem:[%s1652 + $0x20] sm:$0xf]
      %v3489 = vld [vmem:[%s1652 + $0x24] sm:$0xf]
      %v3490 = vld [vmem:[%s1652 + $0x28] sm:$0xf]
      %v3491 = vld [vmem:[%s1652 + $0x2c] sm:$0xf]
      %v3492 = vld [vmem:[%s1652 + $0x30] sm:$0xf]
      %v3493 = vld [vmem:[%s1652 + $0x34] sm:$0xf]
      %v3494 = vld [vmem:[%s1652 + $0x38] sm:$0xf]
      %v3495 = vld [vmem:[%s1652 + $0x3c] sm:$0xf]
      %v3496 = vld [vmem:[%s1652 + $0x40] sm:$0xf]
      %v3497 = vld [vmem:[%s1652 + $0x44] sm:$0xf]
      %v3498 = vld [vmem:[%s1652 + $0x48] sm:$0xf]
      %v3499 = vld [vmem:[%s1652 + $0x4c] sm:$0xf]
      %v3500 = vld [vmem:[%s1652 + $0x50] sm:$0xf]
      %v3501 = vld [vmem:[%s1652 + $0x54] sm:$0xf]
      %v3502 = vld [vmem:[%s1652 + $0x58] sm:$0xf]
      %v3503 = vld [vmem:[%s1652 + $0x5c] sm:$0xf]
      %v3504 = vld [vmem:[%s1652 + $0x60] sm:$0xf]
      %v3505 = vld [vmem:[%s1652 + $0x64] sm:$0xf]
      %v3506 = vld [vmem:[%s1652 + $0x68] sm:$0xf]
      %v3507 = vld [vmem:[%s1652 + $0x6c] sm:$0xf]
      %v3508 = vld [vmem:[%s1652 + $0x70] sm:$0xf]
      %v3509 = vld [vmem:[%s1652 + $0x74] sm:$0xf]
      %v3510 = vld [vmem:[%s1652 + $0x78] sm:$0xf]
      %v3511 = vld [vmem:[%s1652 + $0x7c] sm:$0xf]
      %v3512 = vld [vmem:[#allocation4] sm:$0xff]
      %v3513 = vld [vmem:[#allocation4 + $0x8] sm:$0xff]
      %v3514 = vld [vmem:[#allocation4 + $0x10] sm:$0xff]
      %v3515 = vld [vmem:[#allocation4 + $0x18] sm:$0xff]
      %v3516 = vld [vmem:[#allocation4 + $0x20] sm:$0xff]
      %v3517 = vld [vmem:[#allocation4 + $0x28] sm:$0xff]
      %v3518 = vld [vmem:[#allocation4 + $0x30] sm:$0xff]
      %v3519 = vld [vmem:[#allocation4 + $0x38] sm:$0xff]
      %v3520 = vld [vmem:[#allocation4 + $0x40] sm:$0xff]
      %v3521 = vld [vmem:[#allocation4 + $0x48] sm:$0xff]
      %v3522 = vld [vmem:[#allocation4 + $0x50] sm:$0xff]
      %v3523 = vld [vmem:[#allocation4 + $0x58] sm:$0xff]
      %v3524 = vld [vmem:[#allocation4 + $0x60] sm:$0xff]
      %v3525 = vld [vmem:[#allocation4 + $0x68] sm:$0xff]
      %v3526 = vld [vmem:[#allocation4 + $0x70] sm:$0xff]
      %v3527 = vld [vmem:[#allocation4 + $0x78] sm:$0xff]
      %v3528 = vld [vmem:[#allocation4 + $0x80] sm:$0xff]
      %v3529 = vld [vmem:[#allocation4 + $0x88] sm:$0xff]
      %v3530 = vld [vmem:[#allocation4 + $0x90] sm:$0xff]
      %v3531 = vld [vmem:[#allocation4 + $0x98] sm:$0xff]
      %v3532 = vld [vmem:[#allocation4 + $0xa0] sm:$0xff]
      %v3533 = vld [vmem:[#allocation4 + $0xa8] sm:$0xff]
      %v3534 = vld [vmem:[#allocation4 + $0xb0] sm:$0xff]
      %v3535 = vld [vmem:[#allocation4 + $0xb8] sm:$0xff]
      %v3536 = vld [vmem:[#allocation4 + $0xc0] sm:$0xff]
      %v3537 = vld [vmem:[#allocation4 + $0xc8] sm:$0xff]
      %v3538 = vld [vmem:[#allocation4 + $0xd0] sm:$0xff]
      %v3539 = vld [vmem:[#allocation4 + $0xd8] sm:$0xff]
      %v3540 = vld [vmem:[#allocation4 + $0xe0] sm:$0xff]
      %v3541 = vld [vmem:[#allocation4 + $0xe8] sm:$0xff]
      %v3542 = vld [vmem:[#allocation4 + $0xf0] sm:$0xff]
      %v3543 = vld [vmem:[#allocation4 + $0xf8] sm:$0xff]
      %s3544 = scalar_lea.vmem %s1, 28
      %v3545 = vld [vmem:[%s3544] sm:$0xf]
      %v3578 = vunpack.c.l.b16 %v3480
      %v3579 = vunpack.c.l.b16 %v3481
      %v3580 = vunpack.c.l.b16 %v3482
      %v3581 = vunpack.c.l.b16 %v3483
      %v3582 = vunpack.c.l.b16 %v3484
      %v3583 = vunpack.c.l.b16 %v3485
      %v3584 = vunpack.c.l.b16 %v3486
      %v3585 = vunpack.c.l.b16 %v3487
      %v3586 = vunpack.c.l.b16 %v3488
      %v3587 = vunpack.c.l.b16 %v3489
      %v3588 = vunpack.c.l.b16 %v3490
      %v3589 = vunpack.c.l.b16 %v3491
      %v3590 = vunpack.c.l.b16 %v3492
      %v3591 = vunpack.c.l.b16 %v3493
      %v3592 = vunpack.c.l.b16 %v3494
      %v3593 = vunpack.c.l.b16 %v3495
      %v3594 = vunpack.c.l.b16 %v3496
      %v3595 = vunpack.c.l.b16 %v3497
      %v3596 = vunpack.c.l.b16 %v3498
      %v3597 = vunpack.c.l.b16 %v3499
      %v3598 = vunpack.c.l.b16 %v3500
      %v3599 = vunpack.c.l.b16 %v3501
      %v3600 = vunpack.c.l.b16 %v3502
      %v3601 = vunpack.c.l.b16 %v3503
      %v3602 = vunpack.c.l.b16 %v3504
      %v3603 = vunpack.c.l.b16 %v3505
      %v3604 = vunpack.c.l.b16 %v3506
      %v3605 = vunpack.c.l.b16 %v3507
      %v3606 = vunpack.c.l.b16 %v3508
      %v3607 = vunpack.c.l.b16 %v3509
      %v3608 = vunpack.c.l.b16 %v3510
      %v3609 = vunpack.c.l.b16 %v3511
      %v3610 = vpack.c.b16 %v3579, %v3578
      %v3611 = vpack.c.b16 %v3581, %v3580
      %v3612 = vpack.c.b16 %v3583, %v3582
      %v3613 = vpack.c.b16 %v3585, %v3584
      %v3614 = vpack.c.b16 %v3587, %v3586
      %v3615 = vpack.c.b16 %v3589, %v3588
      %v3616 = vpack.c.b16 %v3591, %v3590
      %v3617 = vpack.c.b16 %v3593, %v3592
      %v3618 = vpack.c.b16 %v3595, %v3594
      %v3619 = vpack.c.b16 %v3597, %v3596
      %v3620 = vpack.c.b16 %v3599, %v3598
      %v3621 = vpack.c.b16 %v3601, %v3600
      %v3622 = vpack.c.b16 %v3603, %v3602
      %v3623 = vpack.c.b16 %v3605, %v3604
      %v3624 = vpack.c.b16 %v3607, %v3606
      %v3625 = vpack.c.b16 %v3609, %v3608
      %v3627 = vsel %vm951, %v3610, 0
      %v3630 = vsel %vm951, %v3611, 0
      %v3633 = vsel %vm951, %v3612, 0
      %v3636 = vsel %vm951, %v3613, 0
      %v3639 = vsel %vm951, %v3614, 0
      %v3642 = vsel %vm951, %v3615, 0
      %v3645 = vsel %vm951, %v3616, 0
      %v3648 = vsel %vm951, %v3617, 0
      %v3651 = vsel %vm951, %v3618, 0
      %v3654 = vsel %vm951, %v3619, 0
      %v3657 = vsel %vm951, %v3620, 0
      %v3660 = vsel %vm951, %v3621, 0
      %v3663 = vsel %vm951, %v3622, 0
      %v3666 = vsel %vm951, %v3623, 0
      %v3669 = vsel %vm951, %v3624, 0
      %v3672 = vsel %vm951, %v3625, 0
      %v3675 = vsel %vm1000, %v3545, 0
      %3677 = vmatprep.subr.bf16.mxu0 0
      %3678 = vmatpush1.bf16.msra.mxu0 0
      %3679 = vmatprep.subr.bf16.mxu0 0
      %3680 = vmatpush1.bf16.msra.mxu0 0
      %3681 = vmatprep.subr.bf16.mxu0 0
      %3682 = vmatpush1.bf16.msra.mxu0 0
      %3683 = vmatprep.subr.bf16.mxu0 0
      %3684 = vmatpush1.bf16.msra.mxu0 0
      %3685 = vmatprep.subr.bf16.mxu0 0
      %3686 = vmatpush1.bf16.msra.mxu0 0
      %3687 = vmatprep.subr.bf16.mxu0 0
      %3688 = vmatpush1.bf16.msra.mxu0 0
      %3689 = vmatprep.subr.bf16.mxu0 0
      %3690 = vmatpush1.bf16.msra.mxu0 0
      %3691 = vmatprep.subr.bf16.mxu0 0
      %3692 = vmatpush1.bf16.msra.mxu0 %v3675
      %3693 = vmatprep.subr.bf16.mxu0 0
      %3694 = vmatpush2.bf16.msra.mxu0 0
      %3695 = vmatprep.subr.bf16.mxu0 0
      %3696 = vmatpush2.bf16.msra.mxu0 0
      %3697 = vmatprep.subr.bf16.mxu0 0
      %3698 = vmatpush2.bf16.msra.mxu0 0
      %3699 = vmatprep.subr.bf16.mxu0 0
      %3700 = vmatpush2.bf16.msra.mxu0 0
      %3701 = vmatprep.subr.bf16.mxu0 0
      %3702 = vmatpush2.bf16.msra.mxu0 0
      %3703 = vmatprep.subr.bf16.mxu0 0
      %3704 = vmatpush2.bf16.msra.mxu0 0
      %3705 = vmatprep.subr.bf16.mxu0 0
      %3706 = vmatpush2.bf16.msra.mxu0 0
      %3707 = vmatprep.subr.bf16.mxu0 0
      %3708 = vmatpush2.bf16.msra.mxu0 0
      %3709 = vmatprep.mubr.bf16.mxu0 0
      %3710 = vmatmul.mubr.bf16.gmra.mxu0 %v3627
      %v3711 = vpop.f32.mrf.mxu0
      %v3712 = vadd.f32 0.0, %v3711
      %v3713 = vpop.f32.mrf.mxu0
      %v3714 = vpop.f32.mrf.mxu0
      %v3715 = vadd.f32 0.0, %v3714
      %v3716 = vpop.f32.mrf.mxu0
      %3717 = vmatprep.mubr.bf16.mxu0 0
      %3718 = vmatmul.mubr.bf16.gmra.mxu0 %v3630
      %v3719 = vpop.f32.mrf.mxu0
      %v3720 = vadd.f32 0.0, %v3719
      %v3721 = vpop.f32.mrf.mxu0
      %v3722 = vpop.f32.mrf.mxu0
      %v3723 = vadd.f32 0.0, %v3722
      %v3724 = vpop.f32.mrf.mxu0
      %3725 = vmatprep.mubr.bf16.mxu0 0
      %3726 = vmatmul.mubr.bf16.gmra.mxu0 %v3633
      %v3727 = vpop.f32.mrf.mxu0
      %v3728 = vadd.f32 0.0, %v3727
      %v3729 = vpop.f32.mrf.mxu0
      %v3730 = vpop.f32.mrf.mxu0
      %v3731 = vadd.f32 0.0, %v3730
      %v3732 = vpop.f32.mrf.mxu0
      %3733 = vmatprep.mubr.bf16.mxu0 0
      %3734 = vmatmul.mubr.bf16.gmra.mxu0 %v3636
      %v3735 = vpop.f32.mrf.mxu0
      %v3736 = vadd.f32 0.0, %v3735
      %v3737 = vpop.f32.mrf.mxu0
      %v3738 = vpop.f32.mrf.mxu0
      %v3739 = vadd.f32 0.0, %v3738
      %v3740 = vpop.f32.mrf.mxu0
      %3741 = vmatprep.mubr.bf16.mxu0 0
      %3742 = vmatmul.mubr.bf16.gmra.mxu0 %v3639
      %v3743 = vpop.f32.mrf.mxu0
      %v3744 = vadd.f32 0.0, %v3743
      %v3745 = vpop.f32.mrf.mxu0
      %v3746 = vpop.f32.mrf.mxu0
      %v3747 = vadd.f32 0.0, %v3746
      %v3748 = vpop.f32.mrf.mxu0
      %3749 = vmatprep.mubr.bf16.mxu0 0
      %3750 = vmatmul.mubr.bf16.gmra.mxu0 %v3642
      %v3751 = vpop.f32.mrf.mxu0
      %v3752 = vadd.f32 0.0, %v3751
      %v3753 = vpop.f32.mrf.mxu0
      %v3754 = vpop.f32.mrf.mxu0
      %v3755 = vadd.f32 0.0, %v3754
      %v3756 = vpop.f32.mrf.mxu0
      %3757 = vmatprep.mubr.bf16.mxu0 0
      %3758 = vmatmul.mubr.bf16.gmra.mxu0 %v3645
      %v3759 = vpop.f32.mrf.mxu0
      %v3760 = vadd.f32 0.0, %v3759
      %v3761 = vpop.f32.mrf.mxu0
      %v3762 = vpop.f32.mrf.mxu0
      %v3763 = vadd.f32 0.0, %v3762
      %v3764 = vpop.f32.mrf.mxu0
      %3765 = vmatprep.mubr.bf16.mxu0 0
      %3766 = vmatmul.mubr.bf16.gmra.mxu0 %v3648
      %v3767 = vpop.f32.mrf.mxu0
      %v3768 = vadd.f32 0.0, %v3767
      %v3769 = vpop.f32.mrf.mxu0
      %v3770 = vpop.f32.mrf.mxu0
      %v3771 = vadd.f32 0.0, %v3770
      %v3772 = vpop.f32.mrf.mxu0
      %3773 = vmatprep.mubr.bf16.mxu0 0
      %3774 = vmatmul.mubr.bf16.gmra.mxu0 %v3651
      %v3775 = vpop.f32.mrf.mxu0
      %v3776 = vadd.f32 0.0, %v3775
      %v3777 = vpop.f32.mrf.mxu0
      %v3778 = vpop.f32.mrf.mxu0
      %v3779 = vadd.f32 0.0, %v3778
      %v3780 = vpop.f32.mrf.mxu0
      %3781 = vmatprep.mubr.bf16.mxu0 0
      %3782 = vmatmul.mubr.bf16.gmra.mxu0 %v3654
      %v3783 = vpop.f32.mrf.mxu0
      %v3784 = vadd.f32 0.0, %v3783
      %v3785 = vpop.f32.mrf.mxu0
      %v3786 = vpop.f32.mrf.mxu0
      %v3787 = vadd.f32 0.0, %v3786
      %v3788 = vpop.f32.mrf.mxu0
      %3789 = vmatprep.mubr.bf16.mxu0 0
      %3790 = vmatmul.mubr.bf16.gmra.mxu0 %v3657
      %v3791 = vpop.f32.mrf.mxu0
      %v3792 = vadd.f32 0.0, %v3791
      %v3793 = vpop.f32.mrf.mxu0
      %v3794 = vpop.f32.mrf.mxu0
      %v3795 = vadd.f32 0.0, %v3794
      %v3796 = vpop.f32.mrf.mxu0
      %3797 = vmatprep.mubr.bf16.mxu0 0
      %3798 = vmatmul.mubr.bf16.gmra.mxu0 %v3660
      %v3799 = vpop.f32.mrf.mxu0
      %v3800 = vadd.f32 0.0, %v3799
      %v3801 = vpop.f32.mrf.mxu0
      %v3802 = vpop.f32.mrf.mxu0
      %v3803 = vadd.f32 0.0, %v3802
      %v3804 = vpop.f32.mrf.mxu0
      %3805 = vmatprep.mubr.bf16.mxu0 0
      %3806 = vmatmul.mubr.bf16.gmra.mxu0 %v3663
      %v3807 = vpop.f32.mrf.mxu0
      %v3808 = vadd.f32 0.0, %v3807
      %v3809 = vpop.f32.mrf.mxu0
      %v3810 = vpop.f32.mrf.mxu0
      %v3811 = vadd.f32 0.0, %v3810
      %v3812 = vpop.f32.mrf.mxu0
      %3813 = vmatprep.mubr.bf16.mxu0 0
      %3814 = vmatmul.mubr.bf16.gmra.mxu0 %v3666
      %v3815 = vpop.f32.mrf.mxu0
      %v3816 = vadd.f32 0.0, %v3815
      %v3817 = vpop.f32.mrf.mxu0
      %v3818 = vpop.f32.mrf.mxu0
      %v3819 = vadd.f32 0.0, %v3818
      %v3820 = vpop.f32.mrf.mxu0
      %3821 = vmatprep.mubr.bf16.mxu0 0
      %3822 = vmatmul.mubr.bf16.gmra.mxu0 %v3669
      %v3823 = vpop.f32.mrf.mxu0
      %v3824 = vadd.f32 0.0, %v3823
      %v3825 = vpop.f32.mrf.mxu0
      %v3826 = vpop.f32.mrf.mxu0
      %v3827 = vadd.f32 0.0, %v3826
      %v3828 = vpop.f32.mrf.mxu0
      %3829 = vmatprep.mubr.bf16.mxu0 0
      %3830 = vmatmul.mubr.bf16.gmra.mxu0 %v3672
      %v3831 = vpop.f32.mrf.mxu0
      %v3832 = vadd.f32 0.0, %v3831
      %v3833 = vpop.f32.mrf.mxu0
      %v3834 = vpop.f32.mrf.mxu0
      %v3835 = vadd.f32 0.0, %v3834
      %v3836 = vpop.f32.mrf.mxu0
      %3837 = vdwg.mxu0
      %v3838 = vadd.f32 %v3512, %v3712
      %v3839 = vadd.f32 %v3513, %v3715
      %v3840 = vadd.f32 %v3514, %v3720
      %v3841 = vadd.f32 %v3515, %v3723
      %v3842 = vadd.f32 %v3516, %v3728
      %v3843 = vadd.f32 %v3517, %v3731
      %v3844 = vadd.f32 %v3518, %v3736
      %v3845 = vadd.f32 %v3519, %v3739
      %v3846 = vadd.f32 %v3520, %v3744
      %v3847 = vadd.f32 %v3521, %v3747
      %v3848 = vadd.f32 %v3522, %v3752
      %v3849 = vadd.f32 %v3523, %v3755
      %v3850 = vadd.f32 %v3524, %v3760
      %v3851 = vadd.f32 %v3525, %v3763
      %v3852 = vadd.f32 %v3526, %v3768
      %v3853 = vadd.f32 %v3527, %v3771
      %v3854 = vadd.f32 %v3528, %v3776
      %v3855 = vadd.f32 %v3529, %v3779
      %v3856 = vadd.f32 %v3530, %v3784
      %v3857 = vadd.f32 %v3531, %v3787
      %v3858 = vadd.f32 %v3532, %v3792
      %v3859 = vadd.f32 %v3533, %v3795
      %v3860 = vadd.f32 %v3534, %v3800
      %v3861 = vadd.f32 %v3535, %v3803
      %v3862 = vadd.f32 %v3536, %v3808
      %v3863 = vadd.f32 %v3537, %v3811
      %v3864 = vadd.f32 %v3538, %v3816
      %v3865 = vadd.f32 %v3539, %v3819
      %v3866 = vadd.f32 %v3540, %v3824
      %v3867 = vadd.f32 %v3541, %v3827
      %v3868 = vadd.f32 %v3542, %v3832
      %v3869 = vadd.f32 %v3543, %v3835
      %3870 = vst.msk [vmem:[#allocation4] sm:$0xff] %vm701, %v3838
      %3871 = vst.msk [vmem:[#allocation4 + $0x8] sm:$0xff] %vm701, %v3839
      %3872 = vst.msk [vmem:[#allocation4 + $0x10] sm:$0xff] %vm701, %v3840
      %3873 = vst.msk [vmem:[#allocation4 + $0x18] sm:$0xff] %vm701, %v3841
      %3874 = vst.msk [vmem:[#allocation4 + $0x20] sm:$0xff] %vm701, %v3842
      %3875 = vst.msk [vmem:[#allocation4 + $0x28] sm:$0xff] %vm701, %v3843
      %3876 = vst.msk [vmem:[#allocation4 + $0x30] sm:$0xff] %vm701, %v3844
      %3877 = vst.msk [vmem:[#allocation4 + $0x38] sm:$0xff] %vm701, %v3845
      %3878 = vst.msk [vmem:[#allocation4 + $0x40] sm:$0xff] %vm701, %v3846
      %3879 = vst.msk [vmem:[#allocation4 + $0x48] sm:$0xff] %vm701, %v3847
      %3880 = vst.msk [vmem:[#allocation4 + $0x50] sm:$0xff] %vm701, %v3848
      %3881 = vst.msk [vmem:[#allocation4 + $0x58] sm:$0xff] %vm701, %v3849
      %3882 = vst.msk [vmem:[#allocation4 + $0x60] sm:$0xff] %vm701, %v3850
      %3883 = vst.msk [vmem:[#allocation4 + $0x68] sm:$0xff] %vm701, %v3851
      %3884 = vst.msk [vmem:[#allocation4 + $0x70] sm:$0xff] %vm701, %v3852
      %3885 = vst.msk [vmem:[#allocation4 + $0x78] sm:$0xff] %vm701, %v3853
      %3886 = vst.msk [vmem:[#allocation4 + $0x80] sm:$0xff] %vm701, %v3854
      %3887 = vst.msk [vmem:[#allocation4 + $0x88] sm:$0xff] %vm701, %v3855
      %3888 = vst.msk [vmem:[#allocation4 + $0x90] sm:$0xff] %vm701, %v3856
      %3889 = vst.msk [vmem:[#allocation4 + $0x98] sm:$0xff] %vm701, %v3857
      %3890 = vst.msk [vmem:[#allocation4 + $0xa0] sm:$0xff] %vm701, %v3858
      %3891 = vst.msk [vmem:[#allocation4 + $0xa8] sm:$0xff] %vm701, %v3859
      %3892 = vst.msk [vmem:[#allocation4 + $0xb0] sm:$0xff] %vm701, %v3860
      %3893 = vst.msk [vmem:[#allocation4 + $0xb8] sm:$0xff] %vm701, %v3861
      %3894 = vst.msk [vmem:[#allocation4 + $0xc0] sm:$0xff] %vm701, %v3862
      %3895 = vst.msk [vmem:[#allocation4 + $0xc8] sm:$0xff] %vm701, %v3863
      %3896 = vst.msk [vmem:[#allocation4 + $0xd0] sm:$0xff] %vm701, %v3864
      %3897 = vst.msk [vmem:[#allocation4 + $0xd8] sm:$0xff] %vm701, %v3865
      %3898 = vst.msk [vmem:[#allocation4 + $0xe0] sm:$0xff] %vm701, %v3866
      %3899 = vst.msk [vmem:[#allocation4 + $0xe8] sm:$0xff] %vm701, %v3867
      %3900 = vst.msk [vmem:[#allocation4 + $0xf0] sm:$0xff] %vm701, %v3868
      %3901 = vst.msk [vmem:[#allocation4 + $0xf8] sm:$0xff] %vm701, %v3869
      %v3902 = vld [vmem:[#allocation2] sm:$0xe]
      %v3903 = vld [vmem:[#allocation2 + $0x4] sm:$0xf]
      %v3904 = vld [vmem:[#allocation2 + $0x8] sm:$0x1]
      %v3905 = vld [vmem:[#allocation2 + $0xc] sm:$0xe]
      %v3906 = vld [vmem:[#allocation2 + $0x10] sm:$0xf]
      %v3907 = vld [vmem:[#allocation2 + $0x14] sm:$0x1]
      %v3908 = vld [vmem:[#allocation2 + $0x18] sm:$0xe]
      %v3909 = vld [vmem:[#allocation2 + $0x1c] sm:$0xf]
      %v3910 = vld [vmem:[#allocation2 + $0x20] sm:$0x1]
      %v3911 = vld [vmem:[#allocation2 + $0x24] sm:$0xe]
      %v3912 = vld [vmem:[#allocation2 + $0x28] sm:$0xf]
      %v3913 = vld [vmem:[#allocation2 + $0x2c] sm:$0x1]
      %v3914 = vld [vmem:[#allocation2 + $0x30] sm:$0xe]
      %v3915 = vld [vmem:[#allocation2 + $0x34] sm:$0xf]
      %v3916 = vld [vmem:[#allocation2 + $0x38] sm:$0x1]
      %v3917 = vld [vmem:[#allocation2 + $0x3c] sm:$0xe]
      %v3918 = vld [vmem:[#allocation2 + $0x40] sm:$0xf]
      %v3919 = vld [vmem:[#allocation2 + $0x44] sm:$0x1]
      %v3920 = vld [vmem:[#allocation2 + $0x48] sm:$0xe]
      %v3921 = vld [vmem:[#allocation2 + $0x4c] sm:$0xf]
      %v3922 = vld [vmem:[#allocation2 + $0x50] sm:$0x1]
      %v3923 = vld [vmem:[#allocation2 + $0x54] sm:$0xe]
      %v3924 = vld [vmem:[#allocation2 + $0x58] sm:$0xf]
      %v3925 = vld [vmem:[#allocation2 + $0x5c] sm:$0x1]
      %v3926 = vld [vmem:[#allocation2 + $0x60] sm:$0xe]
      %v3927 = vld [vmem:[#allocation2 + $0x64] sm:$0xf]
      %v3928 = vld [vmem:[#allocation2 + $0x68] sm:$0x1]
      %v3929 = vld [vmem:[#allocation2 + $0x6c] sm:$0xe]
      %v3930 = vld [vmem:[#allocation2 + $0x70] sm:$0xf]
      %v3931 = vld [vmem:[#allocation2 + $0x74] sm:$0x1]
      %v3932 = vld [vmem:[#allocation2 + $0x78] sm:$0xe]
      %v3933 = vld [vmem:[#allocation2 + $0x7c] sm:$0xf]
      %v3934 = vld [vmem:[#allocation2 + $0x80] sm:$0x1]
      %v3935 = vld [vmem:[#allocation2 + $0x84] sm:$0xe]
      %v3936 = vld [vmem:[#allocation2 + $0x88] sm:$0xf]
      %v3937 = vld [vmem:[#allocation2 + $0x8c] sm:$0x1]
      %v3938 = vld [vmem:[#allocation2 + $0x90] sm:$0xe]
      %v3939 = vld [vmem:[#allocation2 + $0x94] sm:$0xf]
      %v3940 = vld [vmem:[#allocation2 + $0x98] sm:$0x1]
      %v3941 = vld [vmem:[#allocation2 + $0x9c] sm:$0xe]
      %v3942 = vld [vmem:[#allocation2 + $0xa0] sm:$0xf]
      %v3943 = vld [vmem:[#allocation2 + $0xa4] sm:$0x1]
      %v3944 = vld [vmem:[#allocation2 + $0xa8] sm:$0xe]
      %v3945 = vld [vmem:[#allocation2 + $0xac] sm:$0xf]
      %v3946 = vld [vmem:[#allocation2 + $0xb0] sm:$0x1]
      %v3947 = vld [vmem:[#allocation2 + $0xb4] sm:$0xe]
      %v3948 = vld [vmem:[#allocation2 + $0xb8] sm:$0xf]
      %v3949 = vld [vmem:[#allocation2 + $0xbc] sm:$0x1]
      %v3950 = vld [vmem:[#allocation2 + $0xc0] sm:$0xe]
      %v3951 = vld [vmem:[#allocation2 + $0xc4] sm:$0xf]
      %v3952 = vld [vmem:[#allocation2 + $0xc8] sm:$0x1]
      %v3953 = vld [vmem:[#allocation2 + $0xcc] sm:$0xe]
      %v3954 = vld [vmem:[#allocation2 + $0xd0] sm:$0xf]
      %v3955 = vld [vmem:[#allocation2 + $0xd4] sm:$0x1]
      %vm4010 = vcmask 1042432
      %vm4011 = vcmask 1046532
      %vm4012 = vmor %vm4010, %vm4011
      %v4013 = vrot.slane %v3902, 5
      %v4014 = vrot.slane %v4013, 4
      %v4015 = vrot.slane %v3903, 5
      %v4016 = vsel %vm4012, %v4014, %v4015
      %v4017 = vrot.slane %v4015, 4
      %v4018 = vrot.slane %v3904, 5
      %v4019 = vsel %vm4012, %v4017, %v4018
      %v4020 = vrot.slane %v3905, 5
      %v4021 = vrot.slane %v4020, 4
      %v4022 = vrot.slane %v3906, 5
      %v4023 = vsel %vm4012, %v4021, %v4022
      %v4024 = vrot.slane %v4022, 4
      %v4025 = vrot.slane %v3907, 5
      %v4026 = vsel %vm4012, %v4024, %v4025
      %v4027 = vrot.slane %v3908, 5
      %v4028 = vrot.slane %v4027, 4
      %v4029 = vrot.slane %v3909, 5
      %v4030 = vsel %vm4012, %v4028, %v4029
      %v4031 = vrot.slane %v4029, 4
      %v4032 = vrot.slane %v3910, 5
      %v4033 = vsel %vm4012, %v4031, %v4032
      %v4034 = vrot.slane %v3911, 5
      %v4035 = vrot.slane %v4034, 4
      %v4036 = vrot.slane %v3912, 5
      %v4037 = vsel %vm4012, %v4035, %v4036
      %v4038 = vrot.slane %v4036, 4
      %v4039 = vrot.slane %v3913, 5
      %v4040 = vsel %vm4012, %v4038, %v4039
      %v4041 = vrot.slane %v3914, 5
      %v4042 = vrot.slane %v4041, 4
      %v4043 = vrot.slane %v3915, 5
      %v4044 = vsel %vm4012, %v4042, %v4043
      %v4045 = vrot.slane %v4043, 4
      %v4046 = vrot.slane %v3916, 5
      %v4047 = vsel %vm4012, %v4045, %v4046
      %v4048 = vrot.slane %v3917, 5
      %v4049 = vrot.slane %v4048, 4
      %v4050 = vrot.slane %v3918, 5
      %v4051 = vsel %vm4012, %v4049, %v4050
      %v4052 = vrot.slane %v4050, 4
      %v4053 = vrot.slane %v3919, 5
      %v4054 = vsel %vm4012, %v4052, %v4053
      %v4055 = vrot.slane %v3920, 5
      %v4056 = vrot.slane %v4055, 4
      %v4057 = vrot.slane %v3921, 5
      %v4058 = vsel %vm4012, %v4056, %v4057
      %v4059 = vrot.slane %v4057, 4
      %v4060 = vrot.slane %v3922, 5
      %v4061 = vsel %vm4012, %v4059, %v4060
      %v4062 = vrot.slane %v3923, 5
      %v4063 = vrot.slane %v4062, 4
      %v4064 = vrot.slane %v3924, 5
      %v4065 = vsel %vm4012, %v4063, %v4064
      %v4066 = vrot.slane %v4064, 4
      %v4067 = vrot.slane %v3925, 5
      %v4068 = vsel %vm4012, %v4066, %v4067
      %v4069 = vrot.slane %v3926, 5
      %v4070 = vrot.slane %v4069, 4
      %v4071 = vrot.slane %v3927, 5
      %v4072 = vsel %vm4012, %v4070, %v4071
      %v4073 = vrot.slane %v4071, 4
      %v4074 = vrot.slane %v3928, 5
      %v4075 = vsel %vm4012, %v4073, %v4074
      %v4076 = vrot.slane %v3929, 5
      %v4077 = vrot.slane %v4076, 4
      %v4078 = vrot.slane %v3930, 5
      %v4079 = vsel %vm4012, %v4077, %v4078
      %v4080 = vrot.slane %v4078, 4
      %v4081 = vrot.slane %v3931, 5
      %v4082 = vsel %vm4012, %v4080, %v4081
      %v4083 = vrot.slane %v3932, 5
      %v4084 = vrot.slane %v4083, 4
      %v4085 = vrot.slane %v3933, 5
      %v4086 = vsel %vm4012, %v4084, %v4085
      %v4087 = vrot.slane %v4085, 4
      %v4088 = vrot.slane %v3934, 5
      %v4089 = vsel %vm4012, %v4087, %v4088
      %v4090 = vrot.slane %v3935, 5
      %v4091 = vrot.slane %v4090, 4
      %v4092 = vrot.slane %v3936, 5
      %v4093 = vsel %vm4012, %v4091, %v4092
      %v4094 = vrot.slane %v4092, 4
      %v4095 = vrot.slane %v3937, 5
      %v4096 = vsel %vm4012, %v4094, %v4095
      %v4097 = vrot.slane %v3938, 5
      %v4098 = vrot.slane %v4097, 4
      %v4099 = vrot.slane %v3939, 5
      %v4100 = vsel %vm4012, %v4098, %v4099
      %v4101 = vrot.slane %v4099, 4
      %v4102 = vrot.slane %v3940, 5
      %v4103 = vsel %vm4012, %v4101, %v4102
      %v4104 = vrot.slane %v3941, 5
      %v4105 = vrot.slane %v4104, 4
      %v4106 = vrot.slane %v3942, 5
      %v4107 = vsel %vm4012, %v4105, %v4106
      %v4108 = vrot.slane %v4106, 4
      %v4109 = vrot.slane %v3943, 5
      %v4110 = vsel %vm4012, %v4108, %v4109
      %v4111 = vrot.slane %v3944, 5
      %v4112 = vrot.slane %v4111, 4
      %v4113 = vrot.slane %v3945, 5
      %v4114 = vsel %vm4012, %v4112, %v4113
      %v4115 = vrot.slane %v4113, 4
      %v4116 = vrot.slane %v3946, 5
      %v4117 = vsel %vm4012, %v4115, %v4116
      %v4118 = vrot.slane %v3947, 5
      %v4119 = vrot.slane %v4118, 4
      %v4120 = vrot.slane %v3948, 5
      %v4121 = vsel %vm4012, %v4119, %v4120
      %v4122 = vrot.slane %v4120, 4
      %v4123 = vrot.slane %v3949, 5
      %v4124 = vsel %vm4012, %v4122, %v4123
      %v4125 = vrot.slane %v3950, 5
      %v4126 = vrot.slane %v4125, 4
      %v4127 = vrot.slane %v3951, 5
      %v4128 = vsel %vm4012, %v4126, %v4127
      %v4129 = vrot.slane %v4127, 4
      %v4130 = vrot.slane %v3952, 5
      %v4131 = vsel %vm4012, %v4129, %v4130
      %v4132 = vrot.slane %v3953, 5
      %v4133 = vrot.slane %v4132, 4
      %v4134 = vrot.slane %v3954, 5
      %v4135 = vsel %vm4012, %v4133, %v4134
      %v4136 = vrot.slane %v4134, 4
      %v4137 = vrot.slane %v3955, 5
      %v4138 = vsel %vm4012, %v4136, %v4137
      %4175 = vst.msk [vmem:[#allocation3] sm:$0xf] %vm172, %v4016
      %4176 = vst.msk [vmem:[#allocation3 + $0x4] sm:$0xf] %vm172, %v4019
      %4177 = vst.msk [vmem:[#allocation3 + $0x8] sm:$0xf] %vm172, %v4023
      %4178 = vst.msk [vmem:[#allocation3 + $0xc] sm:$0xf] %vm172, %v4026
      %4179 = vst.msk [vmem:[#allocation3 + $0x10] sm:$0xf] %vm172, %v4030
      %4180 = vst.msk [vmem:[#allocation3 + $0x14] sm:$0xf] %vm172, %v4033
      %4181 = vst.msk [vmem:[#allocation3 + $0x18] sm:$0xf] %vm172, %v4037
      %4182 = vst.msk [vmem:[#allocation3 + $0x1c] sm:$0xf] %vm172, %v4040
      %4183 = vst.msk [vmem:[#allocation3 + $0x20] sm:$0xf] %vm172, %v4044
      %4184 = vst.msk [vmem:[#allocation3 + $0x24] sm:$0xf] %vm172, %v4047
      %4185 = vst.msk [vmem:[#allocation3 + $0x28] sm:$0xf] %vm172, %v4051
      %4186 = vst.msk [vmem:[#allocation3 + $0x2c] sm:$0xf] %vm172, %v4054
      %4187 = vst.msk [vmem:[#allocation3 + $0x30] sm:$0xf] %vm172, %v4058
      %4188 = vst.msk [vmem:[#allocation3 + $0x34] sm:$0xf] %vm172, %v4061
      %4189 = vst.msk [vmem:[#allocation3 + $0x38] sm:$0xf] %vm172, %v4065
      %4190 = vst.msk [vmem:[#allocation3 + $0x3c] sm:$0xf] %vm172, %v4068
      %4191 = vst.msk [vmem:[#allocation3 + $0x40] sm:$0xf] %vm172, %v4072
      %4192 = vst.msk [vmem:[#allocation3 + $0x44] sm:$0xf] %vm172, %v4075
      %4193 = vst.msk [vmem:[#allocation3 + $0x48] sm:$0xf] %vm172, %v4079
      %4194 = vst.msk [vmem:[#allocation3 + $0x4c] sm:$0xf] %vm172, %v4082
      %4195 = vst.msk [vmem:[#allocation3 + $0x50] sm:$0xf] %vm172, %v4086
      %4196 = vst.msk [vmem:[#allocation3 + $0x54] sm:$0xf] %vm172, %v4089
      %4197 = vst.msk [vmem:[#allocation3 + $0x58] sm:$0xf] %vm172, %v4093
      %4198 = vst.msk [vmem:[#allocation3 + $0x5c] sm:$0xf] %vm172, %v4096
      %4199 = vst.msk [vmem:[#allocation3 + $0x60] sm:$0xf] %vm172, %v4100
      %4200 = vst.msk [vmem:[#allocation3 + $0x64] sm:$0xf] %vm172, %v4103
      %4201 = vst.msk [vmem:[#allocation3 + $0x68] sm:$0xf] %vm172, %v4107
      %4202 = vst.msk [vmem:[#allocation3 + $0x6c] sm:$0xf] %vm172, %v4110
      %4203 = vst.msk [vmem:[#allocation3 + $0x70] sm:$0xf] %vm172, %v4114
      %4204 = vst.msk [vmem:[#allocation3 + $0x74] sm:$0xf] %vm172, %v4117
      %4205 = vst.msk [vmem:[#allocation3 + $0x78] sm:$0xf] %vm172, %v4121
      %4206 = vst.msk [vmem:[#allocation3 + $0x7c] sm:$0xf] %vm172, %v4124
      %4207 = vst.msk [vmem:[#allocation3 + $0x80] sm:$0xf] %vm172, %v4128
      %4208 = vst.msk [vmem:[#allocation3 + $0x84] sm:$0xf] %vm172, %v4131
      %4209 = vst.msk [vmem:[#allocation3 + $0x88] sm:$0xf] %vm172, %v4135
      %4210 = vst.msk [vmem:[#allocation3 + $0x8c] sm:$0xf] %vm172, %v4138
      %v4211 = vld [vmem:[#allocation3] sm:$0xf]
      %v4212 = vld [vmem:[#allocation3 + $0x4] sm:$0xf]
      %v4213 = vld [vmem:[#allocation3 + $0x8] sm:$0xf]
      %v4214 = vld [vmem:[#allocation3 + $0xc] sm:$0xf]
      %v4215 = vld [vmem:[#allocation3 + $0x10] sm:$0xf]
      %v4216 = vld [vmem:[#allocation3 + $0x14] sm:$0xf]
      %v4217 = vld [vmem:[#allocation3 + $0x18] sm:$0xf]
      %v4218 = vld [vmem:[#allocation3 + $0x1c] sm:$0xf]
      %v4219 = vld [vmem:[#allocation3 + $0x20] sm:$0xf]
      %v4220 = vld [vmem:[#allocation3 + $0x24] sm:$0xf]
      %v4221 = vld [vmem:[#allocation3 + $0x28] sm:$0xf]
      %v4222 = vld [vmem:[#allocation3 + $0x2c] sm:$0xf]
      %v4223 = vld [vmem:[#allocation3 + $0x30] sm:$0xf]
      %v4224 = vld [vmem:[#allocation3 + $0x34] sm:$0xf]
      %v4225 = vld [vmem:[#allocation3 + $0x38] sm:$0xf]
      %v4226 = vld [vmem:[#allocation3 + $0x3c] sm:$0xf]
      %v4227 = vld [vmem:[#allocation3 + $0x40] sm:$0xf]
      %v4228 = vld [vmem:[#allocation3 + $0x44] sm:$0xf]
      %v4229 = vld [vmem:[#allocation3 + $0x48] sm:$0xf]
      %v4230 = vld [vmem:[#allocation3 + $0x4c] sm:$0xf]
      %v4231 = vld [vmem:[#allocation3 + $0x50] sm:$0xf]
      %v4232 = vld [vmem:[#allocation3 + $0x54] sm:$0xf]
      %v4233 = vld [vmem:[#allocation3 + $0x58] sm:$0xf]
      %v4234 = vld [vmem:[#allocation3 + $0x5c] sm:$0xf]
      %v4235 = vld [vmem:[#allocation3 + $0x60] sm:$0xf]
      %v4236 = vld [vmem:[#allocation3 + $0x64] sm:$0xf]
      %v4237 = vld [vmem:[#allocation3 + $0x68] sm:$0xf]
      %v4238 = vld [vmem:[#allocation3 + $0x6c] sm:$0xf]
      %v4239 = vld [vmem:[#allocation3 + $0x70] sm:$0xf]
      %v4240 = vld [vmem:[#allocation3 + $0x74] sm:$0xf]
      %v4241 = vld [vmem:[#allocation3 + $0x78] sm:$0xf]
      %v4242 = vld [vmem:[#allocation3 + $0x7c] sm:$0xf]
      %v4243 = vld [vmem:[#allocation4] sm:$0xff]
      %v4244 = vld [vmem:[#allocation4 + $0x8] sm:$0xff]
      %v4245 = vld [vmem:[#allocation4 + $0x10] sm:$0xff]
      %v4246 = vld [vmem:[#allocation4 + $0x18] sm:$0xff]
      %v4247 = vld [vmem:[#allocation4 + $0x20] sm:$0xff]
      %v4248 = vld [vmem:[#allocation4 + $0x28] sm:$0xff]
      %v4249 = vld [vmem:[#allocation4 + $0x30] sm:$0xff]
      %v4250 = vld [vmem:[#allocation4 + $0x38] sm:$0xff]
      %v4251 = vld [vmem:[#allocation4 + $0x40] sm:$0xff]
      %v4252 = vld [vmem:[#allocation4 + $0x48] sm:$0xff]
      %v4253 = vld [vmem:[#allocation4 + $0x50] sm:$0xff]
      %v4254 = vld [vmem:[#allocation4 + $0x58] sm:$0xff]
      %v4255 = vld [vmem:[#allocation4 + $0x60] sm:$0xff]
      %v4256 = vld [vmem:[#allocation4 + $0x68] sm:$0xff]
      %v4257 = vld [vmem:[#allocation4 + $0x70] sm:$0xff]
      %v4258 = vld [vmem:[#allocation4 + $0x78] sm:$0xff]
      %v4259 = vld [vmem:[#allocation4 + $0x80] sm:$0xff]
      %v4260 = vld [vmem:[#allocation4 + $0x88] sm:$0xff]
      %v4261 = vld [vmem:[#allocation4 + $0x90] sm:$0xff]
      %v4262 = vld [vmem:[#allocation4 + $0x98] sm:$0xff]
      %v4263 = vld [vmem:[#allocation4 + $0xa0] sm:$0xff]
      %v4264 = vld [vmem:[#allocation4 + $0xa8] sm:$0xff]
      %v4265 = vld [vmem:[#allocation4 + $0xb0] sm:$0xff]
      %v4266 = vld [vmem:[#allocation4 + $0xb8] sm:$0xff]
      %v4267 = vld [vmem:[#allocation4 + $0xc0] sm:$0xff]
      %v4268 = vld [vmem:[#allocation4 + $0xc8] sm:$0xff]
      %v4269 = vld [vmem:[#allocation4 + $0xd0] sm:$0xff]
      %v4270 = vld [vmem:[#allocation4 + $0xd8] sm:$0xff]
      %v4271 = vld [vmem:[#allocation4 + $0xe0] sm:$0xff]
      %v4272 = vld [vmem:[#allocation4 + $0xe8] sm:$0xff]
      %v4273 = vld [vmem:[#allocation4 + $0xf0] sm:$0xff]
      %v4274 = vld [vmem:[#allocation4 + $0xf8] sm:$0xff]
      %s4275 = scalar_lea.vmem %s1, 8
      %v4276 = vld [vmem:[%s4275] sm:$0xf]
      %v4309 = vunpack.c.l.b16 %v4211
      %v4310 = vunpack.c.l.b16 %v4212
      %v4311 = vunpack.c.l.b16 %v4213
      %v4312 = vunpack.c.l.b16 %v4214
      %v4313 = vunpack.c.l.b16 %v4215
      %v4314 = vunpack.c.l.b16 %v4216
      %v4315 = vunpack.c.l.b16 %v4217
      %v4316 = vunpack.c.l.b16 %v4218
      %v4317 = vunpack.c.l.b16 %v4219
      %v4318 = vunpack.c.l.b16 %v4220
      %v4319 = vunpack.c.l.b16 %v4221
      %v4320 = vunpack.c.l.b16 %v4222
      %v4321 = vunpack.c.l.b16 %v4223
      %v4322 = vunpack.c.l.b16 %v4224
      %v4323 = vunpack.c.l.b16 %v4225
      %v4324 = vunpack.c.l.b16 %v4226
      %v4325 = vunpack.c.l.b16 %v4227
      %v4326 = vunpack.c.l.b16 %v4228
      %v4327 = vunpack.c.l.b16 %v4229
      %v4328 = vunpack.c.l.b16 %v4230
      %v4329 = vunpack.c.l.b16 %v4231
      %v4330 = vunpack.c.l.b16 %v4232
      %v4331 = vunpack.c.l.b16 %v4233
      %v4332 = vunpack.c.l.b16 %v4234
      %v4333 = vunpack.c.l.b16 %v4235
      %v4334 = vunpack.c.l.b16 %v4236
      %v4335 = vunpack.c.l.b16 %v4237
      %v4336 = vunpack.c.l.b16 %v4238
      %v4337 = vunpack.c.l.b16 %v4239
      %v4338 = vunpack.c.l.b16 %v4240
      %v4339 = vunpack.c.l.b16 %v4241
      %v4340 = vunpack.c.l.b16 %v4242
      %v4341 = vpack.c.b16 %v4310, %v4309
      %v4342 = vpack.c.b16 %v4312, %v4311
      %v4343 = vpack.c.b16 %v4314, %v4313
      %v4344 = vpack.c.b16 %v4316, %v4315
      %v4345 = vpack.c.b16 %v4318, %v4317
      %v4346 = vpack.c.b16 %v4320, %v4319
      %v4347 = vpack.c.b16 %v4322, %v4321
      %v4348 = vpack.c.b16 %v4324, %v4323
      %v4349 = vpack.c.b16 %v4326, %v4325
      %v4350 = vpack.c.b16 %v4328, %v4327
      %v4351 = vpack.c.b16 %v4330, %v4329
      %v4352 = vpack.c.b16 %v4332, %v4331
      %v4353 = vpack.c.b16 %v4334, %v4333
      %v4354 = vpack.c.b16 %v4336, %v4335
      %v4355 = vpack.c.b16 %v4338, %v4337
      %v4356 = vpack.c.b16 %v4340, %v4339
      %v4358 = vsel %vm951, %v4341, 0
      %v4361 = vsel %vm951, %v4342, 0
      %v4364 = vsel %vm951, %v4343, 0
      %v4367 = vsel %vm951, %v4344, 0
      %v4370 = vsel %vm951, %v4345, 0
      %v4373 = vsel %vm951, %v4346, 0
      %v4376 = vsel %vm951, %v4347, 0
      %v4379 = vsel %vm951, %v4348, 0
      %v4382 = vsel %vm951, %v4349, 0
      %v4385 = vsel %vm951, %v4350, 0
      %v4388 = vsel %vm951, %v4351, 0
      %v4391 = vsel %vm951, %v4352, 0
      %v4394 = vsel %vm951, %v4353, 0
      %v4397 = vsel %vm951, %v4354, 0
      %v4400 = vsel %vm951, %v4355, 0
      %v4403 = vsel %vm951, %v4356, 0
      %v4406 = vsel %vm1000, %v4276, 0
      %4408 = vmatprep.subr.bf16.mxu0 0
      %4409 = vmatpush1.bf16.msra.mxu0 0
      %4410 = vmatprep.subr.bf16.mxu0 0
      %4411 = vmatpush1.bf16.msra.mxu0 0
      %4412 = vmatprep.subr.bf16.mxu0 0
      %4413 = vmatpush1.bf16.msra.mxu0 0
      %4414 = vmatprep.subr.bf16.mxu0 0
      %4415 = vmatpush1.bf16.msra.mxu0 0
      %4416 = vmatprep.subr.bf16.mxu0 0
      %4417 = vmatpush1.bf16.msra.mxu0 0
      %4418 = vmatprep.subr.bf16.mxu0 0
      %4419 = vmatpush1.bf16.msra.mxu0 0
      %4420 = vmatprep.subr.bf16.mxu0 0
      %4421 = vmatpush1.bf16.msra.mxu0 0
      %4422 = vmatprep.subr.bf16.mxu0 0
      %4423 = vmatpush1.bf16.msra.mxu0 %v4406
      %4424 = vmatprep.subr.bf16.mxu0 0
      %4425 = vmatpush2.bf16.msra.mxu0 0
      %4426 = vmatprep.subr.bf16.mxu0 0
      %4427 = vmatpush2.bf16.msra.mxu0 0
      %4428 = vmatprep.subr.bf16.mxu0 0
      %4429 = vmatpush2.bf16.msra.mxu0 0
      %4430 = vmatprep.subr.bf16.mxu0 0
      %4431 = vmatpush2.bf16.msra.mxu0 0
      %4432 = vmatprep.subr.bf16.mxu0 0
      %4433 = vmatpush2.bf16.msra.mxu0 0
      %4434 = vmatprep.subr.bf16.mxu0 0
      %4435 = vmatpush2.bf16.msra.mxu0 0
      %4436 = vmatprep.subr.bf16.mxu0 0
      %4437 = vmatpush2.bf16.msra.mxu0 0
      %4438 = vmatprep.subr.bf16.mxu0 0
      %4439 = vmatpush2.bf16.msra.mxu0 0
      %4440 = vmatprep.mubr.bf16.mxu0 0
      %4441 = vmatmul.mubr.bf16.gmra.mxu0 %v4358
      %v4442 = vpop.f32.mrf.mxu0
      %v4443 = vadd.f32 0.0, %v4442
      %v4444 = vpop.f32.mrf.mxu0
      %v4445 = vpop.f32.mrf.mxu0
      %v4446 = vadd.f32 0.0, %v4445
      %v4447 = vpop.f32.mrf.mxu0
      %4448 = vmatprep.mubr.bf16.mxu0 0
      %4449 = vmatmul.mubr.bf16.gmra.mxu0 %v4361
      %v4450 = vpop.f32.mrf.mxu0
      %v4451 = vadd.f32 0.0, %v4450
      %v4452 = vpop.f32.mrf.mxu0
      %v4453 = vpop.f32.mrf.mxu0
      %v4454 = vadd.f32 0.0, %v4453
      %v4455 = vpop.f32.mrf.mxu0
      %4456 = vmatprep.mubr.bf16.mxu0 0
      %4457 = vmatmul.mubr.bf16.gmra.mxu0 %v4364
      %v4458 = vpop.f32.mrf.mxu0
      %v4459 = vadd.f32 0.0, %v4458
      %v4460 = vpop.f32.mrf.mxu0
      %v4461 = vpop.f32.mrf.mxu0
      %v4462 = vadd.f32 0.0, %v4461
      %v4463 = vpop.f32.mrf.mxu0
      %4464 = vmatprep.mubr.bf16.mxu0 0
      %4465 = vmatmul.mubr.bf16.gmra.mxu0 %v4367
      %v4466 = vpop.f32.mrf.mxu0
      %v4467 = vadd.f32 0.0, %v4466
      %v4468 = vpop.f32.mrf.mxu0
      %v4469 = vpop.f32.mrf.mxu0
      %v4470 = vadd.f32 0.0, %v4469
      %v4471 = vpop.f32.mrf.mxu0
      %4472 = vmatprep.mubr.bf16.mxu0 0
      %4473 = vmatmul.mubr.bf16.gmra.mxu0 %v4370
      %v4474 = vpop.f32.mrf.mxu0
      %v4475 = vadd.f32 0.0, %v4474
      %v4476 = vpop.f32.mrf.mxu0
      %v4477 = vpop.f32.mrf.mxu0
      %v4478 = vadd.f32 0.0, %v4477
      %v4479 = vpop.f32.mrf.mxu0
      %4480 = vmatprep.mubr.bf16.mxu0 0
      %4481 = vmatmul.mubr.bf16.gmra.mxu0 %v4373
      %v4482 = vpop.f32.mrf.mxu0
      %v4483 = vadd.f32 0.0, %v4482
      %v4484 = vpop.f32.mrf.mxu0
      %v4485 = vpop.f32.mrf.mxu0
      %v4486 = vadd.f32 0.0, %v4485
      %v4487 = vpop.f32.mrf.mxu0
      %4488 = vmatprep.mubr.bf16.mxu0 0
      %4489 = vmatmul.mubr.bf16.gmra.mxu0 %v4376
      %v4490 = vpop.f32.mrf.mxu0
      %v4491 = vadd.f32 0.0, %v4490
      %v4492 = vpop.f32.mrf.mxu0
      %v4493 = vpop.f32.mrf.mxu0
      %v4494 = vadd.f32 0.0, %v4493
      %v4495 = vpop.f32.mrf.mxu0
      %4496 = vmatprep.mubr.bf16.mxu0 0
      %4497 = vmatmul.mubr.bf16.gmra.mxu0 %v4379
      %v4498 = vpop.f32.mrf.mxu0
      %v4499 = vadd.f32 0.0, %v4498
      %v4500 = vpop.f32.mrf.mxu0
      %v4501 = vpop.f32.mrf.mxu0
      %v4502 = vadd.f32 0.0, %v4501
      %v4503 = vpop.f32.mrf.mxu0
      %4504 = vmatprep.mubr.bf16.mxu0 0
      %4505 = vmatmul.mubr.bf16.gmra.mxu0 %v4382
      %v4506 = vpop.f32.mrf.mxu0
      %v4507 = vadd.f32 0.0, %v4506
      %v4508 = vpop.f32.mrf.mxu0
      %v4509 = vpop.f32.mrf.mxu0
      %v4510 = vadd.f32 0.0, %v4509
      %v4511 = vpop.f32.mrf.mxu0
      %4512 = vmatprep.mubr.bf16.mxu0 0
      %4513 = vmatmul.mubr.bf16.gmra.mxu0 %v4385
      %v4514 = vpop.f32.mrf.mxu0
      %v4515 = vadd.f32 0.0, %v4514
      %v4516 = vpop.f32.mrf.mxu0
      %v4517 = vpop.f32.mrf.mxu0
      %v4518 = vadd.f32 0.0, %v4517
      %v4519 = vpop.f32.mrf.mxu0
      %4520 = vmatprep.mubr.bf16.mxu0 0
      %4521 = vmatmul.mubr.bf16.gmra.mxu0 %v4388
      %v4522 = vpop.f32.mrf.mxu0
      %v4523 = vadd.f32 0.0, %v4522
      %v4524 = vpop.f32.mrf.mxu0
      %v4525 = vpop.f32.mrf.mxu0
      %v4526 = vadd.f32 0.0, %v4525
      %v4527 = vpop.f32.mrf.mxu0
      %4528 = vmatprep.mubr.bf16.mxu0 0
      %4529 = vmatmul.mubr.bf16.gmra.mxu0 %v4391
      %v4530 = vpop.f32.mrf.mxu0
      %v4531 = vadd.f32 0.0, %v4530
      %v4532 = vpop.f32.mrf.mxu0
      %v4533 = vpop.f32.mrf.mxu0
      %v4534 = vadd.f32 0.0, %v4533
      %v4535 = vpop.f32.mrf.mxu0
      %4536 = vmatprep.mubr.bf16.mxu0 0
      %4537 = vmatmul.mubr.bf16.gmra.mxu0 %v4394
      %v4538 = vpop.f32.mrf.mxu0
      %v4539 = vadd.f32 0.0, %v4538
      %v4540 = vpop.f32.mrf.mxu0
      %v4541 = vpop.f32.mrf.mxu0
      %v4542 = vadd.f32 0.0, %v4541
      %v4543 = vpop.f32.mrf.mxu0
      %4544 = vmatprep.mubr.bf16.mxu0 0
      %4545 = vmatmul.mubr.bf16.gmra.mxu0 %v4397
      %v4546 = vpop.f32.mrf.mxu0
      %v4547 = vadd.f32 0.0, %v4546
      %v4548 = vpop.f32.mrf.mxu0
      %v4549 = vpop.f32.mrf.mxu0
      %v4550 = vadd.f32 0.0, %v4549
      %v4551 = vpop.f32.mrf.mxu0
      %4552 = vmatprep.mubr.bf16.mxu0 0
      %4553 = vmatmul.mubr.bf16.gmra.mxu0 %v4400
      %v4554 = vpop.f32.mrf.mxu0
      %v4555 = vadd.f32 0.0, %v4554
      %v4556 = vpop.f32.mrf.mxu0
      %v4557 = vpop.f32.mrf.mxu0
      %v4558 = vadd.f32 0.0, %v4557
      %v4559 = vpop.f32.mrf.mxu0
      %4560 = vmatprep.mubr.bf16.mxu0 0
      %4561 = vmatmul.mubr.bf16.gmra.mxu0 %v4403
      %v4562 = vpop.f32.mrf.mxu0
      %v4563 = vadd.f32 0.0, %v4562
      %v4564 = vpop.f32.mrf.mxu0
      %v4565 = vpop.f32.mrf.mxu0
      %v4566 = vadd.f32 0.0, %v4565
      %v4567 = vpop.f32.mrf.mxu0
      %4568 = vdwg.mxu0
      %v4569 = vadd.f32 %v4243, %v4443
      %v4570 = vadd.f32 %v4244, %v4446
      %v4571 = vadd.f32 %v4245, %v4451
      %v4572 = vadd.f32 %v4246, %v4454
      %v4573 = vadd.f32 %v4247, %v4459
      %v4574 = vadd.f32 %v4248, %v4462
      %v4575 = vadd.f32 %v4249, %v4467
      %v4576 = vadd.f32 %v4250, %v4470
      %v4577 = vadd.f32 %v4251, %v4475
      %v4578 = vadd.f32 %v4252, %v4478
      %v4579 = vadd.f32 %v4253, %v4483
      %v4580 = vadd.f32 %v4254, %v4486
      %v4581 = vadd.f32 %v4255, %v4491
      %v4582 = vadd.f32 %v4256, %v4494
      %v4583 = vadd.f32 %v4257, %v4499
      %v4584 = vadd.f32 %v4258, %v4502
      %v4585 = vadd.f32 %v4259, %v4507
      %v4586 = vadd.f32 %v4260, %v4510
      %v4587 = vadd.f32 %v4261, %v4515
      %v4588 = vadd.f32 %v4262, %v4518
      %v4589 = vadd.f32 %v4263, %v4523
      %v4590 = vadd.f32 %v4264, %v4526
      %v4591 = vadd.f32 %v4265, %v4531
      %v4592 = vadd.f32 %v4266, %v4534
      %v4593 = vadd.f32 %v4267, %v4539
      %v4594 = vadd.f32 %v4268, %v4542
      %v4595 = vadd.f32 %v4269, %v4547
      %v4596 = vadd.f32 %v4270, %v4550
      %v4597 = vadd.f32 %v4271, %v4555
      %v4598 = vadd.f32 %v4272, %v4558
      %v4599 = vadd.f32 %v4273, %v4563
      %v4600 = vadd.f32 %v4274, %v4566
      %4601 = vst.msk [vmem:[#allocation4] sm:$0xff] %vm701, %v4569
      %4602 = vst.msk [vmem:[#allocation4 + $0x8] sm:$0xff] %vm701, %v4570
      %4603 = vst.msk [vmem:[#allocation4 + $0x10] sm:$0xff] %vm701, %v4571
      %4604 = vst.msk [vmem:[#allocation4 + $0x18] sm:$0xff] %vm701, %v4572
      %4605 = vst.msk [vmem:[#allocation4 + $0x20] sm:$0xff] %vm701, %v4573
      %4606 = vst.msk [vmem:[#allocation4 + $0x28] sm:$0xff] %vm701, %v4574
      %4607 = vst.msk [vmem:[#allocation4 + $0x30] sm:$0xff] %vm701, %v4575
      %4608 = vst.msk [vmem:[#allocation4 + $0x38] sm:$0xff] %vm701, %v4576
      %4609 = vst.msk [vmem:[#allocation4 + $0x40] sm:$0xff] %vm701, %v4577
      %4610 = vst.msk [vmem:[#allocation4 + $0x48] sm:$0xff] %vm701, %v4578
      %4611 = vst.msk [vmem:[#allocation4 + $0x50] sm:$0xff] %vm701, %v4579
      %4612 = vst.msk [vmem:[#allocation4 + $0x58] sm:$0xff] %vm701, %v4580
      %4613 = vst.msk [vmem:[#allocation4 + $0x60] sm:$0xff] %vm701, %v4581
      %4614 = vst.msk [vmem:[#allocation4 + $0x68] sm:$0xff] %vm701, %v4582
      %4615 = vst.msk [vmem:[#allocation4 + $0x70] sm:$0xff] %vm701, %v4583
      %4616 = vst.msk [vmem:[#allocation4 + $0x78] sm:$0xff] %vm701, %v4584
      %4617 = vst.msk [vmem:[#allocation4 + $0x80] sm:$0xff] %vm701, %v4585
      %4618 = vst.msk [vmem:[#allocation4 + $0x88] sm:$0xff] %vm701, %v4586
      %4619 = vst.msk [vmem:[#allocation4 + $0x90] sm:$0xff] %vm701, %v4587
      %4620 = vst.msk [vmem:[#allocation4 + $0x98] sm:$0xff] %vm701, %v4588
      %4621 = vst.msk [vmem:[#allocation4 + $0xa0] sm:$0xff] %vm701, %v4589
      %4622 = vst.msk [vmem:[#allocation4 + $0xa8] sm:$0xff] %vm701, %v4590
      %4623 = vst.msk [vmem:[#allocation4 + $0xb0] sm:$0xff] %vm701, %v4591
      %4624 = vst.msk [vmem:[#allocation4 + $0xb8] sm:$0xff] %vm701, %v4592
      %4625 = vst.msk [vmem:[#allocation4 + $0xc0] sm:$0xff] %vm701, %v4593
      %4626 = vst.msk [vmem:[#allocation4 + $0xc8] sm:$0xff] %vm701, %v4594
      %4627 = vst.msk [vmem:[#allocation4 + $0xd0] sm:$0xff] %vm701, %v4595
      %4628 = vst.msk [vmem:[#allocation4 + $0xd8] sm:$0xff] %vm701, %v4596
      %4629 = vst.msk [vmem:[#allocation4 + $0xe0] sm:$0xff] %vm701, %v4597
      %4630 = vst.msk [vmem:[#allocation4 + $0xe8] sm:$0xff] %vm701, %v4598
      %4631 = vst.msk [vmem:[#allocation4 + $0xf0] sm:$0xff] %vm701, %v4599
      %4632 = vst.msk [vmem:[#allocation4 + $0xf8] sm:$0xff] %vm701, %v4600
      %v4633 = vld [vmem:[%s1229] sm:$0xf]
      %v4634 = vld [vmem:[%s1229 + $0x4] sm:$0xf]
      %v4635 = vld [vmem:[%s1229 + $0x8] sm:$0xf]
      %v4636 = vld [vmem:[%s1229 + $0xc] sm:$0xf]
      %v4637 = vld [vmem:[%s1229 + $0x10] sm:$0xf]
      %v4638 = vld [vmem:[%s1229 + $0x14] sm:$0xf]
      %v4639 = vld [vmem:[%s1229 + $0x18] sm:$0xf]
      %v4640 = vld [vmem:[%s1229 + $0x1c] sm:$0xf]
      %v4641 = vld [vmem:[%s1229 + $0x20] sm:$0xf]
      %v4642 = vld [vmem:[%s1229 + $0x24] sm:$0xf]
      %v4643 = vld [vmem:[%s1229 + $0x28] sm:$0xf]
      %v4644 = vld [vmem:[%s1229 + $0x2c] sm:$0xf]
      %v4645 = vld [vmem:[%s1229 + $0x30] sm:$0xf]
      %v4646 = vld [vmem:[%s1229 + $0x34] sm:$0xf]
      %v4647 = vld [vmem:[%s1229 + $0x38] sm:$0xf]
      %v4648 = vld [vmem:[%s1229 + $0x3c] sm:$0xf]
      %v4649 = vld [vmem:[%s1229 + $0x40] sm:$0xf]
      %v4650 = vld [vmem:[%s1229 + $0x44] sm:$0xf]
      %v4651 = vld [vmem:[%s1229 + $0x48] sm:$0xf]
      %v4652 = vld [vmem:[%s1229 + $0x4c] sm:$0xf]
      %v4653 = vld [vmem:[%s1229 + $0x50] sm:$0xf]
      %v4654 = vld [vmem:[%s1229 + $0x54] sm:$0xf]
      %v4655 = vld [vmem:[%s1229 + $0x58] sm:$0xf]
      %v4656 = vld [vmem:[%s1229 + $0x5c] sm:$0xf]
      %v4657 = vld [vmem:[%s1229 + $0x60] sm:$0xf]
      %v4658 = vld [vmem:[%s1229 + $0x64] sm:$0xf]
      %v4659 = vld [vmem:[%s1229 + $0x68] sm:$0xf]
      %v4660 = vld [vmem:[%s1229 + $0x6c] sm:$0xf]
      %v4661 = vld [vmem:[%s1229 + $0x70] sm:$0xf]
      %v4662 = vld [vmem:[%s1229 + $0x74] sm:$0xf]
      %v4663 = vld [vmem:[%s1229 + $0x78] sm:$0xf]
      %v4664 = vld [vmem:[%s1229 + $0x7c] sm:$0xf]
      %v4665 = vld [vmem:[#allocation4] sm:$0xff]
      %v4666 = vld [vmem:[#allocation4 + $0x8] sm:$0xff]
      %v4667 = vld [vmem:[#allocation4 + $0x10] sm:$0xff]
      %v4668 = vld [vmem:[#allocation4 + $0x18] sm:$0xff]
      %v4669 = vld [vmem:[#allocation4 + $0x20] sm:$0xff]
      %v4670 = vld [vmem:[#allocation4 + $0x28] sm:$0xff]
      %v4671 = vld [vmem:[#allocation4 + $0x30] sm:$0xff]
      %v4672 = vld [vmem:[#allocation4 + $0x38] sm:$0xff]
      %v4673 = vld [vmem:[#allocation4 + $0x40] sm:$0xff]
      %v4674 = vld [vmem:[#allocation4 + $0x48] sm:$0xff]
      %v4675 = vld [vmem:[#allocation4 + $0x50] sm:$0xff]
      %v4676 = vld [vmem:[#allocation4 + $0x58] sm:$0xff]
      %v4677 = vld [vmem:[#allocation4 + $0x60] sm:$0xff]
      %v4678 = vld [vmem:[#allocation4 + $0x68] sm:$0xff]
      %v4679 = vld [vmem:[#allocation4 + $0x70] sm:$0xff]
      %v4680 = vld [vmem:[#allocation4 + $0x78] sm:$0xff]
      %v4681 = vld [vmem:[#allocation4 + $0x80] sm:$0xff]
      %v4682 = vld [vmem:[#allocation4 + $0x88] sm:$0xff]
      %v4683 = vld [vmem:[#allocation4 + $0x90] sm:$0xff]
      %v4684 = vld [vmem:[#allocation4 + $0x98] sm:$0xff]
      %v4685 = vld [vmem:[#allocation4 + $0xa0] sm:$0xff]
      %v4686 = vld [vmem:[#allocation4 + $0xa8] sm:$0xff]
      %v4687 = vld [vmem:[#allocation4 + $0xb0] sm:$0xff]
      %v4688 = vld [vmem:[#allocation4 + $0xb8] sm:$0xff]
      %v4689 = vld [vmem:[#allocation4 + $0xc0] sm:$0xff]
      %v4690 = vld [vmem:[#allocation4 + $0xc8] sm:$0xff]
      %v4691 = vld [vmem:[#allocation4 + $0xd0] sm:$0xff]
      %v4692 = vld [vmem:[#allocation4 + $0xd8] sm:$0xff]
      %v4693 = vld [vmem:[#allocation4 + $0xe0] sm:$0xff]
      %v4694 = vld [vmem:[#allocation4 + $0xe8] sm:$0xff]
      %v4695 = vld [vmem:[#allocation4 + $0xf0] sm:$0xff]
      %v4696 = vld [vmem:[#allocation4 + $0xf8] sm:$0xff]
      %s4697 = scalar_lea.vmem %s1, 20
      %v4698 = vld [vmem:[%s4697] sm:$0xf]
      %v4731 = vunpack.c.l.b16 %v4633
      %v4732 = vunpack.c.l.b16 %v4634
      %v4733 = vunpack.c.l.b16 %v4635
      %v4734 = vunpack.c.l.b16 %v4636
      %v4735 = vunpack.c.l.b16 %v4637
      %v4736 = vunpack.c.l.b16 %v4638
      %v4737 = vunpack.c.l.b16 %v4639
      %v4738 = vunpack.c.l.b16 %v4640
      %v4739 = vunpack.c.l.b16 %v4641
      %v4740 = vunpack.c.l.b16 %v4642
      %v4741 = vunpack.c.l.b16 %v4643
      %v4742 = vunpack.c.l.b16 %v4644
      %v4743 = vunpack.c.l.b16 %v4645
      %v4744 = vunpack.c.l.b16 %v4646
      %v4745 = vunpack.c.l.b16 %v4647
      %v4746 = vunpack.c.l.b16 %v4648
      %v4747 = vunpack.c.l.b16 %v4649
      %v4748 = vunpack.c.l.b16 %v4650
      %v4749 = vunpack.c.l.b16 %v4651
      %v4750 = vunpack.c.l.b16 %v4652
      %v4751 = vunpack.c.l.b16 %v4653
      %v4752 = vunpack.c.l.b16 %v4654
      %v4753 = vunpack.c.l.b16 %v4655
      %v4754 = vunpack.c.l.b16 %v4656
      %v4755 = vunpack.c.l.b16 %v4657
      %v4756 = vunpack.c.l.b16 %v4658
      %v4757 = vunpack.c.l.b16 %v4659
      %v4758 = vunpack.c.l.b16 %v4660
      %v4759 = vunpack.c.l.b16 %v4661
      %v4760 = vunpack.c.l.b16 %v4662
      %v4761 = vunpack.c.l.b16 %v4663
      %v4762 = vunpack.c.l.b16 %v4664
      %v4763 = vpack.c.b16 %v4732, %v4731
      %v4764 = vpack.c.b16 %v4734, %v4733
      %v4765 = vpack.c.b16 %v4736, %v4735
      %v4766 = vpack.c.b16 %v4738, %v4737
      %v4767 = vpack.c.b16 %v4740, %v4739
      %v4768 = vpack.c.b16 %v4742, %v4741
      %v4769 = vpack.c.b16 %v4744, %v4743
      %v4770 = vpack.c.b16 %v4746, %v4745
      %v4771 = vpack.c.b16 %v4748, %v4747
      %v4772 = vpack.c.b16 %v4750, %v4749
      %v4773 = vpack.c.b16 %v4752, %v4751
      %v4774 = vpack.c.b16 %v4754, %v4753
      %v4775 = vpack.c.b16 %v4756, %v4755
      %v4776 = vpack.c.b16 %v4758, %v4757
      %v4777 = vpack.c.b16 %v4760, %v4759
      %v4778 = vpack.c.b16 %v4762, %v4761
      %v4780 = vsel %vm951, %v4763, 0
      %v4783 = vsel %vm951, %v4764, 0
      %v4786 = vsel %vm951, %v4765, 0
      %v4789 = vsel %vm951, %v4766, 0
      %v4792 = vsel %vm951, %v4767, 0
      %v4795 = vsel %vm951, %v4768, 0
      %v4798 = vsel %vm951, %v4769, 0
      %v4801 = vsel %vm951, %v4770, 0
      %v4804 = vsel %vm951, %v4771, 0
      %v4807 = vsel %vm951, %v4772, 0
      %v4810 = vsel %vm951, %v4773, 0
      %v4813 = vsel %vm951, %v4774, 0
      %v4816 = vsel %vm951, %v4775, 0
      %v4819 = vsel %vm951, %v4776, 0
      %v4822 = vsel %vm951, %v4777, 0
      %v4825 = vsel %vm951, %v4778, 0
      %v4828 = vsel %vm1000, %v4698, 0
      %4830 = vmatprep.subr.bf16.mxu0 0
      %4831 = vmatpush1.bf16.msra.mxu0 0
      %4832 = vmatprep.subr.bf16.mxu0 0
      %4833 = vmatpush1.bf16.msra.mxu0 0
      %4834 = vmatprep.subr.bf16.mxu0 0
      %4835 = vmatpush1.bf16.msra.mxu0 0
      %4836 = vmatprep.subr.bf16.mxu0 0
      %4837 = vmatpush1.bf16.msra.mxu0 0
      %4838 = vmatprep.subr.bf16.mxu0 0
      %4839 = vmatpush1.bf16.msra.mxu0 0
      %4840 = vmatprep.subr.bf16.mxu0 0
      %4841 = vmatpush1.bf16.msra.mxu0 0
      %4842 = vmatprep.subr.bf16.mxu0 0
      %4843 = vmatpush1.bf16.msra.mxu0 0
      %4844 = vmatprep.subr.bf16.mxu0 0
      %4845 = vmatpush1.bf16.msra.mxu0 %v4828
      %4846 = vmatprep.subr.bf16.mxu0 0
      %4847 = vmatpush2.bf16.msra.mxu0 0
      %4848 = vmatprep.subr.bf16.mxu0 0
      %4849 = vmatpush2.bf16.msra.mxu0 0
      %4850 = vmatprep.subr.bf16.mxu0 0
      %4851 = vmatpush2.bf16.msra.mxu0 0
      %4852 = vmatprep.subr.bf16.mxu0 0
      %4853 = vmatpush2.bf16.msra.mxu0 0
      %4854 = vmatprep.subr.bf16.mxu0 0
      %4855 = vmatpush2.bf16.msra.mxu0 0
      %4856 = vmatprep.subr.bf16.mxu0 0
      %4857 = vmatpush2.bf16.msra.mxu0 0
      %4858 = vmatprep.subr.bf16.mxu0 0
      %4859 = vmatpush2.bf16.msra.mxu0 0
      %4860 = vmatprep.subr.bf16.mxu0 0
      %4861 = vmatpush2.bf16.msra.mxu0 0
      %4862 = vmatprep.mubr.bf16.mxu0 0
      %4863 = vmatmul.mubr.bf16.gmra.mxu0 %v4780
      %v4864 = vpop.f32.mrf.mxu0
      %v4865 = vadd.f32 0.0, %v4864
      %v4866 = vpop.f32.mrf.mxu0
      %v4867 = vpop.f32.mrf.mxu0
      %v4868 = vadd.f32 0.0, %v4867
      %v4869 = vpop.f32.mrf.mxu0
      %4870 = vmatprep.mubr.bf16.mxu0 0
      %4871 = vmatmul.mubr.bf16.gmra.mxu0 %v4783
      %v4872 = vpop.f32.mrf.mxu0
      %v4873 = vadd.f32 0.0, %v4872
      %v4874 = vpop.f32.mrf.mxu0
      %v4875 = vpop.f32.mrf.mxu0
      %v4876 = vadd.f32 0.0, %v4875
      %v4877 = vpop.f32.mrf.mxu0
      %4878 = vmatprep.mubr.bf16.mxu0 0
      %4879 = vmatmul.mubr.bf16.gmra.mxu0 %v4786
      %v4880 = vpop.f32.mrf.mxu0
      %v4881 = vadd.f32 0.0, %v4880
      %v4882 = vpop.f32.mrf.mxu0
      %v4883 = vpop.f32.mrf.mxu0
      %v4884 = vadd.f32 0.0, %v4883
      %v4885 = vpop.f32.mrf.mxu0
      %4886 = vmatprep.mubr.bf16.mxu0 0
      %4887 = vmatmul.mubr.bf16.gmra.mxu0 %v4789
      %v4888 = vpop.f32.mrf.mxu0
      %v4889 = vadd.f32 0.0, %v4888
      %v4890 = vpop.f32.mrf.mxu0
      %v4891 = vpop.f32.mrf.mxu0
      %v4892 = vadd.f32 0.0, %v4891
      %v4893 = vpop.f32.mrf.mxu0
      %4894 = vmatprep.mubr.bf16.mxu0 0
      %4895 = vmatmul.mubr.bf16.gmra.mxu0 %v4792
      %v4896 = vpop.f32.mrf.mxu0
      %v4897 = vadd.f32 0.0, %v4896
      %v4898 = vpop.f32.mrf.mxu0
      %v4899 = vpop.f32.mrf.mxu0
      %v4900 = vadd.f32 0.0, %v4899
      %v4901 = vpop.f32.mrf.mxu0
      %4902 = vmatprep.mubr.bf16.mxu0 0
      %4903 = vmatmul.mubr.bf16.gmra.mxu0 %v4795
      %v4904 = vpop.f32.mrf.mxu0
      %v4905 = vadd.f32 0.0, %v4904
      %v4906 = vpop.f32.mrf.mxu0
      %v4907 = vpop.f32.mrf.mxu0
      %v4908 = vadd.f32 0.0, %v4907
      %v4909 = vpop.f32.mrf.mxu0
      %4910 = vmatprep.mubr.bf16.mxu0 0
      %4911 = vmatmul.mubr.bf16.gmra.mxu0 %v4798
      %v4912 = vpop.f32.mrf.mxu0
      %v4913 = vadd.f32 0.0, %v4912
      %v4914 = vpop.f32.mrf.mxu0
      %v4915 = vpop.f32.mrf.mxu0
      %v4916 = vadd.f32 0.0, %v4915
      %v4917 = vpop.f32.mrf.mxu0
      %4918 = vmatprep.mubr.bf16.mxu0 0
      %4919 = vmatmul.mubr.bf16.gmra.mxu0 %v4801
      %v4920 = vpop.f32.mrf.mxu0
      %v4921 = vadd.f32 0.0, %v4920
      %v4922 = vpop.f32.mrf.mxu0
      %v4923 = vpop.f32.mrf.mxu0
      %v4924 = vadd.f32 0.0, %v4923
      %v4925 = vpop.f32.mrf.mxu0
      %4926 = vmatprep.mubr.bf16.mxu0 0
      %4927 = vmatmul.mubr.bf16.gmra.mxu0 %v4804
      %v4928 = vpop.f32.mrf.mxu0
      %v4929 = vadd.f32 0.0, %v4928
      %v4930 = vpop.f32.mrf.mxu0
      %v4931 = vpop.f32.mrf.mxu0
      %v4932 = vadd.f32 0.0, %v4931
      %v4933 = vpop.f32.mrf.mxu0
      %4934 = vmatprep.mubr.bf16.mxu0 0
      %4935 = vmatmul.mubr.bf16.gmra.mxu0 %v4807
      %v4936 = vpop.f32.mrf.mxu0
      %v4937 = vadd.f32 0.0, %v4936
      %v4938 = vpop.f32.mrf.mxu0
      %v4939 = vpop.f32.mrf.mxu0
      %v4940 = vadd.f32 0.0, %v4939
      %v4941 = vpop.f32.mrf.mxu0
      %4942 = vmatprep.mubr.bf16.mxu0 0
      %4943 = vmatmul.mubr.bf16.gmra.mxu0 %v4810
      %v4944 = vpop.f32.mrf.mxu0
      %v4945 = vadd.f32 0.0, %v4944
      %v4946 = vpop.f32.mrf.mxu0
      %v4947 = vpop.f32.mrf.mxu0
      %v4948 = vadd.f32 0.0, %v4947
      %v4949 = vpop.f32.mrf.mxu0
      %4950 = vmatprep.mubr.bf16.mxu0 0
      %4951 = vmatmul.mubr.bf16.gmra.mxu0 %v4813
      %v4952 = vpop.f32.mrf.mxu0
      %v4953 = vadd.f32 0.0, %v4952
      %v4954 = vpop.f32.mrf.mxu0
      %v4955 = vpop.f32.mrf.mxu0
      %v4956 = vadd.f32 0.0, %v4955
      %v4957 = vpop.f32.mrf.mxu0
      %4958 = vmatprep.mubr.bf16.mxu0 0
      %4959 = vmatmul.mubr.bf16.gmra.mxu0 %v4816
      %v4960 = vpop.f32.mrf.mxu0
      %v4961 = vadd.f32 0.0, %v4960
      %v4962 = vpop.f32.mrf.mxu0
      %v4963 = vpop.f32.mrf.mxu0
      %v4964 = vadd.f32 0.0, %v4963
      %v4965 = vpop.f32.mrf.mxu0
      %4966 = vmatprep.mubr.bf16.mxu0 0
      %4967 = vmatmul.mubr.bf16.gmra.mxu0 %v4819
      %v4968 = vpop.f32.mrf.mxu0
      %v4969 = vadd.f32 0.0, %v4968
      %v4970 = vpop.f32.mrf.mxu0
      %v4971 = vpop.f32.mrf.mxu0
      %v4972 = vadd.f32 0.0, %v4971
      %v4973 = vpop.f32.mrf.mxu0
      %4974 = vmatprep.mubr.bf16.mxu0 0
      %4975 = vmatmul.mubr.bf16.gmra.mxu0 %v4822
      %v4976 = vpop.f32.mrf.mxu0
      %v4977 = vadd.f32 0.0, %v4976
      %v4978 = vpop.f32.mrf.mxu0
      %v4979 = vpop.f32.mrf.mxu0
      %v4980 = vadd.f32 0.0, %v4979
      %v4981 = vpop.f32.mrf.mxu0
      %4982 = vmatprep.mubr.bf16.mxu0 0
      %4983 = vmatmul.mubr.bf16.gmra.mxu0 %v4825
      %v4984 = vpop.f32.mrf.mxu0
      %v4985 = vadd.f32 0.0, %v4984
      %v4986 = vpop.f32.mrf.mxu0
      %v4987 = vpop.f32.mrf.mxu0
      %v4988 = vadd.f32 0.0, %v4987
      %v4989 = vpop.f32.mrf.mxu0
      %4990 = vdwg.mxu0
      %v4991 = vadd.f32 %v4665, %v4865
      %v4992 = vadd.f32 %v4666, %v4868
      %v4993 = vadd.f32 %v4667, %v4873
      %v4994 = vadd.f32 %v4668, %v4876
      %v4995 = vadd.f32 %v4669, %v4881
      %v4996 = vadd.f32 %v4670, %v4884
      %v4997 = vadd.f32 %v4671, %v4889
      %v4998 = vadd.f32 %v4672, %v4892
      %v4999 = vadd.f32 %v4673, %v4897
      %v5000 = vadd.f32 %v4674, %v4900
      %v5001 = vadd.f32 %v4675, %v4905
      %v5002 = vadd.f32 %v4676, %v4908
      %v5003 = vadd.f32 %v4677, %v4913
      %v5004 = vadd.f32 %v4678, %v4916
      %v5005 = vadd.f32 %v4679, %v4921
      %v5006 = vadd.f32 %v4680, %v4924
      %v5007 = vadd.f32 %v4681, %v4929
      %v5008 = vadd.f32 %v4682, %v4932
      %v5009 = vadd.f32 %v4683, %v4937
      %v5010 = vadd.f32 %v4684, %v4940
      %v5011 = vadd.f32 %v4685, %v4945
      %v5012 = vadd.f32 %v4686, %v4948
      %v5013 = vadd.f32 %v4687, %v4953
      %v5014 = vadd.f32 %v4688, %v4956
      %v5015 = vadd.f32 %v4689, %v4961
      %v5016 = vadd.f32 %v4690, %v4964
      %v5017 = vadd.f32 %v4691, %v4969
      %v5018 = vadd.f32 %v4692, %v4972
      %v5019 = vadd.f32 %v4693, %v4977
      %v5020 = vadd.f32 %v4694, %v4980
      %v5021 = vadd.f32 %v4695, %v4985
      %v5022 = vadd.f32 %v4696, %v4988
      %5023 = vst.msk [vmem:[#allocation4] sm:$0xff] %vm701, %v4991
      %5024 = vst.msk [vmem:[#allocation4 + $0x8] sm:$0xff] %vm701, %v4992
      %5025 = vst.msk [vmem:[#allocation4 + $0x10] sm:$0xff] %vm701, %v4993
      %5026 = vst.msk [vmem:[#allocation4 + $0x18] sm:$0xff] %vm701, %v4994
      %5027 = vst.msk [vmem:[#allocation4 + $0x20] sm:$0xff] %vm701, %v4995
      %5028 = vst.msk [vmem:[#allocation4 + $0x28] sm:$0xff] %vm701, %v4996
      %5029 = vst.msk [vmem:[#allocation4 + $0x30] sm:$0xff] %vm701, %v4997
      %5030 = vst.msk [vmem:[#allocation4 + $0x38] sm:$0xff] %vm701, %v4998
      %5031 = vst.msk [vmem:[#allocation4 + $0x40] sm:$0xff] %vm701, %v4999
      %5032 = vst.msk [vmem:[#allocation4 + $0x48] sm:$0xff] %vm701, %v5000
      %5033 = vst.msk [vmem:[#allocation4 + $0x50] sm:$0xff] %vm701, %v5001
      %5034 = vst.msk [vmem:[#allocation4 + $0x58] sm:$0xff] %vm701, %v5002
      %5035 = vst.msk [vmem:[#allocation4 + $0x60] sm:$0xff] %vm701, %v5003
      %5036 = vst.msk [vmem:[#allocation4 + $0x68] sm:$0xff] %vm701, %v5004
      %5037 = vst.msk [vmem:[#allocation4 + $0x70] sm:$0xff] %vm701, %v5005
      %5038 = vst.msk [vmem:[#allocation4 + $0x78] sm:$0xff] %vm701, %v5006
      %5039 = vst.msk [vmem:[#allocation4 + $0x80] sm:$0xff] %vm701, %v5007
      %5040 = vst.msk [vmem:[#allocation4 + $0x88] sm:$0xff] %vm701, %v5008
      %5041 = vst.msk [vmem:[#allocation4 + $0x90] sm:$0xff] %vm701, %v5009
      %5042 = vst.msk [vmem:[#allocation4 + $0x98] sm:$0xff] %vm701, %v5010
      %5043 = vst.msk [vmem:[#allocation4 + $0xa0] sm:$0xff] %vm701, %v5011
      %5044 = vst.msk [vmem:[#allocation4 + $0xa8] sm:$0xff] %vm701, %v5012
      %5045 = vst.msk [vmem:[#allocation4 + $0xb0] sm:$0xff] %vm701, %v5013
      %5046 = vst.msk [vmem:[#allocation4 + $0xb8] sm:$0xff] %vm701, %v5014
      %5047 = vst.msk [vmem:[#allocation4 + $0xc0] sm:$0xff] %vm701, %v5015
      %5048 = vst.msk [vmem:[#allocation4 + $0xc8] sm:$0xff] %vm701, %v5016
      %5049 = vst.msk [vmem:[#allocation4 + $0xd0] sm:$0xff] %vm701, %v5017
      %5050 = vst.msk [vmem:[#allocation4 + $0xd8] sm:$0xff] %vm701, %v5018
      %5051 = vst.msk [vmem:[#allocation4 + $0xe0] sm:$0xff] %vm701, %v5019
      %5052 = vst.msk [vmem:[#allocation4 + $0xe8] sm:$0xff] %vm701, %v5020
      %5053 = vst.msk [vmem:[#allocation4 + $0xf0] sm:$0xff] %vm701, %v5021
      %5054 = vst.msk [vmem:[#allocation4 + $0xf8] sm:$0xff] %vm701, %v5022
      %v5055 = vld [vmem:[%s1652] sm:$0xf]
      %v5056 = vld [vmem:[%s1652 + $0x4] sm:$0xf]
      %v5057 = vld [vmem:[%s1652 + $0x8] sm:$0xf]
      %v5058 = vld [vmem:[%s1652 + $0xc] sm:$0xf]
      %v5059 = vld [vmem:[%s1652 + $0x10] sm:$0xf]
      %v5060 = vld [vmem:[%s1652 + $0x14] sm:$0xf]
      %v5061 = vld [vmem:[%s1652 + $0x18] sm:$0xf]
      %v5062 = vld [vmem:[%s1652 + $0x1c] sm:$0xf]
      %v5063 = vld [vmem:[%s1652 + $0x20] sm:$0xf]
      %v5064 = vld [vmem:[%s1652 + $0x24] sm:$0xf]
      %v5065 = vld [vmem:[%s1652 + $0x28] sm:$0xf]
      %v5066 = vld [vmem:[%s1652 + $0x2c] sm:$0xf]
      %v5067 = vld [vmem:[%s1652 + $0x30] sm:$0xf]
      %v5068 = vld [vmem:[%s1652 + $0x34] sm:$0xf]
      %v5069 = vld [vmem:[%s1652 + $0x38] sm:$0xf]
      %v5070 = vld [vmem:[%s1652 + $0x3c] sm:$0xf]
      %v5071 = vld [vmem:[%s1652 + $0x40] sm:$0xf]
      %v5072 = vld [vmem:[%s1652 + $0x44] sm:$0xf]
      %v5073 = vld [vmem:[%s1652 + $0x48] sm:$0xf]
      %v5074 = vld [vmem:[%s1652 + $0x4c] sm:$0xf]
      %v5075 = vld [vmem:[%s1652 + $0x50] sm:$0xf]
      %v5076 = vld [vmem:[%s1652 + $0x54] sm:$0xf]
      %v5077 = vld [vmem:[%s1652 + $0x58] sm:$0xf]
      %v5078 = vld [vmem:[%s1652 + $0x5c] sm:$0xf]
      %v5079 = vld [vmem:[%s1652 + $0x60] sm:$0xf]
      %v5080 = vld [vmem:[%s1652 + $0x64] sm:$0xf]
      %v5081 = vld [vmem:[%s1652 + $0x68] sm:$0xf]
      %v5082 = vld [vmem:[%s1652 + $0x6c] sm:$0xf]
      %v5083 = vld [vmem:[%s1652 + $0x70] sm:$0xf]
      %v5084 = vld [vmem:[%s1652 + $0x74] sm:$0xf]
      %v5085 = vld [vmem:[%s1652 + $0x78] sm:$0xf]
      %v5086 = vld [vmem:[%s1652 + $0x7c] sm:$0xf]
      %v5087 = vld [vmem:[#allocation4] sm:$0xff]
      %v5088 = vld [vmem:[#allocation4 + $0x8] sm:$0xff]
      %v5089 = vld [vmem:[#allocation4 + $0x10] sm:$0xff]
      %v5090 = vld [vmem:[#allocation4 + $0x18] sm:$0xff]
      %v5091 = vld [vmem:[#allocation4 + $0x20] sm:$0xff]
      %v5092 = vld [vmem:[#allocation4 + $0x28] sm:$0xff]
      %v5093 = vld [vmem:[#allocation4 + $0x30] sm:$0xff]
      %v5094 = vld [vmem:[#allocation4 + $0x38] sm:$0xff]
      %v5095 = vld [vmem:[#allocation4 + $0x40] sm:$0xff]
      %v5096 = vld [vmem:[#allocation4 + $0x48] sm:$0xff]
      %v5097 = vld [vmem:[#allocation4 + $0x50] sm:$0xff]
      %v5098 = vld [vmem:[#allocation4 + $0x58] sm:$0xff]
      %v5099 = vld [vmem:[#allocation4 + $0x60] sm:$0xff]
      %v5100 = vld [vmem:[#allocation4 + $0x68] sm:$0xff]
      %v5101 = vld [vmem:[#allocation4 + $0x70] sm:$0xff]
      %v5102 = vld [vmem:[#allocation4 + $0x78] sm:$0xff]
      %v5103 = vld [vmem:[#allocation4 + $0x80] sm:$0xff]
      %v5104 = vld [vmem:[#allocation4 + $0x88] sm:$0xff]
      %v5105 = vld [vmem:[#allocation4 + $0x90] sm:$0xff]
      %v5106 = vld [vmem:[#allocation4 + $0x98] sm:$0xff]
      %v5107 = vld [vmem:[#allocation4 + $0xa0] sm:$0xff]
      %v5108 = vld [vmem:[#allocation4 + $0xa8] sm:$0xff]
      %v5109 = vld [vmem:[#allocation4 + $0xb0] sm:$0xff]
      %v5110 = vld [vmem:[#allocation4 + $0xb8] sm:$0xff]
      %v5111 = vld [vmem:[#allocation4 + $0xc0] sm:$0xff]
      %v5112 = vld [vmem:[#allocation4 + $0xc8] sm:$0xff]
      %v5113 = vld [vmem:[#allocation4 + $0xd0] sm:$0xff]
      %v5114 = vld [vmem:[#allocation4 + $0xd8] sm:$0xff]
      %v5115 = vld [vmem:[#allocation4 + $0xe0] sm:$0xff]
      %v5116 = vld [vmem:[#allocation4 + $0xe8] sm:$0xff]
      %v5117 = vld [vmem:[#allocation4 + $0xf0] sm:$0xff]
      %v5118 = vld [vmem:[#allocation4 + $0xf8] sm:$0xff]
      %s5119 = scalar_lea.vmem %s1, 32
      %v5120 = vld [vmem:[%s5119] sm:$0xf]
      %v5153 = vunpack.c.l.b16 %v5055
      %v5154 = vunpack.c.l.b16 %v5056
      %v5155 = vunpack.c.l.b16 %v5057
      %v5156 = vunpack.c.l.b16 %v5058
      %v5157 = vunpack.c.l.b16 %v5059
      %v5158 = vunpack.c.l.b16 %v5060
      %v5159 = vunpack.c.l.b16 %v5061
      %v5160 = vunpack.c.l.b16 %v5062
      %v5161 = vunpack.c.l.b16 %v5063
      %v5162 = vunpack.c.l.b16 %v5064
      %v5163 = vunpack.c.l.b16 %v5065
      %v5164 = vunpack.c.l.b16 %v5066
      %v5165 = vunpack.c.l.b16 %v5067
      %v5166 = vunpack.c.l.b16 %v5068
      %v5167 = vunpack.c.l.b16 %v5069
      %v5168 = vunpack.c.l.b16 %v5070
      %v5169 = vunpack.c.l.b16 %v5071
      %v5170 = vunpack.c.l.b16 %v5072
      %v5171 = vunpack.c.l.b16 %v5073
      %v5172 = vunpack.c.l.b16 %v5074
      %v5173 = vunpack.c.l.b16 %v5075
      %v5174 = vunpack.c.l.b16 %v5076
      %v5175 = vunpack.c.l.b16 %v5077
      %v5176 = vunpack.c.l.b16 %v5078
      %v5177 = vunpack.c.l.b16 %v5079
      %v5178 = vunpack.c.l.b16 %v5080
      %v5179 = vunpack.c.l.b16 %v5081
      %v5180 = vunpack.c.l.b16 %v5082
      %v5181 = vunpack.c.l.b16 %v5083
      %v5182 = vunpack.c.l.b16 %v5084
      %v5183 = vunpack.c.l.b16 %v5085
      %v5184 = vunpack.c.l.b16 %v5086
      %v5185 = vpack.c.b16 %v5154, %v5153
      %v5186 = vpack.c.b16 %v5156, %v5155
      %v5187 = vpack.c.b16 %v5158, %v5157
      %v5188 = vpack.c.b16 %v5160, %v5159
      %v5189 = vpack.c.b16 %v5162, %v5161
      %v5190 = vpack.c.b16 %v5164, %v5163
      %v5191 = vpack.c.b16 %v5166, %v5165
      %v5192 = vpack.c.b16 %v5168, %v5167
      %v5193 = vpack.c.b16 %v5170, %v5169
      %v5194 = vpack.c.b16 %v5172, %v5171
      %v5195 = vpack.c.b16 %v5174, %v5173
      %v5196 = vpack.c.b16 %v5176, %v5175
      %v5197 = vpack.c.b16 %v5178, %v5177
      %v5198 = vpack.c.b16 %v5180, %v5179
      %v5199 = vpack.c.b16 %v5182, %v5181
      %v5200 = vpack.c.b16 %v5184, %v5183
      %v5202 = vsel %vm951, %v5185, 0
      %v5205 = vsel %vm951, %v5186, 0
      %v5208 = vsel %vm951, %v5187, 0
      %v5211 = vsel %vm951, %v5188, 0
      %v5214 = vsel %vm951, %v5189, 0
      %v5217 = vsel %vm951, %v5190, 0
      %v5220 = vsel %vm951, %v5191, 0
      %v5223 = vsel %vm951, %v5192, 0
      %v5226 = vsel %vm951, %v5193, 0
      %v5229 = vsel %vm951, %v5194, 0
      %v5232 = vsel %vm951, %v5195, 0
      %v5235 = vsel %vm951, %v5196, 0
      %v5238 = vsel %vm951, %v5197, 0
      %v5241 = vsel %vm951, %v5198, 0
      %v5244 = vsel %vm951, %v5199, 0
      %v5247 = vsel %vm951, %v5200, 0
      %v5250 = vsel %vm1000, %v5120, 0
      %5252 = vmatprep.subr.bf16.mxu0 0
      %5253 = vmatpush1.bf16.msra.mxu0 0
      %5254 = vmatprep.subr.bf16.mxu0 0
      %5255 = vmatpush1.bf16.msra.mxu0 0
      %5256 = vmatprep.subr.bf16.mxu0 0
      %5257 = vmatpush1.bf16.msra.mxu0 0
      %5258 = vmatprep.subr.bf16.mxu0 0
      %5259 = vmatpush1.bf16.msra.mxu0 0
      %5260 = vmatprep.subr.bf16.mxu0 0
      %5261 = vmatpush1.bf16.msra.mxu0 0
      %5262 = vmatprep.subr.bf16.mxu0 0
      %5263 = vmatpush1.bf16.msra.mxu0 0
      %5264 = vmatprep.subr.bf16.mxu0 0
      %5265 = vmatpush1.bf16.msra.mxu0 0
      %5266 = vmatprep.subr.bf16.mxu0 0
      %5267 = vmatpush1.bf16.msra.mxu0 %v5250
      %5268 = vmatprep.subr.bf16.mxu0 0
      %5269 = vmatpush2.bf16.msra.mxu0 0
      %5270 = vmatprep.subr.bf16.mxu0 0
      %5271 = vmatpush2.bf16.msra.mxu0 0
      %5272 = vmatprep.subr.bf16.mxu0 0
      %5273 = vmatpush2.bf16.msra.mxu0 0
      %5274 = vmatprep.subr.bf16.mxu0 0
      %5275 = vmatpush2.bf16.msra.mxu0 0
      %5276 = vmatprep.subr.bf16.mxu0 0
      %5277 = vmatpush2.bf16.msra.mxu0 0
      %5278 = vmatprep.subr.bf16.mxu0 0
      %5279 = vmatpush2.bf16.msra.mxu0 0
      %5280 = vmatprep.subr.bf16.mxu0 0
      %5281 = vmatpush2.bf16.msra.mxu0 0
      %5282 = vmatprep.subr.bf16.mxu0 0
      %5283 = vmatpush2.bf16.msra.mxu0 0
      %5284 = vmatprep.mubr.bf16.mxu0 0
      %5285 = vmatmul.mubr.bf16.gmra.mxu0 %v5202
      %v5286 = vpop.f32.mrf.mxu0
      %v5287 = vadd.f32 0.0, %v5286
      %v5288 = vpop.f32.mrf.mxu0
      %v5289 = vpop.f32.mrf.mxu0
      %v5290 = vadd.f32 0.0, %v5289
      %v5291 = vpop.f32.mrf.mxu0
      %5292 = vmatprep.mubr.bf16.mxu0 0
      %5293 = vmatmul.mubr.bf16.gmra.mxu0 %v5205
      %v5294 = vpop.f32.mrf.mxu0
      %v5295 = vadd.f32 0.0, %v5294
      %v5296 = vpop.f32.mrf.mxu0
      %v5297 = vpop.f32.mrf.mxu0
      %v5298 = vadd.f32 0.0, %v5297
      %v5299 = vpop.f32.mrf.mxu0
      %5300 = vmatprep.mubr.bf16.mxu0 0
      %5301 = vmatmul.mubr.bf16.gmra.mxu0 %v5208
      %v5302 = vpop.f32.mrf.mxu0
      %v5303 = vadd.f32 0.0, %v5302
      %v5304 = vpop.f32.mrf.mxu0
      %v5305 = vpop.f32.mrf.mxu0
      %v5306 = vadd.f32 0.0, %v5305
      %v5307 = vpop.f32.mrf.mxu0
      %5308 = vmatprep.mubr.bf16.mxu0 0
      %5309 = vmatmul.mubr.bf16.gmra.mxu0 %v5211
      %v5310 = vpop.f32.mrf.mxu0
      %v5311 = vadd.f32 0.0, %v5310
      %v5312 = vpop.f32.mrf.mxu0
      %v5313 = vpop.f32.mrf.mxu0
      %v5314 = vadd.f32 0.0, %v5313
      %v5315 = vpop.f32.mrf.mxu0
      %5316 = vmatprep.mubr.bf16.mxu0 0
      %5317 = vmatmul.mubr.bf16.gmra.mxu0 %v5214
      %v5318 = vpop.f32.mrf.mxu0
      %v5319 = vadd.f32 0.0, %v5318
      %v5320 = vpop.f32.mrf.mxu0
      %v5321 = vpop.f32.mrf.mxu0
      %v5322 = vadd.f32 0.0, %v5321
      %v5323 = vpop.f32.mrf.mxu0
      %5324 = vmatprep.mubr.bf16.mxu0 0
      %5325 = vmatmul.mubr.bf16.gmra.mxu0 %v5217
      %v5326 = vpop.f32.mrf.mxu0
      %v5327 = vadd.f32 0.0, %v5326
      %v5328 = vpop.f32.mrf.mxu0
      %v5329 = vpop.f32.mrf.mxu0
      %v5330 = vadd.f32 0.0, %v5329
      %v5331 = vpop.f32.mrf.mxu0
      %5332 = vmatprep.mubr.bf16.mxu0 0
      %5333 = vmatmul.mubr.bf16.gmra.mxu0 %v5220
      %v5334 = vpop.f32.mrf.mxu0
      %v5335 = vadd.f32 0.0, %v5334
      %v5336 = vpop.f32.mrf.mxu0
      %v5337 = vpop.f32.mrf.mxu0
      %v5338 = vadd.f32 0.0, %v5337
      %v5339 = vpop.f32.mrf.mxu0
      %5340 = vmatprep.mubr.bf16.mxu0 0
      %5341 = vmatmul.mubr.bf16.gmra.mxu0 %v5223
      %v5342 = vpop.f32.mrf.mxu0
      %v5343 = vadd.f32 0.0, %v5342
      %v5344 = vpop.f32.mrf.mxu0
      %v5345 = vpop.f32.mrf.mxu0
      %v5346 = vadd.f32 0.0, %v5345
      %v5347 = vpop.f32.mrf.mxu0
      %5348 = vmatprep.mubr.bf16.mxu0 0
      %5349 = vmatmul.mubr.bf16.gmra.mxu0 %v5226
      %v5350 = vpop.f32.mrf.mxu0
      %v5351 = vadd.f32 0.0, %v5350
      %v5352 = vpop.f32.mrf.mxu0
      %v5353 = vpop.f32.mrf.mxu0
      %v5354 = vadd.f32 0.0, %v5353
      %v5355 = vpop.f32.mrf.mxu0
      %5356 = vmatprep.mubr.bf16.mxu0 0
      %5357 = vmatmul.mubr.bf16.gmra.mxu0 %v5229
      %v5358 = vpop.f32.mrf.mxu0
      %v5359 = vadd.f32 0.0, %v5358
      %v5360 = vpop.f32.mrf.mxu0
      %v5361 = vpop.f32.mrf.mxu0
      %v5362 = vadd.f32 0.0, %v5361
      %v5363 = vpop.f32.mrf.mxu0
      %5364 = vmatprep.mubr.bf16.mxu0 0
      %5365 = vmatmul.mubr.bf16.gmra.mxu0 %v5232
      %v5366 = vpop.f32.mrf.mxu0
      %v5367 = vadd.f32 0.0, %v5366
      %v5368 = vpop.f32.mrf.mxu0
      %v5369 = vpop.f32.mrf.mxu0
      %v5370 = vadd.f32 0.0, %v5369
      %v5371 = vpop.f32.mrf.mxu0
      %5372 = vmatprep.mubr.bf16.mxu0 0
      %5373 = vmatmul.mubr.bf16.gmra.mxu0 %v5235
      %v5374 = vpop.f32.mrf.mxu0
      %v5375 = vadd.f32 0.0, %v5374
      %v5376 = vpop.f32.mrf.mxu0
      %v5377 = vpop.f32.mrf.mxu0
      %v5378 = vadd.f32 0.0, %v5377
      %v5379 = vpop.f32.mrf.mxu0
      %5380 = vmatprep.mubr.bf16.mxu0 0
      %5381 = vmatmul.mubr.bf16.gmra.mxu0 %v5238
      %v5382 = vpop.f32.mrf.mxu0
      %v5383 = vadd.f32 0.0, %v5382
      %v5384 = vpop.f32.mrf.mxu0
      %v5385 = vpop.f32.mrf.mxu0
      %v5386 = vadd.f32 0.0, %v5385
      %v5387 = vpop.f32.mrf.mxu0
      %5388 = vmatprep.mubr.bf16.mxu0 0
      %5389 = vmatmul.mubr.bf16.gmra.mxu0 %v5241
      %v5390 = vpop.f32.mrf.mxu0
      %v5391 = vadd.f32 0.0, %v5390
      %v5392 = vpop.f32.mrf.mxu0
      %v5393 = vpop.f32.mrf.mxu0
      %v5394 = vadd.f32 0.0, %v5393
      %v5395 = vpop.f32.mrf.mxu0
      %5396 = vmatprep.mubr.bf16.mxu0 0
      %5397 = vmatmul.mubr.bf16.gmra.mxu0 %v5244
      %v5398 = vpop.f32.mrf.mxu0
      %v5399 = vadd.f32 0.0, %v5398
      %v5400 = vpop.f32.mrf.mxu0
      %v5401 = vpop.f32.mrf.mxu0
      %v5402 = vadd.f32 0.0, %v5401
      %v5403 = vpop.f32.mrf.mxu0
      %5404 = vmatprep.mubr.bf16.mxu0 0
      %5405 = vmatmul.mubr.bf16.gmra.mxu0 %v5247
      %v5406 = vpop.f32.mrf.mxu0
      %v5407 = vadd.f32 0.0, %v5406
      %v5408 = vpop.f32.mrf.mxu0
      %v5409 = vpop.f32.mrf.mxu0
      %v5410 = vadd.f32 0.0, %v5409
      %v5411 = vpop.f32.mrf.mxu0
      %5412 = vdwg.mxu0
      %v5413 = vadd.f32 %v5087, %v5287
      %v5414 = vadd.f32 %v5088, %v5290
      %v5415 = vadd.f32 %v5089, %v5295
      %v5416 = vadd.f32 %v5090, %v5298
      %v5417 = vadd.f32 %v5091, %v5303
      %v5418 = vadd.f32 %v5092, %v5306
      %v5419 = vadd.f32 %v5093, %v5311
      %v5420 = vadd.f32 %v5094, %v5314
      %v5421 = vadd.f32 %v5095, %v5319
      %v5422 = vadd.f32 %v5096, %v5322
      %v5423 = vadd.f32 %v5097, %v5327
      %v5424 = vadd.f32 %v5098, %v5330
      %v5425 = vadd.f32 %v5099, %v5335
      %v5426 = vadd.f32 %v5100, %v5338
      %v5427 = vadd.f32 %v5101, %v5343
      %v5428 = vadd.f32 %v5102, %v5346
      %v5429 = vadd.f32 %v5103, %v5351
      %v5430 = vadd.f32 %v5104, %v5354
      %v5431 = vadd.f32 %v5105, %v5359
      %v5432 = vadd.f32 %v5106, %v5362
      %v5433 = vadd.f32 %v5107, %v5367
      %v5434 = vadd.f32 %v5108, %v5370
      %v5435 = vadd.f32 %v5109, %v5375
      %v5436 = vadd.f32 %v5110, %v5378
      %v5437 = vadd.f32 %v5111, %v5383
      %v5438 = vadd.f32 %v5112, %v5386
      %v5439 = vadd.f32 %v5113, %v5391
      %v5440 = vadd.f32 %v5114, %v5394
      %v5441 = vadd.f32 %v5115, %v5399
      %v5442 = vadd.f32 %v5116, %v5402
      %v5443 = vadd.f32 %v5117, %v5407
      %v5444 = vadd.f32 %v5118, %v5410
      %5445 = vst.msk [vmem:[#allocation4] sm:$0xff] %vm701, %v5413
      %5446 = vst.msk [vmem:[#allocation4 + $0x8] sm:$0xff] %vm701, %v5414
      %5447 = vst.msk [vmem:[#allocation4 + $0x10] sm:$0xff] %vm701, %v5415
      %5448 = vst.msk [vmem:[#allocation4 + $0x18] sm:$0xff] %vm701, %v5416
      %5449 = vst.msk [vmem:[#allocation4 + $0x20] sm:$0xff] %vm701, %v5417
      %5450 = vst.msk [vmem:[#allocation4 + $0x28] sm:$0xff] %vm701, %v5418
      %5451 = vst.msk [vmem:[#allocation4 + $0x30] sm:$0xff] %vm701, %v5419
      %5452 = vst.msk [vmem:[#allocation4 + $0x38] sm:$0xff] %vm701, %v5420
      %5453 = vst.msk [vmem:[#allocation4 + $0x40] sm:$0xff] %vm701, %v5421
      %5454 = vst.msk [vmem:[#allocation4 + $0x48] sm:$0xff] %vm701, %v5422
      %5455 = vst.msk [vmem:[#allocation4 + $0x50] sm:$0xff] %vm701, %v5423
      %5456 = vst.msk [vmem:[#allocation4 + $0x58] sm:$0xff] %vm701, %v5424
      %5457 = vst.msk [vmem:[#allocation4 + $0x60] sm:$0xff] %vm701, %v5425
      %5458 = vst.msk [vmem:[#allocation4 + $0x68] sm:$0xff] %vm701, %v5426
      %5459 = vst.msk [vmem:[#allocation4 + $0x70] sm:$0xff] %vm701, %v5427
      %5460 = vst.msk [vmem:[#allocation4 + $0x78] sm:$0xff] %vm701, %v5428
      %5461 = vst.msk [vmem:[#allocation4 + $0x80] sm:$0xff] %vm701, %v5429
      %5462 = vst.msk [vmem:[#allocation4 + $0x88] sm:$0xff] %vm701, %v5430
      %5463 = vst.msk [vmem:[#allocation4 + $0x90] sm:$0xff] %vm701, %v5431
      %5464 = vst.msk [vmem:[#allocation4 + $0x98] sm:$0xff] %vm701, %v5432
      %5465 = vst.msk [vmem:[#allocation4 + $0xa0] sm:$0xff] %vm701, %v5433
      %5466 = vst.msk [vmem:[#allocation4 + $0xa8] sm:$0xff] %vm701, %v5434
      %5467 = vst.msk [vmem:[#allocation4 + $0xb0] sm:$0xff] %vm701, %v5435
      %5468 = vst.msk [vmem:[#allocation4 + $0xb8] sm:$0xff] %vm701, %v5436
      %5469 = vst.msk [vmem:[#allocation4 + $0xc0] sm:$0xff] %vm701, %v5437
      %5470 = vst.msk [vmem:[#allocation4 + $0xc8] sm:$0xff] %vm701, %v5438
      %5471 = vst.msk [vmem:[#allocation4 + $0xd0] sm:$0xff] %vm701, %v5439
      %5472 = vst.msk [vmem:[#allocation4 + $0xd8] sm:$0xff] %vm701, %v5440
      %5473 = vst.msk [vmem:[#allocation4 + $0xe0] sm:$0xff] %vm701, %v5441
      %5474 = vst.msk [vmem:[#allocation4 + $0xe8] sm:$0xff] %vm701, %v5442
      %5475 = vst.msk [vmem:[#allocation4 + $0xf0] sm:$0xff] %vm701, %v5443
      %5476 = vst.msk [vmem:[#allocation4 + $0xf8] sm:$0xff] %vm701, %v5444
      %v5477 = vld [vmem:[#allocation4] sm:$0xff]
      %v5478 = vld [vmem:[#allocation4 + $0x8] sm:$0xff]
      %v5479 = vld [vmem:[#allocation4 + $0x10] sm:$0xff]
      %v5480 = vld [vmem:[#allocation4 + $0x18] sm:$0xff]
      %v5481 = vld [vmem:[#allocation4 + $0x20] sm:$0xff]
      %v5482 = vld [vmem:[#allocation4 + $0x28] sm:$0xff]
      %v5483 = vld [vmem:[#allocation4 + $0x30] sm:$0xff]
      %v5484 = vld [vmem:[#allocation4 + $0x38] sm:$0xff]
      %v5485 = vld [vmem:[#allocation4 + $0x40] sm:$0xff]
      %v5486 = vld [vmem:[#allocation4 + $0x48] sm:$0xff]
      %v5487 = vld [vmem:[#allocation4 + $0x50] sm:$0xff]
      %v5488 = vld [vmem:[#allocation4 + $0x58] sm:$0xff]
      %v5489 = vld [vmem:[#allocation4 + $0x60] sm:$0xff]
      %v5490 = vld [vmem:[#allocation4 + $0x68] sm:$0xff]
      %v5491 = vld [vmem:[#allocation4 + $0x70] sm:$0xff]
      %v5492 = vld [vmem:[#allocation4 + $0x78] sm:$0xff]
      %v5493 = vld [vmem:[#allocation4 + $0x80] sm:$0xff]
      %v5494 = vld [vmem:[#allocation4 + $0x88] sm:$0xff]
      %v5495 = vld [vmem:[#allocation4 + $0x90] sm:$0xff]
      %v5496 = vld [vmem:[#allocation4 + $0x98] sm:$0xff]
      %v5497 = vld [vmem:[#allocation4 + $0xa0] sm:$0xff]
      %v5498 = vld [vmem:[#allocation4 + $0xa8] sm:$0xff]
      %v5499 = vld [vmem:[#allocation4 + $0xb0] sm:$0xff]
      %v5500 = vld [vmem:[#allocation4 + $0xb8] sm:$0xff]
      %v5501 = vld [vmem:[#allocation4 + $0xc0] sm:$0xff]
      %v5502 = vld [vmem:[#allocation4 + $0xc8] sm:$0xff]
      %v5503 = vld [vmem:[#allocation4 + $0xd0] sm:$0xff]
      %v5504 = vld [vmem:[#allocation4 + $0xd8] sm:$0xff]
      %v5505 = vld [vmem:[#allocation4 + $0xe0] sm:$0xff]
      %v5506 = vld [vmem:[#allocation4 + $0xe8] sm:$0xff]
      %v5507 = vld [vmem:[#allocation4 + $0xf0] sm:$0xff]
      %v5508 = vld [vmem:[#allocation4 + $0xf8] sm:$0xff]
      %v5509 = vld [vmem:[%s2] sm:$0x1]
      %v5511 = vlaneseq
      %v5512 = vshrl.u32 %v5511, 7
      %v5513 = vsub.s32 0, %v5512
      %v5514 = vrot.slane %v5509, %v5513
      %v5516 = vadd.f32 %v5477, %v5514
      %v5517 = vadd.f32 %v5478, %v5514
      %v5518 = vadd.f32 %v5479, %v5514
      %v5519 = vadd.f32 %v5480, %v5514
      %v5520 = vadd.f32 %v5481, %v5514
      %v5521 = vadd.f32 %v5482, %v5514
      %v5522 = vadd.f32 %v5483, %v5514
      %v5523 = vadd.f32 %v5484, %v5514
      %v5524 = vadd.f32 %v5485, %v5514
      %v5525 = vadd.f32 %v5486, %v5514
      %v5526 = vadd.f32 %v5487, %v5514
      %v5527 = vadd.f32 %v5488, %v5514
      %v5528 = vadd.f32 %v5489, %v5514
      %v5529 = vadd.f32 %v5490, %v5514
      %v5530 = vadd.f32 %v5491, %v5514
      %v5531 = vadd.f32 %v5492, %v5514
      %v5532 = vadd.f32 %v5493, %v5514
      %v5533 = vadd.f32 %v5494, %v5514
      %v5534 = vadd.f32 %v5495, %v5514
      %v5535 = vadd.f32 %v5496, %v5514
      %v5536 = vadd.f32 %v5497, %v5514
      %v5537 = vadd.f32 %v5498, %v5514
      %v5538 = vadd.f32 %v5499, %v5514
      %v5539 = vadd.f32 %v5500, %v5514
      %v5540 = vadd.f32 %v5501, %v5514
      %v5541 = vadd.f32 %v5502, %v5514
      %v5542 = vadd.f32 %v5503, %v5514
      %v5543 = vadd.f32 %v5504, %v5514
      %v5544 = vadd.f32 %v5505, %v5514
      %v5545 = vadd.f32 %v5506, %v5514
      %v5546 = vadd.f32 %v5507, %v5514
      %v5547 = vadd.f32 %v5508, %v5514
      %v5548 = vmax.f32 %v5516, 0.0
      %v5549 = vmax.f32 %v5517, 0.0
      %v5550 = vmax.f32 %v5518, 0.0
      %v5551 = vmax.f32 %v5519, 0.0
      %v5552 = vmax.f32 %v5520, 0.0
      %v5553 = vmax.f32 %v5521, 0.0
      %v5554 = vmax.f32 %v5522, 0.0
      %v5555 = vmax.f32 %v5523, 0.0
      %v5556 = vmax.f32 %v5524, 0.0
      %v5557 = vmax.f32 %v5525, 0.0
      %v5558 = vmax.f32 %v5526, 0.0
      %v5559 = vmax.f32 %v5527, 0.0
      %v5560 = vmax.f32 %v5528, 0.0
      %v5561 = vmax.f32 %v5529, 0.0
      %v5562 = vmax.f32 %v5530, 0.0
      %v5563 = vmax.f32 %v5531, 0.0
      %v5564 = vmax.f32 %v5532, 0.0
      %v5565 = vmax.f32 %v5533, 0.0
      %v5566 = vmax.f32 %v5534, 0.0
      %v5567 = vmax.f32 %v5535, 0.0
      %v5568 = vmax.f32 %v5536, 0.0
      %v5569 = vmax.f32 %v5537, 0.0
      %v5570 = vmax.f32 %v5538, 0.0
      %v5571 = vmax.f32 %v5539, 0.0
      %v5572 = vmax.f32 %v5540, 0.0
      %v5573 = vmax.f32 %v5541, 0.0
      %v5574 = vmax.f32 %v5542, 0.0
      %v5575 = vmax.f32 %v5543, 0.0
      %v5576 = vmax.f32 %v5544, 0.0
      %v5577 = vmax.f32 %v5545, 0.0
      %v5578 = vmax.f32 %v5546, 0.0
      %v5579 = vmax.f32 %v5547, 0.0
      %5580 = vst.msk [vmem:[%s170] sm:$0xff] %vm701, %v5548
      %5581 = vst.msk [vmem:[%s170 + $0x8] sm:$0xff] %vm701, %v5549
      %5582 = vst.msk [vmem:[%s170 + $0x10] sm:$0xff] %vm701, %v5550
      %5583 = vst.msk [vmem:[%s170 + $0x18] sm:$0xff] %vm701, %v5551
      %5584 = vst.msk [vmem:[%s170 + $0x20] sm:$0xff] %vm701, %v5552
      %5585 = vst.msk [vmem:[%s170 + $0x28] sm:$0xff] %vm701, %v5553
      %5586 = vst.msk [vmem:[%s170 + $0x30] sm:$0xff] %vm701, %v5554
      %5587 = vst.msk [vmem:[%s170 + $0x38] sm:$0xff] %vm701, %v5555
      %5588 = vst.msk [vmem:[%s170 + $0x40] sm:$0xff] %vm701, %v5556
      %5589 = vst.msk [vmem:[%s170 + $0x48] sm:$0xff] %vm701, %v5557
      %5590 = vst.msk [vmem:[%s170 + $0x50] sm:$0xff] %vm701, %v5558
      %5591 = vst.msk [vmem:[%s170 + $0x58] sm:$0xff] %vm701, %v5559
      %5592 = vst.msk [vmem:[%s170 + $0x60] sm:$0xff] %vm701, %v5560
      %5593 = vst.msk [vmem:[%s170 + $0x68] sm:$0xff] %vm701, %v5561
      %5594 = vst.msk [vmem:[%s170 + $0x70] sm:$0xff] %vm701, %v5562
      %5595 = vst.msk [vmem:[%s170 + $0x78] sm:$0xff] %vm701, %v5563
      %5596 = vst.msk [vmem:[%s170 + $0x80] sm:$0xff] %vm701, %v5564
      %5597 = vst.msk [vmem:[%s170 + $0x88] sm:$0xff] %vm701, %v5565
      %5598 = vst.msk [vmem:[%s170 + $0x90] sm:$0xff] %vm701, %v5566
      %5599 = vst.msk [vmem:[%s170 + $0x98] sm:$0xff] %vm701, %v5567
      %5600 = vst.msk [vmem:[%s170 + $0xa0] sm:$0xff] %vm701, %v5568
      %5601 = vst.msk [vmem:[%s170 + $0xa8] sm:$0xff] %vm701, %v5569
      %5602 = vst.msk [vmem:[%s170 + $0xb0] sm:$0xff] %vm701, %v5570
      %5603 = vst.msk [vmem:[%s170 + $0xb8] sm:$0xff] %vm701, %v5571
      %5604 = vst.msk [vmem:[%s170 + $0xc0] sm:$0xff] %vm701, %v5572
      %5605 = vst.msk [vmem:[%s170 + $0xc8] sm:$0xff] %vm701, %v5573
      %5606 = vst.msk [vmem:[%s170 + $0xd0] sm:$0xff] %vm701, %v5574
      %5607 = vst.msk [vmem:[%s170 + $0xd8] sm:$0xff] %vm701, %v5575
      %5608 = vst.msk [vmem:[%s170 + $0xe0] sm:$0xff] %vm701, %v5576
      %5609 = vst.msk [vmem:[%s170 + $0xe8] sm:$0xff] %vm701, %v5577
      %5610 = vst.msk [vmem:[%s170 + $0xf0] sm:$0xff] %vm701, %v5578
      %5611 = vst.msk [vmem:[%s170 + $0xf8] sm:$0xff] %vm701, %v5579
      %p5612 = scmp.lt.s32.totalorder %s14, 1
      %s5613 = scalar_select %p5612, %s14, 1
      %s5614 = smul.addr %s5613, 32
      %s5615 = smul.addr %s5614, 8
      %s5616 = scalar_lea.vmem %s3, %s5615
      // Predicated region
      $region33: #{tpu_custom_call.1} parent=31 // pred_check
        %p5617 = pneg %p100
      $region34: #{tpu_custom_call.1} parent=31 // pred_check_branch
        %5619 = sbr.rel (%p5617) target = $region36
      $region35: #{tpu_custom_call.1} parent=31 // pred_region
        _
      $region36: #{tpu_custom_call.1} parent=31 // pred_fallthru
        _
    $region32: #{tpu_custom_call.1} parent=5 // pred_fallthru
      _
    %p5620 = scmp.le.s32.totalorder 2, %s9
    // Predicated region
    $region37: #{tpu_custom_call.1} parent=5 // pred_check
      %p5621 = pneg %p5620
    $region38: #{tpu_custom_call.1} parent=5 // pred_check_branch
      %5623 = sbr.rel (%p5621) target = $region40
    $region39: #{tpu_custom_call.1} parent=5 // pred_region
      %s5624 = ssub.s32 %s9, 2
      // Predicated region
      $region41: #{tpu_custom_call.1} parent=39 // pred_check
        %p5625 = pneg %p106
      $region42: #{tpu_custom_call.1} parent=39 // pred_check_branch
        %5627 = sbr.rel (%p5625) target = $region44
      $region43: #{tpu_custom_call.1} parent=39 // pred_region
        %p5628 = scmp.lt.s32.totalorder %s15, 1
        %s5629 = scalar_select %p5628, %s15, 1
        %s5630 = smul.addr %s5629, 32
        %s5631 = smul.addr %s5630, 8
        %s5632 = scalar_lea.vmem %s3, %s5631
      $region44: #{tpu_custom_call.1} parent=39 // pred_fallthru
        _
    $region40: #{tpu_custom_call.1} parent=5 // pred_fallthru
      _
  $region6: #{tpu_custom_call.1} parent=0 // loop_footer
    %s13 = sadd.s32 1, %s9
  $region7: #{tpu_custom_call.1} parent=0 // loop_footer_branch
    %8 = sbr.rel target = $region3
  $region8: #{tpu_custom_call.1} parent=0 // loop_exit
    _

</llo_original>
